<compile_context>
chip_gen: v5e
topology: v5e:2x2
jax: 0.10.0
libtpu: 0.0.40
codegen_flags: <defaults>
</compile_context>

<pallas_src>
import functools

import jax
import jax.numpy as jnp
from jax import lax
from jax.experimental import pallas as pl
from jax.experimental.pallas import tpu as pltpu


def _corr_loss_kernel(feat_ref, mrow_ref, mcol_ref, w_ref, out_ref, *,
                      cap, num_levels, cout, hw):
    """One grid point = one batch element; loops over all L feature levels.

    Writes the 6 correlation losses summed over L (each already divided by its
    level-independent denominator):
      [template_FB_FB, template_FB_BG, target_FB_FB, target_FB_BG, tt_FB_FB, tt_FB_BG]
    """
    feat = feat_ref[0]                 # (Cin, 2*HW)  -- [template | target] pixels
    mrow = mrow_ref[0]                 # (2, HW)      -- row-layout FG masks
    mcol = mcol_ref[0]                 # (HW, 2)      -- column-layout FG masks
    mt_row = mrow[0:1, :]              # (1, HW)  template mask (1.=FG, 0.=BG)
    mg_row = mrow[1:2, :]              # (1, HW)  target mask
    mt_col = mcol[:, 0:1]              # (HW, 1)
    mg_col = mcol[:, 1:2]              # (HW, 1)

    fhw = jnp.float32(hw)

    # Level-independent mask sums / denominators (hoisted out of the L loop).
    sum_mt = jnp.sum(mt_row)
    sum_mg = jnp.sum(mg_row)
    den = (
        jnp.maximum(sum_mt * sum_mt, 1.0),           # template FB-FB
        jnp.maximum(sum_mt * (fhw - sum_mt), 1.0),   # template FB-BG
        jnp.maximum(sum_mg * sum_mg, 1.0),           # target  FB-FB
        jnp.maximum(sum_mg * (fhw - sum_mg), 1.0),   # target  FB-BG
        jnp.maximum(sum_mt * sum_mg, 1.0),           # tt      FB-FB
        jnp.maximum(sum_mt * (fhw - sum_mg), 1.0),   # tt      FB-BG
    )

    # Fused 1x1-conv feature extraction for all L levels and both images: one
    # (L*Cout, Cin) x (Cin, 2*HW) MXU call instead of 2*L tiny matmuls.
    z = jnp.dot(w_ref[...], feat, preferred_element_type=jnp.float32)  # (L*Cout, 2HW)

    dn = (((0,), (0,)), ((), ()))   # contract the channel axis (dim 0) of both

    def pair_vecs(a, b, mx_col, my_row):
        # corr[i, j] = <a[:, i], b[:, j]>  -- (HW, HW) cosine correlation.
        corr = lax.dot_general(a, b, dn, preferred_element_type=jnp.float32)
        # Binary masks => FB-FB and FB-BG share one select+relu stream:
        #   my_j = 1 columns contribute relu(cap - corr), my_j = 0 columns relu(corr).
        sel = jnp.where(my_row > 0.0, cap - corr, corr)        # (HW, HW)
        # Sublane-first bilinear reduction: weight rows by mx (lane-broadcast
        # multiply), reduce axis=0 (VPU adds) -> lane-dense (1, HW) vector.
        r = jnp.maximum(sel, 0.0) * mx_col                     # (HW, HW)
        colsum = jnp.sum(r, axis=0, keepdims=True)             # (1, HW)
        return colsum * my_row, colsum * (1.0 - my_row)

    zero = jnp.zeros((1, hw), jnp.float32)
    acc = [zero, zero, zero, zero, zero, zero]
    for l in range(num_levels):
        zl = z[l * cout:(l + 1) * cout, :]                               # (Cout, 2HW)
        # Per-pixel L2 normalization (f32 elementwise) -> cosine correlations.
        inv = lax.rsqrt(jnp.sum(zl * zl, axis=0, keepdims=True) + 1e-6)  # (1, 2HW)
        fn = (zl * inv).astype(jnp.bfloat16)   # bf16 gram operands, f32 accumulation
        ft = fn[:, :hw]                        # (Cout, HW) template features
        fg = fn[:, hw:]                        # (Cout, HW) target features
        v0, v1 = pair_vecs(ft, ft, mt_col, mt_row)   # template self-corr
        v2, v3 = pair_vecs(fg, fg, mg_col, mg_row)   # target self-corr
        v4, v5 = pair_vecs(ft, fg, mt_col, mg_row)   # template-target corr
        vs = (v0, v1, v2, v3, v4, v5)
        acc = [a + v for a, v in zip(acc, vs)]

    # Single lane reduce per output (6 total per batch element), then divide.
    for k in range(6):
        out_ref[0, 0, k] = jnp.sum(acc[k]) / den[k]


def _pallas_corr_losses(feat_cat, mrows, mcols, wstack, cap, num_levels, cout, hw):
    """Returns (B, 6) float32 losses, each already summed over the L levels."""
    B, Cin, HW2 = feat_cat.shape
    LCout, _ = wstack.shape
    kernel = functools.partial(_corr_loss_kernel, cap=cap, num_levels=num_levels,
                               cout=cout, hw=hw)
    out = pl.pallas_call(
        kernel,
        out_shape=jax.ShapeDtypeStruct((B, 1, 6), jnp.float32),
        grid_spec=pltpu.PrefetchScalarGridSpec(
            num_scalar_prefetch=0,
            grid=(B,),
            in_specs=[
                pl.BlockSpec((1, Cin, HW2), lambda b: (b, 0, 0)),   # [tpl | tgt] feats
                pl.BlockSpec((1, 2, hw), lambda b: (b, 0, 0)),      # masks, row layout
                pl.BlockSpec((1, hw, 2), lambda b: (b, 0, 0)),      # masks, col layout
                pl.BlockSpec((LCout, Cin), lambda b: (0, 0)),       # stacked level weights
            ],
            out_specs=pl.BlockSpec((1, 1, 6), lambda b: (b, 0, 0),
                                   memory_space=pltpu.MemorySpace.SMEM),
        ),
        compiler_params=pltpu.CompilerParams(
            dimension_semantics=("parallel",)),
    )(feat_cat, mrows, mcols, wstack)
    return out[:, 0, :]


def full_training_ranet_correlation(template, target, template_msk, target_msk, weights,
                                    cap=0.4, lamda1=0.5, lamda2=0.5, cross_lamda=2.0,
                                    lamda=0.1):
    """Mirrors Full_training_RAnet_correlation.forward (loss aggregation)."""
    B, Cin, H, W = template.shape
    HW = H * W
    L, Cout, _ = weights.shape

    tpl = template.reshape(B, Cin, HW).astype(jnp.float32)
    tgt = target.reshape(B, Cin, HW).astype(jnp.float32)
    feat_cat = jnp.concatenate([tpl, tgt], axis=-1)                       # (B, Cin, 2*HW)

    tm = template_msk.reshape(B, 1, HW).astype(jnp.float32)
    gm = target_msk.reshape(B, 1, HW).astype(jnp.float32)
    mrows = jnp.concatenate([tm, gm], axis=1)                             # (B, 2, HW)
    mcols = jnp.stack([template_msk.reshape(B, HW),
                       target_msk.reshape(B, HW)], axis=-1).astype(jnp.float32)  # (B, HW, 2)

    wstack = weights.reshape(L * Cout, Cin).astype(jnp.float32)           # (L*Cout, Cin)

    # Per-batch 6-vector of losses, already summed over the L levels.
    losses = _pallas_corr_losses(feat_cat, mrows, mcols, wstack,
                                 float(cap), L, Cout, HW)

    # Vectorized equivalent of the reference double loop:
    #   target_* terms scaled by cross_lamda, combined with lamda1/lamda2,
    #   divided by (2 + cross_lamda), summed over batch, divided by count=B*L.
    fbfb = losses[:, 0] + cross_lamda * losses[:, 2] + losses[:, 4]
    fbbg = losses[:, 1] + cross_lamda * losses[:, 3] + losses[:, 5]
    per_batch = (lamda1 * fbfb + lamda2 * fbbg) / (2.0 + cross_lamda)

    # == template[0,0,0,0].detach() * 0 accumulator initialization
    correlation_loss = lax.stop_gradient(template[0, 0, 0, 0]) * 0.0 + jnp.sum(per_batch)
    count = B * L
    if count > 0:
        correlation_loss = correlation_loss / count
    return correlation_loss


if __name__ == "__main__":
    key = jax.random.PRNGKey(0)
    B, Cin, H, W = 2, 4, 16, 16    # small NCHW shapes
    Cout, L = 32, 2                # feature channels, number of correlation levels (idy)

    k1, k2, k3, k4, k5 = jax.random.split(key, 5)
    template = jax.random.normal(k1, (B, Cin, H, W), dtype=jnp.float32)
    target = jax.random.normal(k2, (B, Cin, H, W), dtype=jnp.float32)
    # binary {0,1} FG masks (required by the fused select+relu mask-loss path)
    template_msk = (jax.random.uniform(k3, (B, 1, H, W)) > 0.5).astype(jnp.float32)
    target_msk = (jax.random.uniform(k4, (B, 1, H, W)) > 0.5).astype(jnp.float32)
    # deterministic synthetic feature-extractor weights (one 1x1 conv per level)
    weights = 0.1 * jax.random.normal(k5, (L, Cout, Cin), dtype=jnp.float32)

    loss = jax.jit(full_training_ranet_correlation)(
        template, target, template_msk, target_msk, weights)
    jax.block_until_ready(loss)
    print("KERNEL_OK")
</pallas_src>

<mosaic_0001>
module attributes {stable_mosaic.version = 11 : i64} {
  func.func @_corr_loss_kernel(%arg0: i32, %arg1: memref<1x4x512xf32, #tpu.memory_space<vmem>>, %arg2: memref<1x2x256xf32, #tpu.memory_space<vmem>>, %arg3: memref<1x256x2xf32, #tpu.memory_space<vmem>>, %arg4: memref<64x4xf32, #tpu.memory_space<vmem>>, %arg5: memref<1x1x6xf32, #tpu.memory_space<smem>>) attributes {dimension_semantics = [#tpu.dimension_semantics<parallel>], iteration_bounds = array<i64: 2>, scalar_prefetch = 0 : i64, scratch_operands = 0 : i64, tpu.core_type = #tpu.core_type<tc>, window_params = [{transform_indices = @transform_0, window_bounds = array<i64: 1, 4, 512>}, {transform_indices = @transform_1, window_bounds = array<i64: 1, 2, 256>}, {transform_indices = @transform_2, window_bounds = array<i64: 1, 256, 2>}, {pipeline_mode = #tpu.pipeline_mode<synchronous>, transform_indices = @transform_3, window_bounds = array<i64: 64, 4>}, {transform_indices = @transform_4, window_bounds = array<i64: 1, 1, 6>}]} {
    %c0 = arith.constant 0 : index
    %c0_0 = arith.constant 0 : index
    %c0_1 = arith.constant 0 : index
    %0 = vector.load %arg1[%c0, %c0_0, %c0_1] : memref<1x4x512xf32, #tpu.memory_space<vmem>>, vector<1x4x512xf32>
    %1 = vector.shape_cast %0 : vector<1x4x512xf32> to vector<4x512xf32>
    %c0_2 = arith.constant 0 : index
    %c0_3 = arith.constant 0 : index
    %c0_4 = arith.constant 0 : index
    %2 = vector.load %arg2[%c0_2, %c0_3, %c0_4] : memref<1x2x256xf32, #tpu.memory_space<vmem>>, vector<1x2x256xf32>
    %3 = vector.shape_cast %2 : vector<1x2x256xf32> to vector<2x256xf32>
    %c0_5 = arith.constant 0 : index
    %c0_6 = arith.constant 0 : index
    %c0_7 = arith.constant 0 : index
    %4 = vector.load %arg3[%c0_5, %c0_6, %c0_7] : memref<1x256x2xf32, #tpu.memory_space<vmem>>, vector<1x256x2xf32>
    %5 = vector.shape_cast %4 : vector<1x256x2xf32> to vector<256x2xf32>
    %6 = vector.extract_strided_slice %3 {offsets = [0, 0], sizes = [1, 256], strides = [1, 1]} : vector<2x256xf32> to vector<1x256xf32>
    %7 = vector.extract_strided_slice %3 {offsets = [1, 0], sizes = [1, 256], strides = [1, 1]} : vector<2x256xf32> to vector<1x256xf32>
    %8 = vector.extract_strided_slice %5 {offsets = [0, 0], sizes = [256, 1], strides = [1, 1]} : vector<256x2xf32> to vector<256x1xf32>
    %9 = vector.extract_strided_slice %5 {offsets = [0, 1], sizes = [256, 1], strides = [1, 1]} : vector<256x2xf32> to vector<256x1xf32>
    %10 = vector.shape_cast %6 : vector<1x256xf32> to vector<1x1x256xf32>
    %cst = arith.constant dense<0.000000e+00> : vector<1xf32>
    %11 = vector.multi_reduction <add>, %10, %cst [1, 2] : vector<1x1x256xf32> to vector<1xf32>
    %12 = vector.shape_cast %11 : vector<1xf32> to vector<1x1x1xf32>
    %13 = vector.extract %12[0, 0, 0] : f32 from vector<1x1x1xf32>
    %14 = vector.shape_cast %7 : vector<1x256xf32> to vector<1x1x256xf32>
    %cst_8 = arith.constant dense<0.000000e+00> : vector<1xf32>
    %15 = vector.multi_reduction <add>, %14, %cst_8 [1, 2] : vector<1x1x256xf32> to vector<1xf32>
    %16 = vector.shape_cast %15 : vector<1xf32> to vector<1x1x1xf32>
    %17 = vector.extract %16[0, 0, 0] : f32 from vector<1x1x1xf32>
    %18 = arith.mulf %13, %13 : f32
    %cst_9 = arith.constant 1.000000e+00 : f32
    %19 = arith.maximumf %18, %cst_9 : f32
    %cst_10 = arith.constant 2.560000e+02 : f32
    %20 = arith.subf %cst_10, %13 : f32
    %21 = arith.mulf %13, %20 : f32
    %cst_11 = arith.constant 1.000000e+00 : f32
    %22 = arith.maximumf %21, %cst_11 : f32
    %23 = arith.mulf %17, %17 : f32
    %cst_12 = arith.constant 1.000000e+00 : f32
    %24 = arith.maximumf %23, %cst_12 : f32
    %cst_13 = arith.constant 2.560000e+02 : f32
    %25 = arith.subf %cst_13, %17 : f32
    %26 = arith.mulf %17, %25 : f32
    %cst_14 = arith.constant 1.000000e+00 : f32
    %27 = arith.maximumf %26, %cst_14 : f32
    %28 = arith.mulf %13, %17 : f32
    %cst_15 = arith.constant 1.000000e+00 : f32
    %29 = arith.maximumf %28, %cst_15 : f32
    %cst_16 = arith.constant 2.560000e+02 : f32
    %30 = arith.subf %cst_16, %17 : f32
    %31 = arith.mulf %13, %30 : f32
    %cst_17 = arith.constant 1.000000e+00 : f32
    %32 = arith.maximumf %31, %cst_17 : f32
    %c0_18 = arith.constant 0 : index
    %c0_19 = arith.constant 0 : index
    %33 = vector.load %arg4[%c0_18, %c0_19] : memref<64x4xf32, #tpu.memory_space<vmem>>, vector<64x4xf32>
    %cst_20 = arith.constant dense<0.000000e+00> : vector<64x512xf32>
    %34 = tpu.matmul %33, %1, %cst_20 {dimension_numbers = #tpu.dot_dimension_numbers<[1], [0], [0], [1], [0, 0, 1, 1], [], []>} : vector<64x4xf32>, vector<4x512xf32>, vector<64x512xf32> -> vector<64x512xf32>
    %cst_21 = arith.constant 0.000000e+00 : f32
    %35 = vector.broadcast %cst_21 : f32 to vector<1x256xf32>
    %36 = vector.extract_strided_slice %34 {offsets = [0, 0], sizes = [32, 512], strides = [1, 1]} : vector<64x512xf32> to vector<32x512xf32>
    %37 = arith.mulf %36, %36 : vector<32x512xf32>
    %cst_22 = arith.constant dense<0.000000e+00> : vector<512xf32>
    %38 = vector.multi_reduction <add>, %37, %cst_22 [0] : vector<32x512xf32> to vector<512xf32>
    %39 = vector.shape_cast %38 : vector<512xf32> to vector<1x512xf32>
    %cst_23 = arith.constant 9.99999997E-7 : f32
    %40 = vector.broadcast %cst_23 : f32 to vector<1x512xf32>
    %41 = arith.addf %39, %40 : vector<1x512xf32>
    %42 = math.rsqrt %41 : vector<1x512xf32>
    %43 = vector.broadcast %42 : vector<1x512xf32> to vector<32x512xf32>
    %44 = arith.mulf %36, %43 : vector<32x512xf32>
    %45 = arith.truncf %44 : vector<32x512xf32> to vector<32x512xbf16>
    %46 = vector.extract_strided_slice %45 {offsets = [0, 0], sizes = [32, 256], strides = [1, 1]} : vector<32x512xbf16> to vector<32x256xbf16>
    %47 = vector.extract_strided_slice %45 {offsets = [0, 256], sizes = [32, 256], strides = [1, 1]} : vector<32x512xbf16> to vector<32x256xbf16>
    %cst_24 = arith.constant dense<0.000000e+00> : vector<256x256xf32>
    %48 = tpu.matmul %46, %46, %cst_24 {dimension_numbers = #tpu.dot_dimension_numbers<[0], [0], [1], [1], [0, 1, 1, 1], [], []>} : vector<32x256xbf16>, vector<32x256xbf16>, vector<256x256xf32> -> vector<256x256xf32>
    %cst_25 = arith.constant 0.000000e+00 : f32
    %49 = vector.broadcast %cst_25 : f32 to vector<1x256xf32>
    %50 = arith.cmpf ogt, %6, %49 : vector<1x256xf32>
    %cst_26 = arith.constant 4.000000e-01 : f32
    %51 = vector.broadcast %cst_26 : f32 to vector<256x256xf32>
    %52 = arith.subf %51, %48 : vector<256x256xf32>
    %53 = vector.shape_cast %50 : vector<1x256xi1> to vector<1x256xi1>
    %54 = vector.broadcast %53 : vector<1x256xi1> to vector<256x256xi1>
    %55 = arith.select %54, %52, %48 : vector<256x256xi1>, vector<256x256xf32>
    %cst_27 = arith.constant 0.000000e+00 : f32
    %56 = vector.broadcast %cst_27 : f32 to vector<256x256xf32>
    %57 = arith.maximumf %55, %56 : vector<256x256xf32>
    %58 = vector.broadcast %8 : vector<256x1xf32> to vector<256x256xf32>
    %59 = arith.mulf %57, %58 : vector<256x256xf32>
    %cst_28 = arith.constant dense<0.000000e+00> : vector<256xf32>
    %60 = vector.multi_reduction <add>, %59, %cst_28 [0] : vector<256x256xf32> to vector<256xf32>
    %61 = vector.shape_cast %60 : vector<256xf32> to vector<1x256xf32>
    %62 = arith.mulf %61, %6 : vector<1x256xf32>
    %cst_29 = arith.constant 1.000000e+00 : f32
    %63 = vector.broadcast %cst_29 : f32 to vector<1x256xf32>
    %64 = arith.subf %63, %6 : vector<1x256xf32>
    %65 = arith.mulf %61, %64 : vector<1x256xf32>
    %cst_30 = arith.constant dense<0.000000e+00> : vector<256x256xf32>
    %66 = tpu.matmul %47, %47, %cst_30 {dimension_numbers = #tpu.dot_dimension_numbers<[0], [0], [1], [1], [0, 1, 1, 1], [], []>} : vector<32x256xbf16>, vector<32x256xbf16>, vector<256x256xf32> -> vector<256x256xf32>
    %cst_31 = arith.constant 0.000000e+00 : f32
    %67 = vector.broadcast %cst_31 : f32 to vector<1x256xf32>
    %68 = arith.cmpf ogt, %7, %67 : vector<1x256xf32>
    %cst_32 = arith.constant 4.000000e-01 : f32
    %69 = vector.broadcast %cst_32 : f32 to vector<256x256xf32>
    %70 = arith.subf %69, %66 : vector<256x256xf32>
    %71 = vector.shape_cast %68 : vector<1x256xi1> to vector<1x256xi1>
    %72 = vector.broadcast %71 : vector<1x256xi1> to vector<256x256xi1>
    %73 = arith.select %72, %70, %66 : vector<256x256xi1>, vector<256x256xf32>
    %cst_33 = arith.constant 0.000000e+00 : f32
    %74 = vector.broadcast %cst_33 : f32 to vector<256x256xf32>
    %75 = arith.maximumf %73, %74 : vector<256x256xf32>
    %76 = vector.broadcast %9 : vector<256x1xf32> to vector<256x256xf32>
    %77 = arith.mulf %75, %76 : vector<256x256xf32>
    %cst_34 = arith.constant dense<0.000000e+00> : vector<256xf32>
    %78 = vector.multi_reduction <add>, %77, %cst_34 [0] : vector<256x256xf32> to vector<256xf32>
    %79 = vector.shape_cast %78 : vector<256xf32> to vector<1x256xf32>
    %80 = arith.mulf %79, %7 : vector<1x256xf32>
    %cst_35 = arith.constant 1.000000e+00 : f32
    %81 = vector.broadcast %cst_35 : f32 to vector<1x256xf32>
    %82 = arith.subf %81, %7 : vector<1x256xf32>
    %83 = arith.mulf %79, %82 : vector<1x256xf32>
    %cst_36 = arith.constant dense<0.000000e+00> : vector<256x256xf32>
    %84 = tpu.matmul %46, %47, %cst_36 {dimension_numbers = #tpu.dot_dimension_numbers<[0], [0], [1], [1], [0, 1, 1, 1], [], []>} : vector<32x256xbf16>, vector<32x256xbf16>, vector<256x256xf32> -> vector<256x256xf32>
    %cst_37 = arith.constant 0.000000e+00 : f32
    %85 = vector.broadcast %cst_37 : f32 to vector<1x256xf32>
    %86 = arith.cmpf ogt, %7, %85 : vector<1x256xf32>
    %cst_38 = arith.constant 4.000000e-01 : f32
    %87 = vector.broadcast %cst_38 : f32 to vector<256x256xf32>
    %88 = arith.subf %87, %84 : vector<256x256xf32>
    %89 = vector.shape_cast %86 : vector<1x256xi1> to vector<1x256xi1>
    %90 = vector.broadcast %89 : vector<1x256xi1> to vector<256x256xi1>
    %91 = arith.select %90, %88, %84 : vector<256x256xi1>, vector<256x256xf32>
    %cst_39 = arith.constant 0.000000e+00 : f32
    %92 = vector.broadcast %cst_39 : f32 to vector<256x256xf32>
    %93 = arith.maximumf %91, %92 : vector<256x256xf32>
    %94 = vector.broadcast %8 : vector<256x1xf32> to vector<256x256xf32>
    %95 = arith.mulf %93, %94 : vector<256x256xf32>
    %cst_40 = arith.constant dense<0.000000e+00> : vector<256xf32>
    %96 = vector.multi_reduction <add>, %95, %cst_40 [0] : vector<256x256xf32> to vector<256xf32>
    %97 = vector.shape_cast %96 : vector<256xf32> to vector<1x256xf32>
    %98 = arith.mulf %97, %7 : vector<1x256xf32>
    %cst_41 = arith.constant 1.000000e+00 : f32
    %99 = vector.broadcast %cst_41 : f32 to vector<1x256xf32>
    %100 = arith.subf %99, %7 : vector<1x256xf32>
    %101 = arith.mulf %97, %100 : vector<1x256xf32>
    %102 = arith.addf %35, %62 : vector<1x256xf32>
    %103 = arith.addf %35, %65 : vector<1x256xf32>
    %104 = arith.addf %35, %80 : vector<1x256xf32>
    %105 = arith.addf %35, %83 : vector<1x256xf32>
    %106 = arith.addf %35, %98 : vector<1x256xf32>
    %107 = arith.addf %35, %101 : vector<1x256xf32>
    %108 = vector.extract_strided_slice %34 {offsets = [32, 0], sizes = [32, 512], strides = [1, 1]} : vector<64x512xf32> to vector<32x512xf32>
    %109 = arith.mulf %108, %108 : vector<32x512xf32>
    %cst_42 = arith.constant dense<0.000000e+00> : vector<512xf32>
    %110 = vector.multi_reduction <add>, %109, %cst_42 [0] : vector<32x512xf32> to vector<512xf32>
    %111 = vector.shape_cast %110 : vector<512xf32> to vector<1x512xf32>
    %cst_43 = arith.constant 9.99999997E-7 : f32
    %112 = vector.broadcast %cst_43 : f32 to vector<1x512xf32>
    %113 = arith.addf %111, %112 : vector<1x512xf32>
    %114 = math.rsqrt %113 : vector<1x512xf32>
    %115 = vector.broadcast %114 : vector<1x512xf32> to vector<32x512xf32>
    %116 = arith.mulf %108, %115 : vector<32x512xf32>
    %117 = arith.truncf %116 : vector<32x512xf32> to vector<32x512xbf16>
    %118 = vector.extract_strided_slice %117 {offsets = [0, 0], sizes = [32, 256], strides = [1, 1]} : vector<32x512xbf16> to vector<32x256xbf16>
    %119 = vector.extract_strided_slice %117 {offsets = [0, 256], sizes = [32, 256], strides = [1, 1]} : vector<32x512xbf16> to vector<32x256xbf16>
    %cst_44 = arith.constant dense<0.000000e+00> : vector<256x256xf32>
    %120 = tpu.matmul %118, %118, %cst_44 {dimension_numbers = #tpu.dot_dimension_numbers<[0], [0], [1], [1], [0, 1, 1, 1], [], []>} : vector<32x256xbf16>, vector<32x256xbf16>, vector<256x256xf32> -> vector<256x256xf32>
    %cst_45 = arith.constant 0.000000e+00 : f32
    %121 = vector.broadcast %cst_45 : f32 to vector<1x256xf32>
    %122 = arith.cmpf ogt, %6, %121 : vector<1x256xf32>
    %cst_46 = arith.constant 4.000000e-01 : f32
    %123 = vector.broadcast %cst_46 : f32 to vector<256x256xf32>
    %124 = arith.subf %123, %120 : vector<256x256xf32>
    %125 = vector.shape_cast %122 : vector<1x256xi1> to vector<1x256xi1>
    %126 = vector.broadcast %125 : vector<1x256xi1> to vector<256x256xi1>
    %127 = arith.select %126, %124, %120 : vector<256x256xi1>, vector<256x256xf32>
    %cst_47 = arith.constant 0.000000e+00 : f32
    %128 = vector.broadcast %cst_47 : f32 to vector<256x256xf32>
    %129 = arith.maximumf %127, %128 : vector<256x256xf32>
    %130 = vector.broadcast %8 : vector<256x1xf32> to vector<256x256xf32>
    %131 = arith.mulf %129, %130 : vector<256x256xf32>
    %cst_48 = arith.constant dense<0.000000e+00> : vector<256xf32>
    %132 = vector.multi_reduction <add>, %131, %cst_48 [0] : vector<256x256xf32> to vector<256xf32>
    %133 = vector.shape_cast %132 : vector<256xf32> to vector<1x256xf32>
    %134 = arith.mulf %133, %6 : vector<1x256xf32>
    %cst_49 = arith.constant 1.000000e+00 : f32
    %135 = vector.broadcast %cst_49 : f32 to vector<1x256xf32>
    %136 = arith.subf %135, %6 : vector<1x256xf32>
    %137 = arith.mulf %133, %136 : vector<1x256xf32>
    %cst_50 = arith.constant dense<0.000000e+00> : vector<256x256xf32>
    %138 = tpu.matmul %119, %119, %cst_50 {dimension_numbers = #tpu.dot_dimension_numbers<[0], [0], [1], [1], [0, 1, 1, 1], [], []>} : vector<32x256xbf16>, vector<32x256xbf16>, vector<256x256xf32> -> vector<256x256xf32>
    %cst_51 = arith.constant 0.000000e+00 : f32
    %139 = vector.broadcast %cst_51 : f32 to vector<1x256xf32>
    %140 = arith.cmpf ogt, %7, %139 : vector<1x256xf32>
    %cst_52 = arith.constant 4.000000e-01 : f32
    %141 = vector.broadcast %cst_52 : f32 to vector<256x256xf32>
    %142 = arith.subf %141, %138 : vector<256x256xf32>
    %143 = vector.shape_cast %140 : vector<1x256xi1> to vector<1x256xi1>
    %144 = vector.broadcast %143 : vector<1x256xi1> to vector<256x256xi1>
    %145 = arith.select %144, %142, %138 : vector<256x256xi1>, vector<256x256xf32>
    %cst_53 = arith.constant 0.000000e+00 : f32
    %146 = vector.broadcast %cst_53 : f32 to vector<256x256xf32>
    %147 = arith.maximumf %145, %146 : vector<256x256xf32>
    %148 = vector.broadcast %9 : vector<256x1xf32> to vector<256x256xf32>
    %149 = arith.mulf %147, %148 : vector<256x256xf32>
    %cst_54 = arith.constant dense<0.000000e+00> : vector<256xf32>
    %150 = vector.multi_reduction <add>, %149, %cst_54 [0] : vector<256x256xf32> to vector<256xf32>
    %151 = vector.shape_cast %150 : vector<256xf32> to vector<1x256xf32>
    %152 = arith.mulf %151, %7 : vector<1x256xf32>
    %cst_55 = arith.constant 1.000000e+00 : f32
    %153 = vector.broadcast %cst_55 : f32 to vector<1x256xf32>
    %154 = arith.subf %153, %7 : vector<1x256xf32>
    %155 = arith.mulf %151, %154 : vector<1x256xf32>
    %cst_56 = arith.constant dense<0.000000e+00> : vector<256x256xf32>
    %156 = tpu.matmul %118, %119, %cst_56 {dimension_numbers = #tpu.dot_dimension_numbers<[0], [0], [1], [1], [0, 1, 1, 1], [], []>} : vector<32x256xbf16>, vector<32x256xbf16>, vector<256x256xf32> -> vector<256x256xf32>
    %cst_57 = arith.constant 0.000000e+00 : f32
    %157 = vector.broadcast %cst_57 : f32 to vector<1x256xf32>
    %158 = arith.cmpf ogt, %7, %157 : vector<1x256xf32>
    %cst_58 = arith.constant 4.000000e-01 : f32
    %159 = vector.broadcast %cst_58 : f32 to vector<256x256xf32>
    %160 = arith.subf %159, %156 : vector<256x256xf32>
    %161 = vector.shape_cast %158 : vector<1x256xi1> to vector<1x256xi1>
    %162 = vector.broadcast %161 : vector<1x256xi1> to vector<256x256xi1>
    %163 = arith.select %162, %160, %156 : vector<256x256xi1>, vector<256x256xf32>
    %cst_59 = arith.constant 0.000000e+00 : f32
    %164 = vector.broadcast %cst_59 : f32 to vector<256x256xf32>
    %165 = arith.maximumf %163, %164 : vector<256x256xf32>
    %166 = vector.broadcast %8 : vector<256x1xf32> to vector<256x256xf32>
    %167 = arith.mulf %165, %166 : vector<256x256xf32>
    %cst_60 = arith.constant dense<0.000000e+00> : vector<256xf32>
    %168 = vector.multi_reduction <add>, %167, %cst_60 [0] : vector<256x256xf32> to vector<256xf32>
    %169 = vector.shape_cast %168 : vector<256xf32> to vector<1x256xf32>
    %170 = arith.mulf %169, %7 : vector<1x256xf32>
    %cst_61 = arith.constant 1.000000e+00 : f32
    %171 = vector.broadcast %cst_61 : f32 to vector<1x256xf32>
    %172 = arith.subf %171, %7 : vector<1x256xf32>
    %173 = arith.mulf %169, %172 : vector<1x256xf32>
    %174 = arith.addf %102, %134 : vector<1x256xf32>
    %175 = arith.addf %103, %137 : vector<1x256xf32>
    %176 = arith.addf %104, %152 : vector<1x256xf32>
    %177 = arith.addf %105, %155 : vector<1x256xf32>
    %178 = arith.addf %106, %170 : vector<1x256xf32>
    %179 = arith.addf %107, %173 : vector<1x256xf32>
    %180 = vector.shape_cast %174 : vector<1x256xf32> to vector<1x1x256xf32>
    %cst_62 = arith.constant dense<0.000000e+00> : vector<1xf32>
    %181 = vector.multi_reduction <add>, %180, %cst_62 [1, 2] : vector<1x1x256xf32> to vector<1xf32>
    %182 = vector.shape_cast %181 : vector<1xf32> to vector<1x1x1xf32>
    %183 = vector.extract %182[0, 0, 0] : f32 from vector<1x1x1xf32>
    %184 = arith.divf %183, %19 : f32
    %c0_63 = arith.constant 0 : index
    %c0_64 = arith.constant 0 : index
    %c0_65 = arith.constant 0 : index
    %185 = memref.load %arg5[%c0_63, %c0_64, %c0_65] : memref<1x1x6xf32, #tpu.memory_space<smem>>
    memref.store %184, %arg5[%c0_63, %c0_64, %c0_65] : memref<1x1x6xf32, #tpu.memory_space<smem>>
    %186 = vector.shape_cast %175 : vector<1x256xf32> to vector<1x1x256xf32>
    %cst_66 = arith.constant dense<0.000000e+00> : vector<1xf32>
    %187 = vector.multi_reduction <add>, %186, %cst_66 [1, 2] : vector<1x1x256xf32> to vector<1xf32>
    %188 = vector.shape_cast %187 : vector<1xf32> to vector<1x1x1xf32>
    %189 = vector.extract %188[0, 0, 0] : f32 from vector<1x1x1xf32>
    %190 = arith.divf %189, %22 : f32
    %c0_67 = arith.constant 0 : index
    %c0_68 = arith.constant 0 : index
    %c1 = arith.constant 1 : index
    %191 = memref.load %arg5[%c0_67, %c0_68, %c1] : memref<1x1x6xf32, #tpu.memory_space<smem>>
    memref.store %190, %arg5[%c0_67, %c0_68, %c1] : memref<1x1x6xf32, #tpu.memory_space<smem>>
    %192 = vector.shape_cast %176 : vector<1x256xf32> to vector<1x1x256xf32>
    %cst_69 = arith.constant dense<0.000000e+00> : vector<1xf32>
    %193 = vector.multi_reduction <add>, %192, %cst_69 [1, 2] : vector<1x1x256xf32> to vector<1xf32>
    %194 = vector.shape_cast %193 : vector<1xf32> to vector<1x1x1xf32>
    %195 = vector.extract %194[0, 0, 0] : f32 from vector<1x1x1xf32>
    %196 = arith.divf %195, %24 : f32
    %c0_70 = arith.constant 0 : index
    %c0_71 = arith.constant 0 : index
    %c2 = arith.constant 2 : index
    %197 = memref.load %arg5[%c0_70, %c0_71, %c2] : memref<1x1x6xf32, #tpu.memory_space<smem>>
    memref.store %196, %arg5[%c0_70, %c0_71, %c2] : memref<1x1x6xf32, #tpu.memory_space<smem>>
    %198 = vector.shape_cast %177 : vector<1x256xf32> to vector<1x1x256xf32>
    %cst_72 = arith.constant dense<0.000000e+00> : vector<1xf32>
    %199 = vector.multi_reduction <add>, %198, %cst_72 [1, 2] : vector<1x1x256xf32> to vector<1xf32>
    %200 = vector.shape_cast %199 : vector<1xf32> to vector<1x1x1xf32>
    %201 = vector.extract %200[0, 0, 0] : f32 from vector<1x1x1xf32>
    %202 = arith.divf %201, %27 : f32
    %c0_73 = arith.constant 0 : index
    %c0_74 = arith.constant 0 : index
    %c3 = arith.constant 3 : index
    %203 = memref.load %arg5[%c0_73, %c0_74, %c3] : memref<1x1x6xf32, #tpu.memory_space<smem>>
    memref.store %202, %arg5[%c0_73, %c0_74, %c3] : memref<1x1x6xf32, #tpu.memory_space<smem>>
    %204 = vector.shape_cast %178 : vector<1x256xf32> to vector<1x1x256xf32>
    %cst_75 = arith.constant dense<0.000000e+00> : vector<1xf32>
    %205 = vector.multi_reduction <add>, %204, %cst_75 [1, 2] : vector<1x1x256xf32> to vector<1xf32>
    %206 = vector.shape_cast %205 : vector<1xf32> to vector<1x1x1xf32>
    %207 = vector.extract %206[0, 0, 0] : f32 from vector<1x1x1xf32>
    %208 = arith.divf %207, %29 : f32
    %c0_76 = arith.constant 0 : index
    %c0_77 = arith.constant 0 : index
    %c4 = arith.constant 4 : index
    %209 = memref.load %arg5[%c0_76, %c0_77, %c4] : memref<1x1x6xf32, #tpu.memory_space<smem>>
    memref.store %208, %arg5[%c0_76, %c0_77, %c4] : memref<1x1x6xf32, #tpu.memory_space<smem>>
    %210 = vector.shape_cast %179 : vector<1x256xf32> to vector<1x1x256xf32>
    %cst_78 = arith.constant dense<0.000000e+00> : vector<1xf32>
    %211 = vector.multi_reduction <add>, %210, %cst_78 [1, 2] : vector<1x1x256xf32> to vector<1xf32>
    %212 = vector.shape_cast %211 : vector<1xf32> to vector<1x1x1xf32>
    %213 = vector.extract %212[0, 0, 0] : f32 from vector<1x1x1xf32>
    %214 = arith.divf %213, %32 : f32
    %c0_79 = arith.constant 0 : index
    %c0_80 = arith.constant 0 : index
    %c5 = arith.constant 5 : index
    %215 = memref.load %arg5[%c0_79, %c0_80, %c5] : memref<1x1x6xf32, #tpu.memory_space<smem>>
    memref.store %214, %arg5[%c0_79, %c0_80, %c5] : memref<1x1x6xf32, #tpu.memory_space<smem>>
    return
  }
  func.func @transform_0(%arg0: i32) -> (i32, i32, i32) {
    %c0_i32 = arith.constant 0 : i32
    %c0_i32_0 = arith.constant 0 : i32
    %c0_i32_1 = arith.constant 0 : i32
    return %arg0, %c0_i32, %c0_i32_0 : i32, i32, i32
  }
  func.func @transform_1(%arg0: i32) -> (i32, i32, i32) {
    %c0_i32 = arith.constant 0 : i32
    %c0_i32_0 = arith.constant 0 : i32
    %c0_i32_1 = arith.constant 0 : i32
    return %arg0, %c0_i32, %c0_i32_0 : i32, i32, i32
  }
  func.func @transform_2(%arg0: i32) -> (i32, i32, i32) {
    %c0_i32 = arith.constant 0 : i32
    %c0_i32_0 = arith.constant 0 : i32
    %c0_i32_1 = arith.constant 0 : i32
    return %arg0, %c0_i32, %c0_i32_0 : i32, i32, i32
  }
  func.func @transform_3(%arg0: i32) -> (i32, i32) {
    %c0_i32 = arith.constant 0 : i32
    %c0_i32_0 = arith.constant 0 : i32
    %c0_i32_1 = arith.constant 0 : i32
    return %c0_i32, %c0_i32_0 : i32, i32
  }
  func.func @transform_4(%arg0: i32) -> (i32, i32, i32) {
    %c0_i32 = arith.constant 0 : i32
    %c0_i32_0 = arith.constant 0 : i32
    %c0_i32_1 = arith.constant 0 : i32
    return %arg0, %c0_i32, %c0_i32_0 : i32, i32, i32
  }
}

</mosaic_0001>

<llo_original>
// kernel: full_training_ranet_correlation.1
$region0: #{full_training_ranet_correlation.1}
  #allocation0 [shape = 'u32[]', space=smem, size = 0x4, offset = 0x4, fixed_abs, tag = 'smem constant byte address 0x4 - core index']
  #allocation1 [shape = 'u32[72,128]{1,0:T(1,128)}', space=vmem, size = 0x9000, scoped, tag = 'internal scratch']
  %s0 = inlined_call_operand.vmem [shape: f32[2,4,512], index: 0, kind: input, shape index: {}]
  %s1 = inlined_call_operand.vmem [shape: f32[2,2,256], index: 1, kind: input, shape index: {}]
  %s2 = inlined_call_operand.vmem [shape: f32[2,256,2], index: 2, kind: input, shape index: {}]
  %s3 = inlined_call_operand.vmem [shape: f32[64,4], index: 3, kind: input, shape index: {}]
  %s4 = inlined_call_operand.vmem [shape: f32[2,1,6], index: 4, kind: output, shape index: {}]
  %s5 = sld [smem:[#allocation0]]
  $region49: #{full_training_ranet_correlation.1} parent=0
    _
  %s7 = ssub.s32 1, %s5
  %s8 = scalar_select 0, %s7, %s5
  $region1: #{full_training_ranet_correlation.1} parent=0
    #allocation2 [shape = 'u8[1024]{0}', space=smem, size = 0x400, scoped, tag = 'output window, operand 0']
    #allocation3 [shape = 's32[2]{0}', space=sflag, size = 0x8, scoped, tag = 'scoped memory for full_training_ranet_correlation.1']
    %9 = vsyncpa [#allocation3], 0
    %s10 = scalar_lea.sflag [#allocation3], 1
    %11 = vsyncpa %s10, 0
    loop: start=0, step=1, limit=4
    $region2: #{full_training_ranet_correlation.1} parent=1 // loop_pre_header
      _
    $region3: #{full_training_ranet_correlation.1} parent=1 // loop_header
      %s13 = sphi 0, %s17
      %p14 = scmp.ge.s32.totalorder %s13, 4
      %s23 = sphi 0, %s25
      %s26 = sphi 0, %s23
      %s27 = sphi 0, %s26
      %s43 = sphi 0, %s27
      %s49 = sphi 0, %s51
      %s52 = sphi 0, %s49
      %s53 = sphi 0, %s52
      %s69 = sphi 0, %s53
      %s75 = sphi 0, %s77
      %s78 = sphi 0, %s75
      %s79 = sphi 0, %s78
      %s95 = sphi 0, %s79
      %s99 = sphi 0, %s99
      %s101 = sphi 0, %s99
      %s102 = sphi 0, %s101
      %s116 = sphi 0, %s102
      %s122 = sphi 0, %s124
      %s125 = sphi 0, %s122
      %s126 = sphi 0, %s125
      %s142 = sphi 0, %s126
    $region4: #{full_training_ranet_correlation.1} parent=1 // loop_header_branch
      %16 = sbr.rel (%p14) target = $region8
    $region5: #{full_training_ranet_correlation.1} parent=1 // loop_body
      %s18 = ssub.s32 %s13, 1
      %s19 = ssub.s32 %s13, 2
      %s20 = sadd.s32 %s13, 1
      %s21 = ssub.s32 %s13, %s20
      %p22 = scmp.eq.s32.totalorder %s21, 0
      %s24 = sadd.s32 %s23, 1
      %s25 = scalar_select %p22, %s23, %s24
      %p28 = pneg %p22
      %p29 = scmp.eq.s32.totalorder %s13, 1
      %p30 = por %p28, %p29
      %p31 = scmp.ne.s32.totalorder %s23, %s26
      %p32 = scmp.eq.s32.totalorder %s13, 0
      %p33 = por %p31, %p32
      %p34 = scmp.ne.s32.totalorder %s23, %s26
      %p35 = scmp.eq.s32.totalorder %s18, 1
      %p36 = por %p34, %p35
      %p37 = scmp.ne.s32.totalorder %s26, %s27
      %p38 = scmp.eq.s32.totalorder %s18, 0
      %p39 = por %p37, %p38
      %p40 = scmp.ne.s32.totalorder %s26, %s27
      %p41 = scmp.eq.s32.totalorder %s19, 1
      %p42 = por %p40, %p41
      %p44 = scmp.ne.s32.totalorder %s27, %s43
      %p45 = scmp.eq.s32.totalorder %s19, 0
      %p46 = por %p44, %p45
      %s47 = ssub.s32 %s13, %s20
      %p48 = scmp.eq.s32.totalorder %s47, 0
      %s50 = sadd.s32 %s49, 1
      %s51 = scalar_select %p48, %s49, %s50
      %p54 = pneg %p48
      %p55 = scmp.eq.s32.totalorder %s13, 1
      %p56 = por %p54, %p55
      %p57 = scmp.ne.s32.totalorder %s49, %s52
      %p58 = scmp.eq.s32.totalorder %s13, 0
      %p59 = por %p57, %p58
      %p60 = scmp.ne.s32.totalorder %s49, %s52
      %p61 = scmp.eq.s32.totalorder %s18, 1
      %p62 = por %p60, %p61
      %p63 = scmp.ne.s32.totalorder %s52, %s53
      %p64 = scmp.eq.s32.totalorder %s18, 0
      %p65 = por %p63, %p64
      %p66 = scmp.ne.s32.totalorder %s52, %s53
      %p67 = scmp.eq.s32.totalorder %s19, 1
      %p68 = por %p66, %p67
      %p70 = scmp.ne.s32.totalorder %s53, %s69
      %p71 = scmp.eq.s32.totalorder %s19, 0
      %p72 = por %p70, %p71
      %s73 = ssub.s32 %s13, %s20
      %p74 = scmp.eq.s32.totalorder %s73, 0
      %s76 = sadd.s32 %s75, 1
      %s77 = scalar_select %p74, %s75, %s76
      %p80 = pneg %p74
      %p81 = scmp.eq.s32.totalorder %s13, 1
      %p82 = por %p80, %p81
      %p83 = scmp.ne.s32.totalorder %s75, %s78
      %p84 = scmp.eq.s32.totalorder %s13, 0
      %p85 = por %p83, %p84
      %p86 = scmp.ne.s32.totalorder %s75, %s78
      %p87 = scmp.eq.s32.totalorder %s18, 1
      %p88 = por %p86, %p87
      %p89 = scmp.ne.s32.totalorder %s78, %s79
      %p90 = scmp.eq.s32.totalorder %s18, 0
      %p91 = por %p89, %p90
      %p92 = scmp.ne.s32.totalorder %s78, %s79
      %p93 = scmp.eq.s32.totalorder %s19, 1
      %p94 = por %p92, %p93
      %p96 = scmp.ne.s32.totalorder %s79, %s95
      %p97 = scmp.eq.s32.totalorder %s19, 0
      %p98 = por %p96, %p97
      %s100 = sadd.s32 %s99, 1
      %p103 = scmp.eq.s32.totalorder %s13, 1
      %p104 = scmp.ne.s32.totalorder %s99, %s101
      %p105 = scmp.eq.s32.totalorder %s13, 0
      %p106 = por %p104, %p105
      %p107 = scmp.ne.s32.totalorder %s99, %s101
      %p108 = scmp.eq.s32.totalorder %s18, 1
      %p109 = por %p107, %p108
      %p110 = scmp.ne.s32.totalorder %s101, %s102
      %p111 = scmp.eq.s32.totalorder %s18, 0
      %p112 = por %p110, %p111
      %p113 = scmp.ne.s32.totalorder %s101, %s102
      %p114 = scmp.eq.s32.totalorder %s19, 1
      %p115 = por %p113, %p114
      %p117 = scmp.ne.s32.totalorder %s102, %s116
      %p118 = scmp.eq.s32.totalorder %s19, 0
      %p119 = por %p117, %p118
      %s120 = ssub.s32 %s13, %s20
      %p121 = scmp.eq.s32.totalorder %s120, 0
      %s123 = sadd.s32 %s122, 1
      %s124 = scalar_select %p121, %s122, %s123
      %p127 = pneg %p121
      %p128 = scmp.eq.s32.totalorder %s13, 1
      %p129 = por %p127, %p128
      %p130 = scmp.ne.s32.totalorder %s122, %s125
      %p131 = scmp.eq.s32.totalorder %s13, 0
      %p132 = por %p130, %p131
      %p133 = scmp.ne.s32.totalorder %s122, %s125
      %p134 = scmp.eq.s32.totalorder %s18, 1
      %p135 = por %p133, %p134
      %p136 = scmp.ne.s32.totalorder %s125, %s126
      %p137 = scmp.eq.s32.totalorder %s18, 0
      %p138 = por %p136, %p137
      %p139 = scmp.ne.s32.totalorder %s125, %s126
      %p140 = scmp.eq.s32.totalorder %s19, 1
      %p141 = por %p139, %p140
      %p143 = scmp.ne.s32.totalorder %s126, %s142
      %p144 = scmp.eq.s32.totalorder %s19, 0
      %p145 = por %p143, %p144
      %p146 = scmp.le.s32.totalorder 1, %s13
      %p147 = scmp.lt.s32.totalorder %s13, 3
      %p148 = pnand %p146, %p147
      %p149 = pneg %p148
      // Predicated region
      $region9: #{full_training_ranet_correlation.1} parent=5 // pred_check
        _
      $region10: #{full_training_ranet_correlation.1} parent=5 // pred_check_branch
        %151 = sbr.rel (%p148) target = $region12
      $region11: #{full_training_ranet_correlation.1} parent=5 // pred_region
        %s152 = ssub.s32 %s13, 1
        // Predicated region
        $region13: #{full_training_ranet_correlation.1} parent=11 // pred_check
          %p153 = pneg %p112
        $region14: #{full_training_ranet_correlation.1} parent=11 // pred_check_branch
          %155 = sbr.rel (%p153) target = $region16
        $region15: #{full_training_ranet_correlation.1} parent=11 // pred_region
          _
        $region16: #{full_training_ranet_correlation.1} parent=11 // pred_fallthru
          _
      $region12: #{full_training_ranet_correlation.1} parent=5 // pred_fallthru
        _
      %p156 = scmp.lt.s32.totalorder %s13, 2
      // Predicated region
      $region17: #{full_training_ranet_correlation.1} parent=5 // pred_check
        %p157 = pneg %p156
      $region18: #{full_training_ranet_correlation.1} parent=5 // pred_check_branch
        %159 = sbr.rel (%p157) target = $region20
      $region19: #{full_training_ranet_correlation.1} parent=5 // pred_region
        // Predicated region
        $region21: #{full_training_ranet_correlation.1} parent=19 // pred_check
          %p160 = pneg %p33
        $region22: #{full_training_ranet_correlation.1} parent=19 // pred_check_branch
          %162 = sbr.rel (%p160) target = $region24
        $region23: #{full_training_ranet_correlation.1} parent=19 // pred_region
          %p163 = scmp.lt.s32.totalorder %s13, 1
          %s164 = scalar_select %p163, %s13, 1
          %s165 = smul.addr %s164, 4
          %s166 = smul.addr %s165, 4
          %s167 = scalar_lea.vmem %s0, %s166
        $region24: #{full_training_ranet_correlation.1} parent=19 // pred_fallthru
          _
        // Predicated region
        $region25: #{full_training_ranet_correlation.1} parent=19 // pred_check
          %p168 = pneg %p59
        $region26: #{full_training_ranet_correlation.1} parent=19 // pred_check_branch
          %170 = sbr.rel (%p168) target = $region28
        $region27: #{full_training_ranet_correlation.1} parent=19 // pred_region
          %p171 = scmp.lt.s32.totalorder %s13, 1
          %s172 = scalar_select %p171, %s13, 1
          %s173 = smul.addr %s172, 2
          %s174 = smul.addr %s173, 2
          %s175 = scalar_lea.vmem %s1, %s174
        $region28: #{full_training_ranet_correlation.1} parent=19 // pred_fallthru
          _
        // Predicated region
        $region29: #{full_training_ranet_correlation.1} parent=19 // pred_check
          %p176 = pneg %p85
        $region30: #{full_training_ranet_correlation.1} parent=19 // pred_check_branch
          %178 = sbr.rel (%p176) target = $region32
        $region31: #{full_training_ranet_correlation.1} parent=19 // pred_region
          %p179 = scmp.lt.s32.totalorder %s13, 1
          %s180 = scalar_select %p179, %s13, 1
          %s181 = smul.addr %s180, 32
          %s182 = smul.addr %s181, 8
          %s183 = scalar_lea.vmem %s2, %s182
        $region32: #{full_training_ranet_correlation.1} parent=19 // pred_fallthru
          _
      $region20: #{full_training_ranet_correlation.1} parent=5 // pred_fallthru
        _
      %p184 = scmp.le.s32.totalorder 1, %s13
      %p185 = scmp.lt.s32.totalorder %s13, 3
      %p186 = pnand %p184, %p185
      %p187 = pneg %p186
      // Predicated region
      $region33: #{full_training_ranet_correlation.1} parent=5 // pred_check
        _
      $region34: #{full_training_ranet_correlation.1} parent=5 // pred_check_branch
        %189 = sbr.rel (%p186) target = $region36
      $region35: #{full_training_ranet_correlation.1} parent=5 // pred_region
        %s190 = ssub.s32 %s13, 1
        %p191 = scmp.lt.s32.totalorder %s18, 1
        %s192 = scalar_select %p191, %s18, 1
        %s193 = smul.addr %s192, 4
        %s194 = smul.addr %s193, 4
        %s195 = scalar_lea.vmem %s0, %s194
        %p196 = pneg %p39
        %p197 = pneg %p36
        %p198 = scmp.lt.s32.totalorder %s18, 1
        %s199 = scalar_select %p198, %s18, 1
        %s200 = smul.addr %s199, 2
        %s201 = smul.addr %s200, 2
        %s202 = scalar_lea.vmem %s1, %s201
        %p203 = pneg %p65
        %p204 = pneg %p62
        %p205 = scmp.lt.s32.totalorder %s18, 1
        %s206 = scalar_select %p205, %s18, 1
        %s207 = smul.addr %s206, 32
        %s208 = smul.addr %s207, 8
        %s209 = scalar_lea.vmem %s2, %s208
        %p210 = pneg %p91
        %p211 = pneg %p88
        %p212 = pneg %p112
        %p213 = pneg %p109
        %p214 = pneg %p138
        %p215 = pneg %p135
        %s216 = sand.u32 %s125, 1
        %s217 = scalar_lea.sflag [#allocation3], %s216
        %s218 = sand.u32 %s125, 1
        %s219 = smul.addr %s218, 128
        %s220 = scalar_lea.smem [#allocation2], %s219
        %p221 = scmp.lt.s32.totalorder %s18, 1
        %s222 = scalar_select %p221, %s18, 1
        %s223 = smul.addr %s222, 4
        %s224 = smul.addr %s223, 4
        %s225 = scalar_lea.vmem %s0, %s224
        %p226 = scmp.lt.s32.totalorder %s18, 1
        %s227 = scalar_select %p226, %s18, 1
        %s228 = smul.addr %s227, 2
        %s229 = smul.addr %s228, 2
        %s230 = scalar_lea.vmem %s1, %s229
        %p231 = scmp.lt.s32.totalorder %s18, 1
        %s232 = scalar_select %p231, %s18, 1
        %s233 = smul.addr %s232, 32
        %s234 = smul.addr %s233, 8
        %s235 = scalar_lea.vmem %s2, %s234
        %v237 = vld [vmem:[%s225] sm:$0xff]
        %v238 = vld [vmem:[%s225 + $0x8] sm:$0xff]
        %v239 = vld [vmem:[%s230] sm:$0xf]
        %v240 = vld [vmem:[%s235] sm:$0xff]
        %v241 = vld [vmem:[%s235 + $0x8] sm:$0xff]
        %v242 = vld [vmem:[%s235 + $0x10] sm:$0xff]
        %v243 = vld [vmem:[%s235 + $0x18] sm:$0xff]
        %v244 = vld [vmem:[%s235 + $0x20] sm:$0xff]
        %v245 = vld [vmem:[%s235 + $0x28] sm:$0xff]
        %v246 = vld [vmem:[%s235 + $0x30] sm:$0xff]
        %v247 = vld [vmem:[%s235 + $0x38] sm:$0xff]
        %v248 = vld [vmem:[%s235 + $0x40] sm:$0xff]
        %v249 = vld [vmem:[%s235 + $0x48] sm:$0xff]
        %v250 = vld [vmem:[%s235 + $0x50] sm:$0xff]
        %v251 = vld [vmem:[%s235 + $0x58] sm:$0xff]
        %v252 = vld [vmem:[%s235 + $0x60] sm:$0xff]
        %v253 = vld [vmem:[%s235 + $0x68] sm:$0xff]
        %v254 = vld [vmem:[%s235 + $0x70] sm:$0xff]
        %v255 = vld [vmem:[%s235 + $0x78] sm:$0xff]
        %v256 = vld [vmem:[%s235 + $0x80] sm:$0xff]
        %v257 = vld [vmem:[%s235 + $0x88] sm:$0xff]
        %v258 = vld [vmem:[%s235 + $0x90] sm:$0xff]
        %v259 = vld [vmem:[%s235 + $0x98] sm:$0xff]
        %v260 = vld [vmem:[%s235 + $0xa0] sm:$0xff]
        %v261 = vld [vmem:[%s235 + $0xa8] sm:$0xff]
        %v262 = vld [vmem:[%s235 + $0xb0] sm:$0xff]
        %v263 = vld [vmem:[%s235 + $0xb8] sm:$0xff]
        %v264 = vld [vmem:[%s235 + $0xc0] sm:$0xff]
        %v265 = vld [vmem:[%s235 + $0xc8] sm:$0xff]
        %v266 = vld [vmem:[%s235 + $0xd0] sm:$0xff]
        %v267 = vld [vmem:[%s235 + $0xd8] sm:$0xff]
        %v268 = vld [vmem:[%s235 + $0xe0] sm:$0xff]
        %v269 = vld [vmem:[%s235 + $0xe8] sm:$0xff]
        %v270 = vld [vmem:[%s235 + $0xf0] sm:$0xff]
        %v271 = vld [vmem:[%s235 + $0xf8] sm:$0xff]
        %v273 = vperm.slane %v239, 0
        %v274 = vperm.slane %v239, 2
        %vm277 = vcmask 1040384
        %v278 = vsel %vm277, %v273, 0.0
        %v279 = vsel %vm277, %v274, 0.0
        %v280 = vadd.f32 %v278, %v279
        %281 = vadd.xlane.f32.xlu0 %v280
        %v282 = vpop.xlane.xlu0 %281
        %v283 = vrot.slane %v282, 4
        %v284 = vadd.f32 %v282, %v283
        %v285 = vrot.slane %v284, 2
        %v286 = vadd.f32 %v284, %v285
        %v287 = vrot.slane %v286, 1
        %v288 = vadd.f32 %v286, %v287
        %s289 = vtos %v288
        %v290 = vperm.slane %v239, 1
        %v291 = vperm.slane %v239, 3
        %v294 = vsel %vm277, %v290, 0.0
        %v295 = vsel %vm277, %v291, 0.0
        %v296 = vadd.f32 %v294, %v295
        %297 = vadd.xlane.f32.xlu0 %v296
        %v298 = vpop.xlane.xlu0 %297
        %v299 = vrot.slane %v298, 4
        %v300 = vadd.f32 %v298, %v299
        %v301 = vrot.slane %v300, 2
        %v302 = vadd.f32 %v300, %v301
        %v303 = vrot.slane %v302, 1
        %v304 = vadd.f32 %v302, %v303
        %s305 = vtos %v304
        %s306 = smul.f32 %s289, %s289
        %s307 = smax.f32 %s306, 1.0
        %s308 = ssub.f32 256.0, %s289
        %s309 = smul.f32 %s289, %s308
        %s310 = smax.f32 %s309, 1.0
        %s311 = smul.f32 %s305, %s305
        %s312 = smax.f32 %s311, 1.0
        %s313 = ssub.f32 256.0, %s305
        %s314 = smul.f32 %s305, %s313
        %s315 = smax.f32 %s314, 1.0
        %s316 = smul.f32 %s289, %s305
        %s317 = smax.f32 %s316, 1.0
        %s318 = smul.f32 %s289, %s313
        %s319 = smax.f32 %s318, 1.0
        %v320 = vld [vmem:[%s3] sm:$0xff]
        %v321 = vld [vmem:[%s3 + $0x8] sm:$0xff]
        %v322 = vld [vmem:[%s3 + $0x10] sm:$0xff]
        %v323 = vld [vmem:[%s3 + $0x18] sm:$0xff]
        %v324 = vld [vmem:[%s3 + $0x20] sm:$0xff]
        %v325 = vld [vmem:[%s3 + $0x28] sm:$0xff]
        %v326 = vld [vmem:[%s3 + $0x30] sm:$0xff]
        %v327 = vld [vmem:[%s3 + $0x38] sm:$0xff]
        %330 = vst [vmem:[#allocation1] ss:$2 sm:$0xff] %v237
        %s331 = scalar_lea.vmem [#allocation1], 16
        %332 = vst [vmem:[%s331] ss:$2 sm:$0xff] %v238
        %v333 = vld.sshfl [vmem:[#allocation1] sm:$0xff pattern:$0x75316420]
        %v334 = vld.sshfl [vmem:[#allocation1 + $0x8] sm:$0xff pattern:$0x75316420]
        %v335 = vld.sshfl [vmem:[#allocation1 + $0x10] sm:$0xff pattern:$0x75316420]
        %v336 = vld.sshfl [vmem:[#allocation1 + $0x18] sm:$0xff pattern:$0x75316420]
        %vm337 = vcmask 31744
        %v339 = vsel %vm337, %v320, 0
        %v342 = vsel %vm337, %v321, 0
        %v345 = vsel %vm337, %v322, 0
        %v348 = vsel %vm337, %v323, 0
        %v351 = vsel %vm337, %v324, 0
        %v354 = vsel %vm337, %v325, 0
        %v357 = vsel %vm337, %v326, 0
        %v360 = vsel %vm337, %v327, 0
        %vm362 = vcmask 1043456
        %v363 = vsel %vm362, %v333, 0
        %v365 = vsel %vm362, %v334, 0
        %v367 = vsel %vm362, %v335, 0
        %v369 = vsel %vm362, %v336, 0
        %371 = vmatpush.msra.mxu0 0.0
        %372 = vmatpush.msra.mxu0 0.0
        %373 = vmatpush.msra.mxu0 0.0
        %374 = vmatpush.msra.mxu0 0.0
        %375 = vmatpush.msra.mxu0 0.0
        %376 = vmatpush.msra.mxu0 0.0
        %377 = vmatpush.msra.mxu0 0.0
        %378 = vmatpush.msra.mxu0 0.0
        %379 = vmatpush.msra.mxu0 0.0
        %380 = vmatpush.msra.mxu0 0.0
        %381 = vmatpush.msra.mxu0 0.0
        %382 = vmatpush.msra.mxu0 0.0
        %383 = vmatpush.msra.mxu0 0.0
        %384 = vmatpush.msra.mxu0 0.0
        %385 = vmatpush.msra.mxu0 0.0
        %386 = vmatpush.msra.mxu0 %v363
        %387 = vmatmul.f32.gmra.mxu0 %v339
        %v388 = vpop.f32.mrf.mxu0
        %v389 = vadd.f32 0.0, %v388
        %390 = vmatmul.f32.gmra.mxu0 %v342
        %v391 = vpop.f32.mrf.mxu0
        %v392 = vadd.f32 0.0, %v391
        %393 = vmatmul.f32.gmra.mxu0 %v345
        %v394 = vpop.f32.mrf.mxu0
        %v395 = vadd.f32 0.0, %v394
        %396 = vmatmul.f32.gmra.mxu0 %v348
        %v397 = vpop.f32.mrf.mxu0
        %v398 = vadd.f32 0.0, %v397
        %399 = vmatmul.f32.gmra.mxu0 %v351
        %v400 = vpop.f32.mrf.mxu0
        %v401 = vadd.f32 0.0, %v400
        %402 = vmatmul.f32.gmra.mxu0 %v354
        %v403 = vpop.f32.mrf.mxu0
        %v404 = vadd.f32 0.0, %v403
        %405 = vmatmul.f32.gmra.mxu0 %v357
        %v406 = vpop.f32.mrf.mxu0
        %v407 = vadd.f32 0.0, %v406
        %408 = vmatmul.f32.gmra.mxu0 %v360
        %v409 = vpop.f32.mrf.mxu0
        %v410 = vadd.f32 0.0, %v409
        %411 = vdwg.mxu0
        %412 = vmatpush.msra.mxu0 0.0
        %413 = vmatpush.msra.mxu0 0.0
        %414 = vmatpush.msra.mxu0 0.0
        %415 = vmatpush.msra.mxu0 0.0
        %416 = vmatpush.msra.mxu0 0.0
        %417 = vmatpush.msra.mxu0 0.0
        %418 = vmatpush.msra.mxu0 0.0
        %419 = vmatpush.msra.mxu0 0.0
        %420 = vmatpush.msra.mxu0 0.0
        %421 = vmatpush.msra.mxu0 0.0
        %422 = vmatpush.msra.mxu0 0.0
        %423 = vmatpush.msra.mxu0 0.0
        %424 = vmatpush.msra.mxu0 0.0
        %425 = vmatpush.msra.mxu0 0.0
        %426 = vmatpush.msra.mxu0 0.0
        %427 = vmatpush.msra.mxu0 %v365
        %428 = vmatmul.f32.gmra.mxu0 %v339
        %v429 = vpop.f32.mrf.mxu0
        %v430 = vadd.f32 0.0, %v429
        %431 = vmatmul.f32.gmra.mxu0 %v342
        %v432 = vpop.f32.mrf.mxu0
        %v433 = vadd.f32 0.0, %v432
        %434 = vmatmul.f32.gmra.mxu0 %v345
        %v435 = vpop.f32.mrf.mxu0
        %v436 = vadd.f32 0.0, %v435
        %437 = vmatmul.f32.gmra.mxu0 %v348
        %v438 = vpop.f32.mrf.mxu0
        %v439 = vadd.f32 0.0, %v438
        %440 = vmatmul.f32.gmra.mxu0 %v351
        %v441 = vpop.f32.mrf.mxu0
        %v442 = vadd.f32 0.0, %v441
        %443 = vmatmul.f32.gmra.mxu0 %v354
        %v444 = vpop.f32.mrf.mxu0
        %v445 = vadd.f32 0.0, %v444
        %446 = vmatmul.f32.gmra.mxu0 %v357
        %v447 = vpop.f32.mrf.mxu0
        %v448 = vadd.f32 0.0, %v447
        %449 = vmatmul.f32.gmra.mxu0 %v360
        %v450 = vpop.f32.mrf.mxu0
        %v451 = vadd.f32 0.0, %v450
        %452 = vdwg.mxu0
        %453 = vmatpush.msra.mxu0 0.0
        %454 = vmatpush.msra.mxu0 0.0
        %455 = vmatpush.msra.mxu0 0.0
        %456 = vmatpush.msra.mxu0 0.0
        %457 = vmatpush.msra.mxu0 0.0
        %458 = vmatpush.msra.mxu0 0.0
        %459 = vmatpush.msra.mxu0 0.0
        %460 = vmatpush.msra.mxu0 0.0
        %461 = vmatpush.msra.mxu0 0.0
        %462 = vmatpush.msra.mxu0 0.0
        %463 = vmatpush.msra.mxu0 0.0
        %464 = vmatpush.msra.mxu0 0.0
        %465 = vmatpush.msra.mxu0 0.0
        %466 = vmatpush.msra.mxu0 0.0
        %467 = vmatpush.msra.mxu0 0.0
        %468 = vmatpush.msra.mxu0 %v367
        %469 = vmatmul.f32.gmra.mxu0 %v339
        %v470 = vpop.f32.mrf.mxu0
        %v471 = vadd.f32 0.0, %v470
        %472 = vmatmul.f32.gmra.mxu0 %v342
        %v473 = vpop.f32.mrf.mxu0
        %v474 = vadd.f32 0.0, %v473
        %475 = vmatmul.f32.gmra.mxu0 %v345
        %v476 = vpop.f32.mrf.mxu0
        %v477 = vadd.f32 0.0, %v476
        %478 = vmatmul.f32.gmra.mxu0 %v348
        %v479 = vpop.f32.mrf.mxu0
        %v480 = vadd.f32 0.0, %v479
        %481 = vmatmul.f32.gmra.mxu0 %v351
        %v482 = vpop.f32.mrf.mxu0
        %v483 = vadd.f32 0.0, %v482
        %484 = vmatmul.f32.gmra.mxu0 %v354
        %v485 = vpop.f32.mrf.mxu0
        %v486 = vadd.f32 0.0, %v485
        %487 = vmatmul.f32.gmra.mxu0 %v357
        %v488 = vpop.f32.mrf.mxu0
        %v489 = vadd.f32 0.0, %v488
        %490 = vmatmul.f32.gmra.mxu0 %v360
        %v491 = vpop.f32.mrf.mxu0
        %v492 = vadd.f32 0.0, %v491
        %493 = vdwg.mxu0
        %494 = vmatpush.msra.mxu0 0.0
        %495 = vmatpush.msra.mxu0 0.0
        %496 = vmatpush.msra.mxu0 0.0
        %497 = vmatpush.msra.mxu0 0.0
        %498 = vmatpush.msra.mxu0 0.0
        %499 = vmatpush.msra.mxu0 0.0
        %500 = vmatpush.msra.mxu0 0.0
        %501 = vmatpush.msra.mxu0 0.0
        %502 = vmatpush.msra.mxu0 0.0
        %503 = vmatpush.msra.mxu0 0.0
        %504 = vmatpush.msra.mxu0 0.0
        %505 = vmatpush.msra.mxu0 0.0
        %506 = vmatpush.msra.mxu0 0.0
        %507 = vmatpush.msra.mxu0 0.0
        %508 = vmatpush.msra.mxu0 0.0
        %509 = vmatpush.msra.mxu0 %v369
        %510 = vmatmul.f32.gmra.mxu0 %v339
        %v511 = vpop.f32.mrf.mxu0
        %v512 = vadd.f32 0.0, %v511
        %513 = vmatmul.f32.gmra.mxu0 %v342
        %v514 = vpop.f32.mrf.mxu0
        %v515 = vadd.f32 0.0, %v514
        %516 = vmatmul.f32.gmra.mxu0 %v345
        %v517 = vpop.f32.mrf.mxu0
        %v518 = vadd.f32 0.0, %v517
        %519 = vmatmul.f32.gmra.mxu0 %v348
        %v520 = vpop.f32.mrf.mxu0
        %v521 = vadd.f32 0.0, %v520
        %522 = vmatmul.f32.gmra.mxu0 %v351
        %v523 = vpop.f32.mrf.mxu0
        %v524 = vadd.f32 0.0, %v523
        %525 = vmatmul.f32.gmra.mxu0 %v354
        %v526 = vpop.f32.mrf.mxu0
        %v527 = vadd.f32 0.0, %v526
        %528 = vmatmul.f32.gmra.mxu0 %v357
        %v529 = vpop.f32.mrf.mxu0
        %v530 = vadd.f32 0.0, %v529
        %531 = vmatmul.f32.gmra.mxu0 %v360
        %v532 = vpop.f32.mrf.mxu0
        %v533 = vadd.f32 0.0, %v532
        %534 = vdwg.mxu0
        %v535 = vmul.f32 %v389, %v389
        %v536 = vmul.f32 %v430, %v430
        %v537 = vmul.f32 %v471, %v471
        %v538 = vmul.f32 %v512, %v512
        %v539 = vmul.f32 %v392, %v392
        %v540 = vmul.f32 %v433, %v433
        %v541 = vmul.f32 %v474, %v474
        %v542 = vmul.f32 %v515, %v515
        %v543 = vmul.f32 %v395, %v395
        %v544 = vmul.f32 %v436, %v436
        %v545 = vmul.f32 %v477, %v477
        %v546 = vmul.f32 %v518, %v518
        %v547 = vmul.f32 %v398, %v398
        %v548 = vmul.f32 %v439, %v439
        %v549 = vmul.f32 %v480, %v480
        %v550 = vmul.f32 %v521, %v521
        %v551 = vadd.f32 %v535, %v539
        %v552 = vadd.f32 %v551, %v543
        %v553 = vadd.f32 %v552, %v547
        %v554 = vrot.slane %v553, 4
        %v555 = vadd.f32 %v553, %v554
        %v556 = vrot.slane %v555, 2
        %v557 = vadd.f32 %v555, %v556
        %v558 = vrot.slane %v557, 1
        %v559 = vadd.f32 %v557, %v558
        %v560 = vadd.f32 %v536, %v540
        %v561 = vadd.f32 %v560, %v544
        %v562 = vadd.f32 %v561, %v548
        %v563 = vrot.slane %v562, 4
        %v564 = vadd.f32 %v562, %v563
        %v565 = vrot.slane %v564, 2
        %v566 = vadd.f32 %v564, %v565
        %v567 = vrot.slane %v566, 1
        %v568 = vadd.f32 %v566, %v567
        %v569 = vadd.f32 %v537, %v541
        %v570 = vadd.f32 %v569, %v545
        %v571 = vadd.f32 %v570, %v549
        %v572 = vrot.slane %v571, 4
        %v573 = vadd.f32 %v571, %v572
        %v574 = vrot.slane %v573, 2
        %v575 = vadd.f32 %v573, %v574
        %v576 = vrot.slane %v575, 1
        %v577 = vadd.f32 %v575, %v576
        %v578 = vadd.f32 %v538, %v542
        %v579 = vadd.f32 %v578, %v546
        %v580 = vadd.f32 %v579, %v550
        %v581 = vrot.slane %v580, 4
        %v582 = vadd.f32 %v580, %v581
        %v583 = vrot.slane %v582, 2
        %v584 = vadd.f32 %v582, %v583
        %v585 = vrot.slane %v584, 1
        %v586 = vadd.f32 %v584, %v585
        %v587 = vadd.f32 %v559, 1e-06
        %v588 = vadd.f32 %v568, 1e-06
        %v589 = vadd.f32 %v577, 1e-06
        %v590 = vadd.f32 %v586, 1e-06
        %v591 = vrsqrt.pop %v587
        %v592 = vmul.f32 %v591, %v587
        %v593 = vmul.f32 %v592, %v591
        %v594 = vmul.f32 0.5, %v593
        %v595 = vsub.f32 1.5, %v594
        %v596 = vmul.f32 %v591, %v595
        %vm597 = vweird.f32 %v587
        %vm598 = vweird.f32 %v591
        %vm599 = vmor %vm597, %vm598
        %v600 = vsel %vm599, %v591, %v596
        %v601 = vrsqrt.pop %v588
        %v602 = vmul.f32 %v601, %v588
        %v603 = vmul.f32 %v602, %v601
        %v604 = vmul.f32 0.5, %v603
        %v605 = vsub.f32 1.5, %v604
        %v606 = vmul.f32 %v601, %v605
        %vm607 = vweird.f32 %v588
        %vm608 = vweird.f32 %v601
        %vm609 = vmor %vm607, %vm608
        %v610 = vsel %vm609, %v601, %v606
        %v611 = vrsqrt.pop %v589
        %v612 = vmul.f32 %v611, %v589
        %v613 = vmul.f32 %v612, %v611
        %v614 = vmul.f32 0.5, %v613
        %v615 = vsub.f32 1.5, %v614
        %v616 = vmul.f32 %v611, %v615
        %vm617 = vweird.f32 %v589
        %vm618 = vweird.f32 %v611
        %vm619 = vmor %vm617, %vm618
        %v620 = vsel %vm619, %v611, %v616
        %v621 = vrsqrt.pop %v590
        %v622 = vmul.f32 %v621, %v590
        %v623 = vmul.f32 %v622, %v621
        %v624 = vmul.f32 0.5, %v623
        %v625 = vsub.f32 1.5, %v624
        %v626 = vmul.f32 %v621, %v625
        %vm627 = vweird.f32 %v590
        %vm628 = vweird.f32 %v621
        %vm629 = vmor %vm627, %vm628
        %v630 = vsel %vm629, %v621, %v626
        %v631 = vmul.f32 %v389, %v600
        %v632 = vmul.f32 %v430, %v610
        %v633 = vmul.f32 %v471, %v620
        %v634 = vmul.f32 %v512, %v630
        %v635 = vmul.f32 %v392, %v600
        %v636 = vmul.f32 %v433, %v610
        %v637 = vmul.f32 %v474, %v620
        %v638 = vmul.f32 %v515, %v630
        %v639 = vmul.f32 %v395, %v600
        %v640 = vmul.f32 %v436, %v610
        %v641 = vmul.f32 %v477, %v620
        %v642 = vmul.f32 %v518, %v630
        %v643 = vmul.f32 %v398, %v600
        %v644 = vmul.f32 %v439, %v610
        %v645 = vmul.f32 %v480, %v620
        %v646 = vmul.f32 %v521, %v630
        %v647 = vpack.c.bf16 %v632, %v631
        %v648 = vpack.c.bf16 %v634, %v633
        %v649 = vpack.c.bf16 %v636, %v635
        %v650 = vpack.c.bf16 %v638, %v637
        %v651 = vpack.c.bf16 %v640, %v639
        %v652 = vpack.c.bf16 %v642, %v641
        %v653 = vpack.c.bf16 %v644, %v643
        %v654 = vpack.c.bf16 %v646, %v645
        %v659 = vunpack.c.l.b16 %v647
        %v660 = vunpack.c.h.b16 %v647
        %v661 = vunpack.c.l.b16 %v649
        %v662 = vunpack.c.h.b16 %v649
        %v663 = vunpack.c.l.b16 %v651
        %v664 = vunpack.c.h.b16 %v651
        %v665 = vunpack.c.l.b16 %v653
        %v666 = vunpack.c.h.b16 %v653
        %v667 = vpack.c.b16 %v661, %v659
        %v668 = vpack.c.b16 %v662, %v660
        %v669 = vpack.c.b16 %v665, %v663
        %v670 = vpack.c.b16 %v666, %v664
        %675 = vxpose.binary.xlu0.c.b16.start [1/16] %v668, %v667, 128
        %676 = vxpose.binary.xlu0.c.b16.cont [2/16] %v670, %v669, 128
        %677 = vxpose.binary.xlu0.c.b16.cont [3/16] 0, 0, 128
        %678 = vxpose.binary.xlu0.c.b16.cont [4/16] 0, 0, 128
        %679 = vxpose.binary.xlu0.c.b16.cont [5/16] 0, 0, 128
        %680 = vxpose.binary.xlu0.c.b16.cont [6/16] 0, 0, 128
        %681 = vxpose.binary.xlu0.c.b16.cont [7/16] 0, 0, 128
        %682 = vxpose.binary.xlu0.c.b16.end [8/16] 0, 0, 128
        %v683 = vpop.trf.xlu0
        %v684 = vpop.trf.xlu0
        %v685 = vpop.trf.xlu0
        %v686 = vpop.trf.xlu0
        %v687 = vpop.trf.xlu0
        %v688 = vpop.trf.xlu0
        %v689 = vpop.trf.xlu0
        %v690 = vpop.trf.xlu0
        %v691 = vpop.trf.xlu0
        %v692 = vpop.trf.xlu0
        %v693 = vpop.trf.xlu0
        %v694 = vpop.trf.xlu0
        %v695 = vpop.trf.xlu0
        %v696 = vpop.trf.xlu0
        %v697 = vpop.trf.xlu0
        %v698 = vpop.trf.xlu0
        %vm699 = vcmask 261120
        %v701 = vsel %vm699, %v683, 0
        %v704 = vsel %vm699, %v685, 0
        %v707 = vsel %vm699, %v687, 0
        %v710 = vsel %vm699, %v689, 0
        %v713 = vsel %vm699, %v691, 0
        %v716 = vsel %vm699, %v693, 0
        %v719 = vsel %vm699, %v695, 0
        %v722 = vsel %vm699, %v697, 0
        %v725 = vsel %vm699, %v684, 0
        %v728 = vsel %vm699, %v686, 0
        %v731 = vsel %vm699, %v688, 0
        %v734 = vsel %vm699, %v690, 0
        %v737 = vsel %vm699, %v692, 0
        %v740 = vsel %vm699, %v694, 0
        %v743 = vsel %vm699, %v696, 0
        %v746 = vsel %vm699, %v698, 0
        %748 = vmatpush.bf16.msra.mxu0 0
        %749 = vmatpush.bf16.msra.mxu0 0
        %750 = vmatpush.bf16.msra.mxu0 0
        %751 = vmatpush.bf16.msra.mxu0 0
        %752 = vmatpush.bf16.msra.mxu0 0
        %753 = vmatpush.bf16.msra.mxu0 0
        %754 = vmatpush.bf16.msra.mxu0 %v669
        %755 = vmatpush.bf16.msra.mxu0 %v667
        %756 = vmatmul.bf16.gmra.mxu0 %v701
        %v757 = vpop.f32.mrf.mxu0
        %v758 = vadd.f32 0.0, %v757
        %v759 = vpop.f32.mrf.mxu0
        %v760 = vadd.f32 0.0, %v759
        %761 = vmatmul.bf16.gmra.mxu0 %v704
        %v762 = vpop.f32.mrf.mxu0
        %v763 = vadd.f32 0.0, %v762
        %v764 = vpop.f32.mrf.mxu0
        %v765 = vadd.f32 0.0, %v764
        %766 = vmatmul.bf16.gmra.mxu0 %v707
        %v767 = vpop.f32.mrf.mxu0
        %v768 = vadd.f32 0.0, %v767
        %v769 = vpop.f32.mrf.mxu0
        %v770 = vadd.f32 0.0, %v769
        %771 = vmatmul.bf16.gmra.mxu0 %v710
        %v772 = vpop.f32.mrf.mxu0
        %v773 = vadd.f32 0.0, %v772
        %v774 = vpop.f32.mrf.mxu0
        %v775 = vadd.f32 0.0, %v774
        %776 = vmatmul.bf16.gmra.mxu0 %v713
        %v777 = vpop.f32.mrf.mxu0
        %v778 = vadd.f32 0.0, %v777
        %v779 = vpop.f32.mrf.mxu0
        %v780 = vadd.f32 0.0, %v779
        %781 = vmatmul.bf16.gmra.mxu0 %v716
        %v782 = vpop.f32.mrf.mxu0
        %v783 = vadd.f32 0.0, %v782
        %v784 = vpop.f32.mrf.mxu0
        %v785 = vadd.f32 0.0, %v784
        %786 = vmatmul.bf16.gmra.mxu0 %v719
        %v787 = vpop.f32.mrf.mxu0
        %v788 = vadd.f32 0.0, %v787
        %v789 = vpop.f32.mrf.mxu0
        %v790 = vadd.f32 0.0, %v789
        %791 = vmatmul.bf16.gmra.mxu0 %v722
        %v792 = vpop.f32.mrf.mxu0
        %v793 = vadd.f32 0.0, %v792
        %v794 = vpop.f32.mrf.mxu0
        %v795 = vadd.f32 0.0, %v794
        %796 = vmatmul.bf16.gmra.mxu0 %v725
        %v797 = vpop.f32.mrf.mxu0
        %v798 = vadd.f32 0.0, %v797
        %v799 = vpop.f32.mrf.mxu0
        %v800 = vadd.f32 0.0, %v799
        %801 = vmatmul.bf16.gmra.mxu0 %v728
        %v802 = vpop.f32.mrf.mxu0
        %v803 = vadd.f32 0.0, %v802
        %v804 = vpop.f32.mrf.mxu0
        %v805 = vadd.f32 0.0, %v804
        %806 = vmatmul.bf16.gmra.mxu0 %v731
        %v807 = vpop.f32.mrf.mxu0
        %v808 = vadd.f32 0.0, %v807
        %v809 = vpop.f32.mrf.mxu0
        %v810 = vadd.f32 0.0, %v809
        %811 = vmatmul.bf16.gmra.mxu0 %v734
        %v812 = vpop.f32.mrf.mxu0
        %v813 = vadd.f32 0.0, %v812
        %v814 = vpop.f32.mrf.mxu0
        %v815 = vadd.f32 0.0, %v814
        %816 = vmatmul.bf16.gmra.mxu0 %v737
        %v817 = vpop.f32.mrf.mxu0
        %v818 = vadd.f32 0.0, %v817
        %v819 = vpop.f32.mrf.mxu0
        %v820 = vadd.f32 0.0, %v819
        %821 = vmatmul.bf16.gmra.mxu0 %v740
        %v822 = vpop.f32.mrf.mxu0
        %v823 = vadd.f32 0.0, %v822
        %v824 = vpop.f32.mrf.mxu0
        %v825 = vadd.f32 0.0, %v824
        %826 = vmatmul.bf16.gmra.mxu0 %v743
        %v827 = vpop.f32.mrf.mxu0
        %v828 = vadd.f32 0.0, %v827
        %v829 = vpop.f32.mrf.mxu0
        %v830 = vadd.f32 0.0, %v829
        %831 = vmatmul.bf16.gmra.mxu0 %v746
        %v832 = vpop.f32.mrf.mxu0
        %v833 = vadd.f32 0.0, %v832
        %v834 = vpop.f32.mrf.mxu0
        %v835 = vadd.f32 0.0, %v834
        %836 = vdwg.mxu0
        %837 = vmatpush.bf16.msra.mxu0 0
        %838 = vmatpush.bf16.msra.mxu0 0
        %839 = vmatpush.bf16.msra.mxu0 0
        %840 = vmatpush.bf16.msra.mxu0 0
        %841 = vmatpush.bf16.msra.mxu0 0
        %842 = vmatpush.bf16.msra.mxu0 0
        %843 = vmatpush.bf16.msra.mxu0 %v670
        %844 = vmatpush.bf16.msra.mxu0 %v668
        %845 = vmatmul.bf16.gmra.mxu0 %v701
        %v846 = vpop.f32.mrf.mxu0
        %v847 = vadd.f32 0.0, %v846
        %v848 = vpop.f32.mrf.mxu0
        %v849 = vadd.f32 0.0, %v848
        %850 = vmatmul.bf16.gmra.mxu0 %v704
        %v851 = vpop.f32.mrf.mxu0
        %v852 = vadd.f32 0.0, %v851
        %v853 = vpop.f32.mrf.mxu0
        %v854 = vadd.f32 0.0, %v853
        %855 = vmatmul.bf16.gmra.mxu0 %v707
        %v856 = vpop.f32.mrf.mxu0
        %v857 = vadd.f32 0.0, %v856
        %v858 = vpop.f32.mrf.mxu0
        %v859 = vadd.f32 0.0, %v858
        %860 = vmatmul.bf16.gmra.mxu0 %v710
        %v861 = vpop.f32.mrf.mxu0
        %v862 = vadd.f32 0.0, %v861
        %v863 = vpop.f32.mrf.mxu0
        %v864 = vadd.f32 0.0, %v863
        %865 = vmatmul.bf16.gmra.mxu0 %v713
        %v866 = vpop.f32.mrf.mxu0
        %v867 = vadd.f32 0.0, %v866
        %v868 = vpop.f32.mrf.mxu0
        %v869 = vadd.f32 0.0, %v868
        %870 = vmatmul.bf16.gmra.mxu0 %v716
        %v871 = vpop.f32.mrf.mxu0
        %v872 = vadd.f32 0.0, %v871
        %v873 = vpop.f32.mrf.mxu0
        %v874 = vadd.f32 0.0, %v873
        %875 = vmatmul.bf16.gmra.mxu0 %v719
        %v876 = vpop.f32.mrf.mxu0
        %v877 = vadd.f32 0.0, %v876
        %v878 = vpop.f32.mrf.mxu0
        %v879 = vadd.f32 0.0, %v878
        %880 = vmatmul.bf16.gmra.mxu0 %v722
        %v881 = vpop.f32.mrf.mxu0
        %v882 = vadd.f32 0.0, %v881
        %v883 = vpop.f32.mrf.mxu0
        %v884 = vadd.f32 0.0, %v883
        %885 = vmatmul.bf16.gmra.mxu0 %v725
        %v886 = vpop.f32.mrf.mxu0
        %v887 = vadd.f32 0.0, %v886
        %v888 = vpop.f32.mrf.mxu0
        %v889 = vadd.f32 0.0, %v888
        %890 = vmatmul.bf16.gmra.mxu0 %v728
        %v891 = vpop.f32.mrf.mxu0
        %v892 = vadd.f32 0.0, %v891
        %v893 = vpop.f32.mrf.mxu0
        %v894 = vadd.f32 0.0, %v893
        %895 = vmatmul.bf16.gmra.mxu0 %v731
        %v896 = vpop.f32.mrf.mxu0
        %v897 = vadd.f32 0.0, %v896
        %v898 = vpop.f32.mrf.mxu0
        %v899 = vadd.f32 0.0, %v898
        %900 = vmatmul.bf16.gmra.mxu0 %v734
        %v901 = vpop.f32.mrf.mxu0
        %v902 = vadd.f32 0.0, %v901
        %v903 = vpop.f32.mrf.mxu0
        %v904 = vadd.f32 0.0, %v903
        %905 = vmatmul.bf16.gmra.mxu0 %v737
        %v906 = vpop.f32.mrf.mxu0
        %v907 = vadd.f32 0.0, %v906
        %v908 = vpop.f32.mrf.mxu0
        %v909 = vadd.f32 0.0, %v908
        %910 = vmatmul.bf16.gmra.mxu0 %v740
        %v911 = vpop.f32.mrf.mxu0
        %v912 = vadd.f32 0.0, %v911
        %v913 = vpop.f32.mrf.mxu0
        %v914 = vadd.f32 0.0, %v913
        %915 = vmatmul.bf16.gmra.mxu0 %v743
        %v916 = vpop.f32.mrf.mxu0
        %v917 = vadd.f32 0.0, %v916
        %v918 = vpop.f32.mrf.mxu0
        %v919 = vadd.f32 0.0, %v918
        %920 = vmatmul.bf16.gmra.mxu0 %v746
        %v921 = vpop.f32.mrf.mxu0
        %v922 = vadd.f32 0.0, %v921
        %v923 = vpop.f32.mrf.mxu0
        %v924 = vadd.f32 0.0, %v923
        %925 = vdwg.mxu0
        %vm926 = vcmp.gt.f32.partialorder %v239, 0.0
        %v927 = vsub.f32 0.4, %v758
        %v928 = vsub.f32 0.4, %v847
        %v929 = vsub.f32 0.4, %v760
        %v930 = vsub.f32 0.4, %v849
        %v931 = vsub.f32 0.4, %v763
        %v932 = vsub.f32 0.4, %v852
        %v933 = vsub.f32 0.4, %v765
        %v934 = vsub.f32 0.4, %v854
        %v935 = vsub.f32 0.4, %v768
        %v936 = vsub.f32 0.4, %v857
        %v937 = vsub.f32 0.4, %v770
        %v938 = vsub.f32 0.4, %v859
        %v939 = vsub.f32 0.4, %v773
        %v940 = vsub.f32 0.4, %v862
        %v941 = vsub.f32 0.4, %v775
        %v942 = vsub.f32 0.4, %v864
        %v943 = vsub.f32 0.4, %v778
        %v944 = vsub.f32 0.4, %v867
        %v945 = vsub.f32 0.4, %v780
        %v946 = vsub.f32 0.4, %v869
        %v947 = vsub.f32 0.4, %v783
        %v948 = vsub.f32 0.4, %v872
        %v949 = vsub.f32 0.4, %v785
        %v950 = vsub.f32 0.4, %v874
        %v951 = vsub.f32 0.4, %v788
        %v952 = vsub.f32 0.4, %v877
        %v953 = vsub.f32 0.4, %v790
        %v954 = vsub.f32 0.4, %v879
        %v955 = vsub.f32 0.4, %v793
        %v956 = vsub.f32 0.4, %v882
        %v957 = vsub.f32 0.4, %v795
        %v958 = vsub.f32 0.4, %v884
        %v959 = vsub.f32 0.4, %v798
        %v960 = vsub.f32 0.4, %v887
        %v961 = vsub.f32 0.4, %v800
        %v962 = vsub.f32 0.4, %v889
        %v963 = vsub.f32 0.4, %v803
        %v964 = vsub.f32 0.4, %v892
        %v965 = vsub.f32 0.4, %v805
        %v966 = vsub.f32 0.4, %v894
        %v967 = vsub.f32 0.4, %v808
        %v968 = vsub.f32 0.4, %v897
        %v969 = vsub.f32 0.4, %v810
        %v970 = vsub.f32 0.4, %v899
        %v971 = vsub.f32 0.4, %v813
        %v972 = vsub.f32 0.4, %v902
        %v973 = vsub.f32 0.4, %v815
        %v974 = vsub.f32 0.4, %v904
        %v975 = vsub.f32 0.4, %v818
        %v976 = vsub.f32 0.4, %v907
        %v977 = vsub.f32 0.4, %v820
        %v978 = vsub.f32 0.4, %v909
        %v979 = vsub.f32 0.4, %v823
        %v980 = vsub.f32 0.4, %v912
        %v981 = vsub.f32 0.4, %v825
        %v982 = vsub.f32 0.4, %v914
        %v983 = vsub.f32 0.4, %v828
        %v984 = vsub.f32 0.4, %v917
        %v985 = vsub.f32 0.4, %v830
        %v986 = vsub.f32 0.4, %v919
        %v987 = vsub.f32 0.4, %v833
        %v988 = vsub.f32 0.4, %v922
        %v989 = vsub.f32 0.4, %v835
        %v990 = vsub.f32 0.4, %v924
        %v991 = vsel %vm926, 1, 0
        %v992 = vperm.slane %v991, 0
        %v993 = vperm.slane %v991, 2
        %v994 = vperm.slane %v992, 0
        %v995 = vperm.slane %v993, 0
        %vm996 = vcmp.eq.s32.totalorder %v994, 1
        %vm997 = vcmp.eq.s32.totalorder %v995, 1
        %v998 = vsel %vm996, %v927, %v758
        %v999 = vsel %vm997, %v928, %v847
        %v1000 = vsel %vm996, %v929, %v760
        %v1001 = vsel %vm997, %v930, %v849
        %v1002 = vsel %vm996, %v931, %v763
        %v1003 = vsel %vm997, %v932, %v852
        %v1004 = vsel %vm996, %v933, %v765
        %v1005 = vsel %vm997, %v934, %v854
        %v1006 = vsel %vm996, %v935, %v768
        %v1007 = vsel %vm997, %v936, %v857
        %v1008 = vsel %vm996, %v937, %v770
        %v1009 = vsel %vm997, %v938, %v859
        %v1010 = vsel %vm996, %v939, %v773
        %v1011 = vsel %vm997, %v940, %v862
        %v1012 = vsel %vm996, %v941, %v775
        %v1013 = vsel %vm997, %v942, %v864
        %v1014 = vsel %vm996, %v943, %v778
        %v1015 = vsel %vm997, %v944, %v867
        %v1016 = vsel %vm996, %v945, %v780
        %v1017 = vsel %vm997, %v946, %v869
        %v1018 = vsel %vm996, %v947, %v783
        %v1019 = vsel %vm997, %v948, %v872
        %v1020 = vsel %vm996, %v949, %v785
        %v1021 = vsel %vm997, %v950, %v874
        %v1022 = vsel %vm996, %v951, %v788
        %v1023 = vsel %vm997, %v952, %v877
        %v1024 = vsel %vm996, %v953, %v790
        %v1025 = vsel %vm997, %v954, %v879
        %v1026 = vsel %vm996, %v955, %v793
        %v1027 = vsel %vm997, %v956, %v882
        %v1028 = vsel %vm996, %v957, %v795
        %v1029 = vsel %vm997, %v958, %v884
        %v1030 = vsel %vm996, %v959, %v798
        %v1031 = vsel %vm997, %v960, %v887
        %v1032 = vsel %vm996, %v961, %v800
        %v1033 = vsel %vm997, %v962, %v889
        %v1034 = vsel %vm996, %v963, %v803
        %v1035 = vsel %vm997, %v964, %v892
        %v1036 = vsel %vm996, %v965, %v805
        %v1037 = vsel %vm997, %v966, %v894
        %v1038 = vsel %vm996, %v967, %v808
        %v1039 = vsel %vm997, %v968, %v897
        %v1040 = vsel %vm996, %v969, %v810
        %v1041 = vsel %vm997, %v970, %v899
        %v1042 = vsel %vm996, %v971, %v813
        %v1043 = vsel %vm997, %v972, %v902
        %v1044 = vsel %vm996, %v973, %v815
        %v1045 = vsel %vm997, %v974, %v904
        %v1046 = vsel %vm996, %v975, %v818
        %v1047 = vsel %vm997, %v976, %v907
        %v1048 = vsel %vm996, %v977, %v820
        %v1049 = vsel %vm997, %v978, %v909
        %v1050 = vsel %vm996, %v979, %v823
        %v1051 = vsel %vm997, %v980, %v912
        %v1052 = vsel %vm996, %v981, %v825
        %v1053 = vsel %vm997, %v982, %v914
        %v1054 = vsel %vm996, %v983, %v828
        %v1055 = vsel %vm997, %v984, %v917
        %v1056 = vsel %vm996, %v985, %v830
        %v1057 = vsel %vm997, %v986, %v919
        %v1058 = vsel %vm996, %v987, %v833
        %v1059 = vsel %vm997, %v988, %v922
        %v1060 = vsel %vm996, %v989, %v835
        %v1061 = vsel %vm997, %v990, %v924
        %v1062 = vmax.f32 %v998, 0.0
        %v1063 = vmax.f32 %v999, 0.0
        %v1064 = vmax.f32 %v1000, 0.0
        %v1065 = vmax.f32 %v1001, 0.0
        %v1066 = vmax.f32 %v1002, 0.0
        %v1067 = vmax.f32 %v1003, 0.0
        %v1068 = vmax.f32 %v1004, 0.0
        %v1069 = vmax.f32 %v1005, 0.0
        %v1070 = vmax.f32 %v1006, 0.0
        %v1071 = vmax.f32 %v1007, 0.0
        %v1072 = vmax.f32 %v1008, 0.0
        %v1073 = vmax.f32 %v1009, 0.0
        %v1074 = vmax.f32 %v1010, 0.0
        %v1075 = vmax.f32 %v1011, 0.0
        %v1076 = vmax.f32 %v1012, 0.0
        %v1077 = vmax.f32 %v1013, 0.0
        %v1078 = vmax.f32 %v1014, 0.0
        %v1079 = vmax.f32 %v1015, 0.0
        %v1080 = vmax.f32 %v1016, 0.0
        %v1081 = vmax.f32 %v1017, 0.0
        %v1082 = vmax.f32 %v1018, 0.0
        %v1083 = vmax.f32 %v1019, 0.0
        %v1084 = vmax.f32 %v1020, 0.0
        %v1085 = vmax.f32 %v1021, 0.0
        %v1086 = vmax.f32 %v1022, 0.0
        %v1087 = vmax.f32 %v1023, 0.0
        %v1088 = vmax.f32 %v1024, 0.0
        %v1089 = vmax.f32 %v1025, 0.0
        %v1090 = vmax.f32 %v1026, 0.0
        %v1091 = vmax.f32 %v1027, 0.0
        %v1092 = vmax.f32 %v1028, 0.0
        %v1093 = vmax.f32 %v1029, 0.0
        %v1094 = vmax.f32 %v1030, 0.0
        %v1095 = vmax.f32 %v1031, 0.0
        %v1096 = vmax.f32 %v1032, 0.0
        %v1097 = vmax.f32 %v1033, 0.0
        %v1098 = vmax.f32 %v1034, 0.0
        %v1099 = vmax.f32 %v1035, 0.0
        %v1100 = vmax.f32 %v1036, 0.0
        %v1101 = vmax.f32 %v1037, 0.0
        %v1102 = vmax.f32 %v1038, 0.0
        %v1103 = vmax.f32 %v1039, 0.0
        %v1104 = vmax.f32 %v1040, 0.0
        %v1105 = vmax.f32 %v1041, 0.0
        %v1106 = vmax.f32 %v1042, 0.0
        %v1107 = vmax.f32 %v1043, 0.0
        %v1108 = vmax.f32 %v1044, 0.0
        %v1109 = vmax.f32 %v1045, 0.0
        %v1110 = vmax.f32 %v1046, 0.0
        %v1111 = vmax.f32 %v1047, 0.0
        %v1112 = vmax.f32 %v1048, 0.0
        %v1113 = vmax.f32 %v1049, 0.0
        %v1114 = vmax.f32 %v1050, 0.0
        %v1115 = vmax.f32 %v1051, 0.0
        %v1116 = vmax.f32 %v1052, 0.0
        %v1117 = vmax.f32 %v1053, 0.0
        %v1118 = vmax.f32 %v1054, 0.0
        %v1119 = vmax.f32 %v1055, 0.0
        %v1120 = vmax.f32 %v1056, 0.0
        %v1121 = vmax.f32 %v1057, 0.0
        %v1122 = vmax.f32 %v1058, 0.0
        %v1123 = vmax.f32 %v1059, 0.0
        %v1124 = vmax.f32 %v1060, 0.0
        %v1125 = vmax.f32 %v1061, 0.0
        %1127 = vset.pattern.permute.xlu0 0
        %1128 = vperm.xlu0 %1127, %v240
        %v1129 = vpop.permute.xlu0 %1128
        %1132 = vset.pattern.permute.xlu0 0
        %1133 = vperm.xlu0 %1132, %v241
        %v1134 = vpop.permute.xlu0 %1133
        %1137 = vset.pattern.permute.xlu0 0
        %1138 = vperm.xlu0 %1137, %v242
        %v1139 = vpop.permute.xlu0 %1138
        %1142 = vset.pattern.permute.xlu0 0
        %1143 = vperm.xlu0 %1142, %v243
        %v1144 = vpop.permute.xlu0 %1143
        %1147 = vset.pattern.permute.xlu0 0
        %1148 = vperm.xlu0 %1147, %v244
        %v1149 = vpop.permute.xlu0 %1148
        %1152 = vset.pattern.permute.xlu0 0
        %1153 = vperm.xlu0 %1152, %v245
        %v1154 = vpop.permute.xlu0 %1153
        %1157 = vset.pattern.permute.xlu0 0
        %1158 = vperm.xlu0 %1157, %v246
        %v1159 = vpop.permute.xlu0 %1158
        %1162 = vset.pattern.permute.xlu0 0
        %1163 = vperm.xlu0 %1162, %v247
        %v1164 = vpop.permute.xlu0 %1163
        %1167 = vset.pattern.permute.xlu0 0
        %1168 = vperm.xlu0 %1167, %v248
        %v1169 = vpop.permute.xlu0 %1168
        %1172 = vset.pattern.permute.xlu0 0
        %1173 = vperm.xlu0 %1172, %v249
        %v1174 = vpop.permute.xlu0 %1173
        %1177 = vset.pattern.permute.xlu0 0
        %1178 = vperm.xlu0 %1177, %v250
        %v1179 = vpop.permute.xlu0 %1178
        %1182 = vset.pattern.permute.xlu0 0
        %1183 = vperm.xlu0 %1182, %v251
        %v1184 = vpop.permute.xlu0 %1183
        %1187 = vset.pattern.permute.xlu0 0
        %1188 = vperm.xlu0 %1187, %v252
        %v1189 = vpop.permute.xlu0 %1188
        %1192 = vset.pattern.permute.xlu0 0
        %1193 = vperm.xlu0 %1192, %v253
        %v1194 = vpop.permute.xlu0 %1193
        %1197 = vset.pattern.permute.xlu0 0
        %1198 = vperm.xlu0 %1197, %v254
        %v1199 = vpop.permute.xlu0 %1198
        %1202 = vset.pattern.permute.xlu0 0
        %1203 = vperm.xlu0 %1202, %v255
        %v1204 = vpop.permute.xlu0 %1203
        %1207 = vset.pattern.permute.xlu0 0
        %1208 = vperm.xlu0 %1207, %v256
        %v1209 = vpop.permute.xlu0 %1208
        %1212 = vset.pattern.permute.xlu0 0
        %1213 = vperm.xlu0 %1212, %v257
        %v1214 = vpop.permute.xlu0 %1213
        %1217 = vset.pattern.permute.xlu0 0
        %1218 = vperm.xlu0 %1217, %v258
        %v1219 = vpop.permute.xlu0 %1218
        %1222 = vset.pattern.permute.xlu0 0
        %1223 = vperm.xlu0 %1222, %v259
        %v1224 = vpop.permute.xlu0 %1223
        %1227 = vset.pattern.permute.xlu0 0
        %1228 = vperm.xlu0 %1227, %v260
        %v1229 = vpop.permute.xlu0 %1228
        %1232 = vset.pattern.permute.xlu0 0
        %1233 = vperm.xlu0 %1232, %v261
        %v1234 = vpop.permute.xlu0 %1233
        %1237 = vset.pattern.permute.xlu0 0
        %1238 = vperm.xlu0 %1237, %v262
        %v1239 = vpop.permute.xlu0 %1238
        %1242 = vset.pattern.permute.xlu0 0
        %1243 = vperm.xlu0 %1242, %v263
        %v1244 = vpop.permute.xlu0 %1243
        %1247 = vset.pattern.permute.xlu0 0
        %1248 = vperm.xlu0 %1247, %v264
        %v1249 = vpop.permute.xlu0 %1248
        %1252 = vset.pattern.permute.xlu0 0
        %1253 = vperm.xlu0 %1252, %v265
        %v1254 = vpop.permute.xlu0 %1253
        %1257 = vset.pattern.permute.xlu0 0
        %1258 = vperm.xlu0 %1257, %v266
        %v1259 = vpop.permute.xlu0 %1258
        %1262 = vset.pattern.permute.xlu0 0
        %1263 = vperm.xlu0 %1262, %v267
        %v1264 = vpop.permute.xlu0 %1263
        %1267 = vset.pattern.permute.xlu0 0
        %1268 = vperm.xlu0 %1267, %v268
        %v1269 = vpop.permute.xlu0 %1268
        %1272 = vset.pattern.permute.xlu0 0
        %1273 = vperm.xlu0 %1272, %v269
        %v1274 = vpop.permute.xlu0 %1273
        %1277 = vset.pattern.permute.xlu0 0
        %1278 = vperm.xlu0 %1277, %v270
        %v1279 = vpop.permute.xlu0 %1278
        %1282 = vset.pattern.permute.xlu0 0
        %1283 = vperm.xlu0 %1282, %v271
        %v1284 = vpop.permute.xlu0 %1283
        %v1286 = vmul.f32 %v1062, %v1129
        %v1287 = vmul.f32 %v1063, %v1129
        %v1288 = vmul.f32 %v1064, %v1134
        %v1289 = vmul.f32 %v1065, %v1134
        %v1290 = vmul.f32 %v1066, %v1139
        %v1291 = vmul.f32 %v1067, %v1139
        %v1292 = vmul.f32 %v1068, %v1144
        %v1293 = vmul.f32 %v1069, %v1144
        %v1294 = vmul.f32 %v1070, %v1149
        %v1295 = vmul.f32 %v1071, %v1149
        %v1296 = vmul.f32 %v1072, %v1154
        %v1297 = vmul.f32 %v1073, %v1154
        %v1298 = vmul.f32 %v1074, %v1159
        %v1299 = vmul.f32 %v1075, %v1159
        %v1300 = vmul.f32 %v1076, %v1164
        %v1301 = vmul.f32 %v1077, %v1164
        %v1302 = vmul.f32 %v1078, %v1169
        %v1303 = vmul.f32 %v1079, %v1169
        %v1304 = vmul.f32 %v1080, %v1174
        %v1305 = vmul.f32 %v1081, %v1174
        %v1306 = vmul.f32 %v1082, %v1179
        %v1307 = vmul.f32 %v1083, %v1179
        %v1308 = vmul.f32 %v1084, %v1184
        %v1309 = vmul.f32 %v1085, %v1184
        %v1310 = vmul.f32 %v1086, %v1189
        %v1311 = vmul.f32 %v1087, %v1189
        %v1312 = vmul.f32 %v1088, %v1194
        %v1313 = vmul.f32 %v1089, %v1194
        %v1314 = vmul.f32 %v1090, %v1199
        %v1315 = vmul.f32 %v1091, %v1199
        %v1316 = vmul.f32 %v1092, %v1204
        %v1317 = vmul.f32 %v1093, %v1204
        %v1318 = vmul.f32 %v1094, %v1209
        %v1319 = vmul.f32 %v1095, %v1209
        %v1320 = vmul.f32 %v1096, %v1214
        %v1321 = vmul.f32 %v1097, %v1214
        %v1322 = vmul.f32 %v1098, %v1219
        %v1323 = vmul.f32 %v1099, %v1219
        %v1324 = vmul.f32 %v1100, %v1224
        %v1325 = vmul.f32 %v1101, %v1224
        %v1326 = vmul.f32 %v1102, %v1229
        %v1327 = vmul.f32 %v1103, %v1229
        %v1328 = vmul.f32 %v1104, %v1234
        %v1329 = vmul.f32 %v1105, %v1234
        %v1330 = vmul.f32 %v1106, %v1239
        %v1331 = vmul.f32 %v1107, %v1239
        %v1332 = vmul.f32 %v1108, %v1244
        %v1333 = vmul.f32 %v1109, %v1244
        %v1334 = vmul.f32 %v1110, %v1249
        %v1335 = vmul.f32 %v1111, %v1249
        %v1336 = vmul.f32 %v1112, %v1254
        %v1337 = vmul.f32 %v1113, %v1254
        %v1338 = vmul.f32 %v1114, %v1259
        %v1339 = vmul.f32 %v1115, %v1259
        %v1340 = vmul.f32 %v1116, %v1264
        %v1341 = vmul.f32 %v1117, %v1264
        %v1342 = vmul.f32 %v1118, %v1269
        %v1343 = vmul.f32 %v1119, %v1269
        %v1344 = vmul.f32 %v1120, %v1274
        %v1345 = vmul.f32 %v1121, %v1274
        %v1346 = vmul.f32 %v1122, %v1279
        %v1347 = vmul.f32 %v1123, %v1279
        %v1348 = vmul.f32 %v1124, %v1284
        %v1349 = vmul.f32 %v1125, %v1284
        %v1350 = vadd.f32 %v1286, %v1288
        %v1351 = vadd.f32 %v1350, %v1290
        %v1352 = vadd.f32 %v1351, %v1292
        %v1353 = vadd.f32 %v1352, %v1294
        %v1354 = vadd.f32 %v1353, %v1296
        %v1355 = vadd.f32 %v1354, %v1298
        %v1356 = vadd.f32 %v1355, %v1300
        %v1357 = vadd.f32 %v1356, %v1302
        %v1358 = vadd.f32 %v1357, %v1304
        %v1359 = vadd.f32 %v1358, %v1306
        %v1360 = vadd.f32 %v1359, %v1308
        %v1361 = vadd.f32 %v1360, %v1310
        %v1362 = vadd.f32 %v1361, %v1312
        %v1363 = vadd.f32 %v1362, %v1314
        %v1364 = vadd.f32 %v1363, %v1316
        %v1365 = vadd.f32 %v1364, %v1318
        %v1366 = vadd.f32 %v1365, %v1320
        %v1367 = vadd.f32 %v1366, %v1322
        %v1368 = vadd.f32 %v1367, %v1324
        %v1369 = vadd.f32 %v1368, %v1326
        %v1370 = vadd.f32 %v1369, %v1328
        %v1371 = vadd.f32 %v1370, %v1330
        %v1372 = vadd.f32 %v1371, %v1332
        %v1373 = vadd.f32 %v1372, %v1334
        %v1374 = vadd.f32 %v1373, %v1336
        %v1375 = vadd.f32 %v1374, %v1338
        %v1376 = vadd.f32 %v1375, %v1340
        %v1377 = vadd.f32 %v1376, %v1342
        %v1378 = vadd.f32 %v1377, %v1344
        %v1379 = vadd.f32 %v1378, %v1346
        %v1380 = vadd.f32 %v1379, %v1348
        %v1381 = vrot.slane %v1380, 4
        %v1382 = vadd.f32 %v1380, %v1381
        %v1383 = vrot.slane %v1382, 2
        %v1384 = vadd.f32 %v1382, %v1383
        %v1385 = vrot.slane %v1384, 1
        %v1386 = vadd.f32 %v1384, %v1385
        %v1387 = vadd.f32 %v1287, %v1289
        %v1388 = vadd.f32 %v1387, %v1291
        %v1389 = vadd.f32 %v1388, %v1293
        %v1390 = vadd.f32 %v1389, %v1295
        %v1391 = vadd.f32 %v1390, %v1297
        %v1392 = vadd.f32 %v1391, %v1299
        %v1393 = vadd.f32 %v1392, %v1301
        %v1394 = vadd.f32 %v1393, %v1303
        %v1395 = vadd.f32 %v1394, %v1305
        %v1396 = vadd.f32 %v1395, %v1307
        %v1397 = vadd.f32 %v1396, %v1309
        %v1398 = vadd.f32 %v1397, %v1311
        %v1399 = vadd.f32 %v1398, %v1313
        %v1400 = vadd.f32 %v1399, %v1315
        %v1401 = vadd.f32 %v1400, %v1317
        %v1402 = vadd.f32 %v1401, %v1319
        %v1403 = vadd.f32 %v1402, %v1321
        %v1404 = vadd.f32 %v1403, %v1323
        %v1405 = vadd.f32 %v1404, %v1325
        %v1406 = vadd.f32 %v1405, %v1327
        %v1407 = vadd.f32 %v1406, %v1329
        %v1408 = vadd.f32 %v1407, %v1331
        %v1409 = vadd.f32 %v1408, %v1333
        %v1410 = vadd.f32 %v1409, %v1335
        %v1411 = vadd.f32 %v1410, %v1337
        %v1412 = vadd.f32 %v1411, %v1339
        %v1413 = vadd.f32 %v1412, %v1341
        %v1414 = vadd.f32 %v1413, %v1343
        %v1415 = vadd.f32 %v1414, %v1345
        %v1416 = vadd.f32 %v1415, %v1347
        %v1417 = vadd.f32 %v1416, %v1349
        %v1418 = vrot.slane %v1417, 4
        %v1419 = vadd.f32 %v1417, %v1418
        %v1420 = vrot.slane %v1419, 2
        %v1421 = vadd.f32 %v1419, %v1420
        %v1422 = vrot.slane %v1421, 1
        %v1423 = vadd.f32 %v1421, %v1422
        %v1424 = vmul.f32 %v1386, %v273
        %v1425 = vmul.f32 %v1423, %v274
        %v1426 = vsub.f32 1.0, %v239
        %v1428 = vperm.slane %v1426, 0
        %v1429 = vperm.slane %v1426, 2
        %v1432 = vmul.f32 %v1386, %v1428
        %v1433 = vmul.f32 %v1423, %v1429
        %v1438 = vunpack.c.l.b16 %v648
        %v1439 = vunpack.c.h.b16 %v648
        %v1440 = vunpack.c.l.b16 %v650
        %v1441 = vunpack.c.h.b16 %v650
        %v1442 = vunpack.c.l.b16 %v652
        %v1443 = vunpack.c.h.b16 %v652
        %v1444 = vunpack.c.l.b16 %v654
        %v1445 = vunpack.c.h.b16 %v654
        %v1446 = vpack.c.b16 %v1440, %v1438
        %v1447 = vpack.c.b16 %v1441, %v1439
        %v1448 = vpack.c.b16 %v1444, %v1442
        %v1449 = vpack.c.b16 %v1445, %v1443
        %1454 = vxpose.binary.xlu0.c.b16.start [1/16] %v1447, %v1446, 128
        %1455 = vxpose.binary.xlu0.c.b16.cont [2/16] %v1449, %v1448, 128
        %1456 = vxpose.binary.xlu0.c.b16.cont [3/16] 0, 0, 128
        %1457 = vxpose.binary.xlu0.c.b16.cont [4/16] 0, 0, 128
        %1458 = vxpose.binary.xlu0.c.b16.cont [5/16] 0, 0, 128
        %1459 = vxpose.binary.xlu0.c.b16.cont [6/16] 0, 0, 128
        %1460 = vxpose.binary.xlu0.c.b16.cont [7/16] 0, 0, 128
        %1461 = vxpose.binary.xlu0.c.b16.end [8/16] 0, 0, 128
        %v1462 = vpop.trf.xlu0
        %v1463 = vpop.trf.xlu0
        %v1464 = vpop.trf.xlu0
        %v1465 = vpop.trf.xlu0
        %v1466 = vpop.trf.xlu0
        %v1467 = vpop.trf.xlu0
        %v1468 = vpop.trf.xlu0
        %v1469 = vpop.trf.xlu0
        %v1470 = vpop.trf.xlu0
        %v1471 = vpop.trf.xlu0
        %v1472 = vpop.trf.xlu0
        %v1473 = vpop.trf.xlu0
        %v1474 = vpop.trf.xlu0
        %v1475 = vpop.trf.xlu0
        %v1476 = vpop.trf.xlu0
        %v1477 = vpop.trf.xlu0
        %v1479 = vsel %vm699, %v1462, 0
        %v1482 = vsel %vm699, %v1464, 0
        %v1485 = vsel %vm699, %v1466, 0
        %v1488 = vsel %vm699, %v1468, 0
        %v1491 = vsel %vm699, %v1470, 0
        %v1494 = vsel %vm699, %v1472, 0
        %v1497 = vsel %vm699, %v1474, 0
        %v1500 = vsel %vm699, %v1476, 0
        %v1503 = vsel %vm699, %v1463, 0
        %v1506 = vsel %vm699, %v1465, 0
        %v1509 = vsel %vm699, %v1467, 0
        %v1512 = vsel %vm699, %v1469, 0
        %v1515 = vsel %vm699, %v1471, 0
        %v1518 = vsel %vm699, %v1473, 0
        %v1521 = vsel %vm699, %v1475, 0
        %v1524 = vsel %vm699, %v1477, 0
        %1526 = vmatpush.bf16.msra.mxu0 0
        %1527 = vmatpush.bf16.msra.mxu0 0
        %1528 = vmatpush.bf16.msra.mxu0 0
        %1529 = vmatpush.bf16.msra.mxu0 0
        %1530 = vmatpush.bf16.msra.mxu0 0
        %1531 = vmatpush.bf16.msra.mxu0 0
        %1532 = vmatpush.bf16.msra.mxu0 %v1448
        %1533 = vmatpush.bf16.msra.mxu0 %v1446
        %1534 = vmatmul.bf16.gmra.mxu0 %v1479
        %v1535 = vpop.f32.mrf.mxu0
        %v1536 = vadd.f32 0.0, %v1535
        %v1537 = vpop.f32.mrf.mxu0
        %v1538 = vadd.f32 0.0, %v1537
        %1539 = vmatmul.bf16.gmra.mxu0 %v1482
        %v1540 = vpop.f32.mrf.mxu0
        %v1541 = vadd.f32 0.0, %v1540
        %v1542 = vpop.f32.mrf.mxu0
        %v1543 = vadd.f32 0.0, %v1542
        %1544 = vmatmul.bf16.gmra.mxu0 %v1485
        %v1545 = vpop.f32.mrf.mxu0
        %v1546 = vadd.f32 0.0, %v1545
        %v1547 = vpop.f32.mrf.mxu0
        %v1548 = vadd.f32 0.0, %v1547
        %1549 = vmatmul.bf16.gmra.mxu0 %v1488
        %v1550 = vpop.f32.mrf.mxu0
        %v1551 = vadd.f32 0.0, %v1550
        %v1552 = vpop.f32.mrf.mxu0
        %v1553 = vadd.f32 0.0, %v1552
        %1554 = vmatmul.bf16.gmra.mxu0 %v1491
        %v1555 = vpop.f32.mrf.mxu0
        %v1556 = vadd.f32 0.0, %v1555
        %v1557 = vpop.f32.mrf.mxu0
        %v1558 = vadd.f32 0.0, %v1557
        %1559 = vmatmul.bf16.gmra.mxu0 %v1494
        %v1560 = vpop.f32.mrf.mxu0
        %v1561 = vadd.f32 0.0, %v1560
        %v1562 = vpop.f32.mrf.mxu0
        %v1563 = vadd.f32 0.0, %v1562
        %1564 = vmatmul.bf16.gmra.mxu0 %v1497
        %v1565 = vpop.f32.mrf.mxu0
        %v1566 = vadd.f32 0.0, %v1565
        %v1567 = vpop.f32.mrf.mxu0
        %v1568 = vadd.f32 0.0, %v1567
        %1569 = vmatmul.bf16.gmra.mxu0 %v1500
        %v1570 = vpop.f32.mrf.mxu0
        %v1571 = vadd.f32 0.0, %v1570
        %v1572 = vpop.f32.mrf.mxu0
        %v1573 = vadd.f32 0.0, %v1572
        %1574 = vmatmul.bf16.gmra.mxu0 %v1503
        %v1575 = vpop.f32.mrf.mxu0
        %v1576 = vadd.f32 0.0, %v1575
        %v1577 = vpop.f32.mrf.mxu0
        %v1578 = vadd.f32 0.0, %v1577
        %1579 = vmatmul.bf16.gmra.mxu0 %v1506
        %v1580 = vpop.f32.mrf.mxu0
        %v1581 = vadd.f32 0.0, %v1580
        %v1582 = vpop.f32.mrf.mxu0
        %v1583 = vadd.f32 0.0, %v1582
        %1584 = vmatmul.bf16.gmra.mxu0 %v1509
        %v1585 = vpop.f32.mrf.mxu0
        %v1586 = vadd.f32 0.0, %v1585
        %v1587 = vpop.f32.mrf.mxu0
        %v1588 = vadd.f32 0.0, %v1587
        %1589 = vmatmul.bf16.gmra.mxu0 %v1512
        %v1590 = vpop.f32.mrf.mxu0
        %v1591 = vadd.f32 0.0, %v1590
        %v1592 = vpop.f32.mrf.mxu0
        %v1593 = vadd.f32 0.0, %v1592
        %1594 = vmatmul.bf16.gmra.mxu0 %v1515
        %v1595 = vpop.f32.mrf.mxu0
        %v1596 = vadd.f32 0.0, %v1595
        %v1597 = vpop.f32.mrf.mxu0
        %v1598 = vadd.f32 0.0, %v1597
        %1599 = vmatmul.bf16.gmra.mxu0 %v1518
        %v1600 = vpop.f32.mrf.mxu0
        %v1601 = vadd.f32 0.0, %v1600
        %v1602 = vpop.f32.mrf.mxu0
        %v1603 = vadd.f32 0.0, %v1602
        %1604 = vmatmul.bf16.gmra.mxu0 %v1521
        %v1605 = vpop.f32.mrf.mxu0
        %v1606 = vadd.f32 0.0, %v1605
        %v1607 = vpop.f32.mrf.mxu0
        %v1608 = vadd.f32 0.0, %v1607
        %1609 = vmatmul.bf16.gmra.mxu0 %v1524
        %v1610 = vpop.f32.mrf.mxu0
        %v1611 = vadd.f32 0.0, %v1610
        %v1612 = vpop.f32.mrf.mxu0
        %v1613 = vadd.f32 0.0, %v1612
        %1614 = vdwg.mxu0
        %1615 = vmatpush.bf16.msra.mxu0 0
        %1616 = vmatpush.bf16.msra.mxu0 0
        %1617 = vmatpush.bf16.msra.mxu0 0
        %1618 = vmatpush.bf16.msra.mxu0 0
        %1619 = vmatpush.bf16.msra.mxu0 0
        %1620 = vmatpush.bf16.msra.mxu0 0
        %1621 = vmatpush.bf16.msra.mxu0 %v1449
        %1622 = vmatpush.bf16.msra.mxu0 %v1447
        %1623 = vmatmul.bf16.gmra.mxu0 %v1479
        %v1624 = vpop.f32.mrf.mxu0
        %v1625 = vadd.f32 0.0, %v1624
        %v1626 = vpop.f32.mrf.mxu0
        %v1627 = vadd.f32 0.0, %v1626
        %1628 = vmatmul.bf16.gmra.mxu0 %v1482
        %v1629 = vpop.f32.mrf.mxu0
        %v1630 = vadd.f32 0.0, %v1629
        %v1631 = vpop.f32.mrf.mxu0
        %v1632 = vadd.f32 0.0, %v1631
        %1633 = vmatmul.bf16.gmra.mxu0 %v1485
        %v1634 = vpop.f32.mrf.mxu0
        %v1635 = vadd.f32 0.0, %v1634
        %v1636 = vpop.f32.mrf.mxu0
        %v1637 = vadd.f32 0.0, %v1636
        %1638 = vmatmul.bf16.gmra.mxu0 %v1488
        %v1639 = vpop.f32.mrf.mxu0
        %v1640 = vadd.f32 0.0, %v1639
        %v1641 = vpop.f32.mrf.mxu0
        %v1642 = vadd.f32 0.0, %v1641
        %1643 = vmatmul.bf16.gmra.mxu0 %v1491
        %v1644 = vpop.f32.mrf.mxu0
        %v1645 = vadd.f32 0.0, %v1644
        %v1646 = vpop.f32.mrf.mxu0
        %v1647 = vadd.f32 0.0, %v1646
        %1648 = vmatmul.bf16.gmra.mxu0 %v1494
        %v1649 = vpop.f32.mrf.mxu0
        %v1650 = vadd.f32 0.0, %v1649
        %v1651 = vpop.f32.mrf.mxu0
        %v1652 = vadd.f32 0.0, %v1651
        %1653 = vmatmul.bf16.gmra.mxu0 %v1497
        %v1654 = vpop.f32.mrf.mxu0
        %v1655 = vadd.f32 0.0, %v1654
        %v1656 = vpop.f32.mrf.mxu0
        %v1657 = vadd.f32 0.0, %v1656
        %1658 = vmatmul.bf16.gmra.mxu0 %v1500
        %v1659 = vpop.f32.mrf.mxu0
        %v1660 = vadd.f32 0.0, %v1659
        %v1661 = vpop.f32.mrf.mxu0
        %v1662 = vadd.f32 0.0, %v1661
        %1663 = vmatmul.bf16.gmra.mxu0 %v1503
        %v1664 = vpop.f32.mrf.mxu0
        %v1665 = vadd.f32 0.0, %v1664
        %v1666 = vpop.f32.mrf.mxu0
        %v1667 = vadd.f32 0.0, %v1666
        %1668 = vmatmul.bf16.gmra.mxu0 %v1506
        %v1669 = vpop.f32.mrf.mxu0
        %v1670 = vadd.f32 0.0, %v1669
        %v1671 = vpop.f32.mrf.mxu0
        %v1672 = vadd.f32 0.0, %v1671
        %1673 = vmatmul.bf16.gmra.mxu0 %v1509
        %v1674 = vpop.f32.mrf.mxu0
        %v1675 = vadd.f32 0.0, %v1674
        %v1676 = vpop.f32.mrf.mxu0
        %v1677 = vadd.f32 0.0, %v1676
        %1678 = vmatmul.bf16.gmra.mxu0 %v1512
        %v1679 = vpop.f32.mrf.mxu0
        %v1680 = vadd.f32 0.0, %v1679
        %v1681 = vpop.f32.mrf.mxu0
        %v1682 = vadd.f32 0.0, %v1681
        %1683 = vmatmul.bf16.gmra.mxu0 %v1515
        %v1684 = vpop.f32.mrf.mxu0
        %v1685 = vadd.f32 0.0, %v1684
        %v1686 = vpop.f32.mrf.mxu0
        %v1687 = vadd.f32 0.0, %v1686
        %1688 = vmatmul.bf16.gmra.mxu0 %v1518
        %v1689 = vpop.f32.mrf.mxu0
        %v1690 = vadd.f32 0.0, %v1689
        %v1691 = vpop.f32.mrf.mxu0
        %v1692 = vadd.f32 0.0, %v1691
        %1693 = vmatmul.bf16.gmra.mxu0 %v1521
        %v1694 = vpop.f32.mrf.mxu0
        %v1695 = vadd.f32 0.0, %v1694
        %v1696 = vpop.f32.mrf.mxu0
        %v1697 = vadd.f32 0.0, %v1696
        %1698 = vmatmul.bf16.gmra.mxu0 %v1524
        %v1699 = vpop.f32.mrf.mxu0
        %v1700 = vadd.f32 0.0, %v1699
        %v1701 = vpop.f32.mrf.mxu0
        %v1702 = vadd.f32 0.0, %v1701
        %1703 = vdwg.mxu0
        %v1704 = vsub.f32 0.4, %v1536
        %v1705 = vsub.f32 0.4, %v1625
        %v1706 = vsub.f32 0.4, %v1538
        %v1707 = vsub.f32 0.4, %v1627
        %v1708 = vsub.f32 0.4, %v1541
        %v1709 = vsub.f32 0.4, %v1630
        %v1710 = vsub.f32 0.4, %v1543
        %v1711 = vsub.f32 0.4, %v1632
        %v1712 = vsub.f32 0.4, %v1546
        %v1713 = vsub.f32 0.4, %v1635
        %v1714 = vsub.f32 0.4, %v1548
        %v1715 = vsub.f32 0.4, %v1637
        %v1716 = vsub.f32 0.4, %v1551
        %v1717 = vsub.f32 0.4, %v1640
        %v1718 = vsub.f32 0.4, %v1553
        %v1719 = vsub.f32 0.4, %v1642
        %v1720 = vsub.f32 0.4, %v1556
        %v1721 = vsub.f32 0.4, %v1645
        %v1722 = vsub.f32 0.4, %v1558
        %v1723 = vsub.f32 0.4, %v1647
        %v1724 = vsub.f32 0.4, %v1561
        %v1725 = vsub.f32 0.4, %v1650
        %v1726 = vsub.f32 0.4, %v1563
        %v1727 = vsub.f32 0.4, %v1652
        %v1728 = vsub.f32 0.4, %v1566
        %v1729 = vsub.f32 0.4, %v1655
        %v1730 = vsub.f32 0.4, %v1568
        %v1731 = vsub.f32 0.4, %v1657
        %v1732 = vsub.f32 0.4, %v1571
        %v1733 = vsub.f32 0.4, %v1660
        %v1734 = vsub.f32 0.4, %v1573
        %v1735 = vsub.f32 0.4, %v1662
        %v1736 = vsub.f32 0.4, %v1576
        %v1737 = vsub.f32 0.4, %v1665
        %v1738 = vsub.f32 0.4, %v1578
        %v1739 = vsub.f32 0.4, %v1667
        %v1740 = vsub.f32 0.4, %v1581
        %v1741 = vsub.f32 0.4, %v1670
        %v1742 = vsub.f32 0.4, %v1583
        %v1743 = vsub.f32 0.4, %v1672
        %v1744 = vsub.f32 0.4, %v1586
        %v1745 = vsub.f32 0.4, %v1675
        %v1746 = vsub.f32 0.4, %v1588
        %v1747 = vsub.f32 0.4, %v1677
        %v1748 = vsub.f32 0.4, %v1591
        %v1749 = vsub.f32 0.4, %v1680
        %v1750 = vsub.f32 0.4, %v1593
        %v1751 = vsub.f32 0.4, %v1682
        %v1752 = vsub.f32 0.4, %v1596
        %v1753 = vsub.f32 0.4, %v1685
        %v1754 = vsub.f32 0.4, %v1598
        %v1755 = vsub.f32 0.4, %v1687
        %v1756 = vsub.f32 0.4, %v1601
        %v1757 = vsub.f32 0.4, %v1690
        %v1758 = vsub.f32 0.4, %v1603
        %v1759 = vsub.f32 0.4, %v1692
        %v1760 = vsub.f32 0.4, %v1606
        %v1761 = vsub.f32 0.4, %v1695
        %v1762 = vsub.f32 0.4, %v1608
        %v1763 = vsub.f32 0.4, %v1697
        %v1764 = vsub.f32 0.4, %v1611
        %v1765 = vsub.f32 0.4, %v1700
        %v1766 = vsub.f32 0.4, %v1613
        %v1767 = vsub.f32 0.4, %v1702
        %v1768 = vperm.slane %v991, 1
        %v1769 = vperm.slane %v991, 3
        %v1770 = vperm.slane %v1768, 1
        %v1771 = vperm.slane %v1769, 1
        %vm1772 = vcmp.eq.s32.totalorder %v1770, 1
        %vm1773 = vcmp.eq.s32.totalorder %v1771, 1
        %v1774 = vsel %vm1772, %v1704, %v1536
        %v1775 = vsel %vm1773, %v1705, %v1625
        %v1776 = vsel %vm1772, %v1706, %v1538
        %v1777 = vsel %vm1773, %v1707, %v1627
        %v1778 = vsel %vm1772, %v1708, %v1541
        %v1779 = vsel %vm1773, %v1709, %v1630
        %v1780 = vsel %vm1772, %v1710, %v1543
        %v1781 = vsel %vm1773, %v1711, %v1632
        %v1782 = vsel %vm1772, %v1712, %v1546
        %v1783 = vsel %vm1773, %v1713, %v1635
        %v1784 = vsel %vm1772, %v1714, %v1548
        %v1785 = vsel %vm1773, %v1715, %v1637
        %v1786 = vsel %vm1772, %v1716, %v1551
        %v1787 = vsel %vm1773, %v1717, %v1640
        %v1788 = vsel %vm1772, %v1718, %v1553
        %v1789 = vsel %vm1773, %v1719, %v1642
        %v1790 = vsel %vm1772, %v1720, %v1556
        %v1791 = vsel %vm1773, %v1721, %v1645
        %v1792 = vsel %vm1772, %v1722, %v1558
        %v1793 = vsel %vm1773, %v1723, %v1647
        %v1794 = vsel %vm1772, %v1724, %v1561
        %v1795 = vsel %vm1773, %v1725, %v1650
        %v1796 = vsel %vm1772, %v1726, %v1563
        %v1797 = vsel %vm1773, %v1727, %v1652
        %v1798 = vsel %vm1772, %v1728, %v1566
        %v1799 = vsel %vm1773, %v1729, %v1655
        %v1800 = vsel %vm1772, %v1730, %v1568
        %v1801 = vsel %vm1773, %v1731, %v1657
        %v1802 = vsel %vm1772, %v1732, %v1571
        %v1803 = vsel %vm1773, %v1733, %v1660
        %v1804 = vsel %vm1772, %v1734, %v1573
        %v1805 = vsel %vm1773, %v1735, %v1662
        %v1806 = vsel %vm1772, %v1736, %v1576
        %v1807 = vsel %vm1773, %v1737, %v1665
        %v1808 = vsel %vm1772, %v1738, %v1578
        %v1809 = vsel %vm1773, %v1739, %v1667
        %v1810 = vsel %vm1772, %v1740, %v1581
        %v1811 = vsel %vm1773, %v1741, %v1670
        %v1812 = vsel %vm1772, %v1742, %v1583
        %v1813 = vsel %vm1773, %v1743, %v1672
        %v1814 = vsel %vm1772, %v1744, %v1586
        %v1815 = vsel %vm1773, %v1745, %v1675
        %v1816 = vsel %vm1772, %v1746, %v1588
        %v1817 = vsel %vm1773, %v1747, %v1677
        %v1818 = vsel %vm1772, %v1748, %v1591
        %v1819 = vsel %vm1773, %v1749, %v1680
        %v1820 = vsel %vm1772, %v1750, %v1593
        %v1821 = vsel %vm1773, %v1751, %v1682
        %v1822 = vsel %vm1772, %v1752, %v1596
        %v1823 = vsel %vm1773, %v1753, %v1685
        %v1824 = vsel %vm1772, %v1754, %v1598
        %v1825 = vsel %vm1773, %v1755, %v1687
        %v1826 = vsel %vm1772, %v1756, %v1601
        %v1827 = vsel %vm1773, %v1757, %v1690
        %v1828 = vsel %vm1772, %v1758, %v1603
        %v1829 = vsel %vm1773, %v1759, %v1692
        %v1830 = vsel %vm1772, %v1760, %v1606
        %v1831 = vsel %vm1773, %v1761, %v1695
        %v1832 = vsel %vm1772, %v1762, %v1608
        %v1833 = vsel %vm1773, %v1763, %v1697
        %v1834 = vsel %vm1772, %v1764, %v1611
        %v1835 = vsel %vm1773, %v1765, %v1700
        %v1836 = vsel %vm1772, %v1766, %v1613
        %v1837 = vsel %vm1773, %v1767, %v1702
        %v1838 = vmax.f32 %v1774, 0.0
        %v1839 = vmax.f32 %v1775, 0.0
        %v1840 = vmax.f32 %v1776, 0.0
        %v1841 = vmax.f32 %v1777, 0.0
        %v1842 = vmax.f32 %v1778, 0.0
        %v1843 = vmax.f32 %v1779, 0.0
        %v1844 = vmax.f32 %v1780, 0.0
        %v1845 = vmax.f32 %v1781, 0.0
        %v1846 = vmax.f32 %v1782, 0.0
        %v1847 = vmax.f32 %v1783, 0.0
        %v1848 = vmax.f32 %v1784, 0.0
        %v1849 = vmax.f32 %v1785, 0.0
        %v1850 = vmax.f32 %v1786, 0.0
        %v1851 = vmax.f32 %v1787, 0.0
        %v1852 = vmax.f32 %v1788, 0.0
        %v1853 = vmax.f32 %v1789, 0.0
        %v1854 = vmax.f32 %v1790, 0.0
        %v1855 = vmax.f32 %v1791, 0.0
        %v1856 = vmax.f32 %v1792, 0.0
        %v1857 = vmax.f32 %v1793, 0.0
        %v1858 = vmax.f32 %v1794, 0.0
        %v1859 = vmax.f32 %v1795, 0.0
        %v1860 = vmax.f32 %v1796, 0.0
        %v1861 = vmax.f32 %v1797, 0.0
        %v1862 = vmax.f32 %v1798, 0.0
        %v1863 = vmax.f32 %v1799, 0.0
        %v1864 = vmax.f32 %v1800, 0.0
        %v1865 = vmax.f32 %v1801, 0.0
        %v1866 = vmax.f32 %v1802, 0.0
        %v1867 = vmax.f32 %v1803, 0.0
        %v1868 = vmax.f32 %v1804, 0.0
        %v1869 = vmax.f32 %v1805, 0.0
        %v1870 = vmax.f32 %v1806, 0.0
        %v1871 = vmax.f32 %v1807, 0.0
        %v1872 = vmax.f32 %v1808, 0.0
        %v1873 = vmax.f32 %v1809, 0.0
        %v1874 = vmax.f32 %v1810, 0.0
        %v1875 = vmax.f32 %v1811, 0.0
        %v1876 = vmax.f32 %v1812, 0.0
        %v1877 = vmax.f32 %v1813, 0.0
        %v1878 = vmax.f32 %v1814, 0.0
        %v1879 = vmax.f32 %v1815, 0.0
        %v1880 = vmax.f32 %v1816, 0.0
        %v1881 = vmax.f32 %v1817, 0.0
        %v1882 = vmax.f32 %v1818, 0.0
        %v1883 = vmax.f32 %v1819, 0.0
        %v1884 = vmax.f32 %v1820, 0.0
        %v1885 = vmax.f32 %v1821, 0.0
        %v1886 = vmax.f32 %v1822, 0.0
        %v1887 = vmax.f32 %v1823, 0.0
        %v1888 = vmax.f32 %v1824, 0.0
        %v1889 = vmax.f32 %v1825, 0.0
        %v1890 = vmax.f32 %v1826, 0.0
        %v1891 = vmax.f32 %v1827, 0.0
        %v1892 = vmax.f32 %v1828, 0.0
        %v1893 = vmax.f32 %v1829, 0.0
        %v1894 = vmax.f32 %v1830, 0.0
        %v1895 = vmax.f32 %v1831, 0.0
        %v1896 = vmax.f32 %v1832, 0.0
        %v1897 = vmax.f32 %v1833, 0.0
        %v1898 = vmax.f32 %v1834, 0.0
        %v1899 = vmax.f32 %v1835, 0.0
        %v1900 = vmax.f32 %v1836, 0.0
        %v1901 = vmax.f32 %v1837, 0.0
        %1902 = vset.pattern.permute.xlu0 1
        %1903 = vperm.xlu0 %1902, %v240
        %v1904 = vpop.permute.xlu0 %1903
        %1906 = vset.pattern.permute.xlu0 1
        %1907 = vperm.xlu0 %1906, %v241
        %v1908 = vpop.permute.xlu0 %1907
        %1910 = vset.pattern.permute.xlu0 1
        %1911 = vperm.xlu0 %1910, %v242
        %v1912 = vpop.permute.xlu0 %1911
        %1914 = vset.pattern.permute.xlu0 1
        %1915 = vperm.xlu0 %1914, %v243
        %v1916 = vpop.permute.xlu0 %1915
        %1918 = vset.pattern.permute.xlu0 1
        %1919 = vperm.xlu0 %1918, %v244
        %v1920 = vpop.permute.xlu0 %1919
        %1922 = vset.pattern.permute.xlu0 1
        %1923 = vperm.xlu0 %1922, %v245
        %v1924 = vpop.permute.xlu0 %1923
        %1926 = vset.pattern.permute.xlu0 1
        %1927 = vperm.xlu0 %1926, %v246
        %v1928 = vpop.permute.xlu0 %1927
        %1930 = vset.pattern.permute.xlu0 1
        %1931 = vperm.xlu0 %1930, %v247
        %v1932 = vpop.permute.xlu0 %1931
        %1934 = vset.pattern.permute.xlu0 1
        %1935 = vperm.xlu0 %1934, %v248
        %v1936 = vpop.permute.xlu0 %1935
        %1938 = vset.pattern.permute.xlu0 1
        %1939 = vperm.xlu0 %1938, %v249
        %v1940 = vpop.permute.xlu0 %1939
        %1942 = vset.pattern.permute.xlu0 1
        %1943 = vperm.xlu0 %1942, %v250
        %v1944 = vpop.permute.xlu0 %1943
        %1946 = vset.pattern.permute.xlu0 1
        %1947 = vperm.xlu0 %1946, %v251
        %v1948 = vpop.permute.xlu0 %1947
        %1950 = vset.pattern.permute.xlu0 1
        %1951 = vperm.xlu0 %1950, %v252
        %v1952 = vpop.permute.xlu0 %1951
        %1954 = vset.pattern.permute.xlu0 1
        %1955 = vperm.xlu0 %1954, %v253
        %v1956 = vpop.permute.xlu0 %1955
        %1958 = vset.pattern.permute.xlu0 1
        %1959 = vperm.xlu0 %1958, %v254
        %v1960 = vpop.permute.xlu0 %1959
        %1962 = vset.pattern.permute.xlu0 1
        %1963 = vperm.xlu0 %1962, %v255
        %v1964 = vpop.permute.xlu0 %1963
        %1966 = vset.pattern.permute.xlu0 1
        %1967 = vperm.xlu0 %1966, %v256
        %v1968 = vpop.permute.xlu0 %1967
        %1970 = vset.pattern.permute.xlu0 1
        %1971 = vperm.xlu0 %1970, %v257
        %v1972 = vpop.permute.xlu0 %1971
        %1974 = vset.pattern.permute.xlu0 1
        %1975 = vperm.xlu0 %1974, %v258
        %v1976 = vpop.permute.xlu0 %1975
        %1978 = vset.pattern.permute.xlu0 1
        %1979 = vperm.xlu0 %1978, %v259
        %v1980 = vpop.permute.xlu0 %1979
        %1982 = vset.pattern.permute.xlu0 1
        %1983 = vperm.xlu0 %1982, %v260
        %v1984 = vpop.permute.xlu0 %1983
        %1986 = vset.pattern.permute.xlu0 1
        %1987 = vperm.xlu0 %1986, %v261
        %v1988 = vpop.permute.xlu0 %1987
        %1990 = vset.pattern.permute.xlu0 1
        %1991 = vperm.xlu0 %1990, %v262
        %v1992 = vpop.permute.xlu0 %1991
        %1994 = vset.pattern.permute.xlu0 1
        %1995 = vperm.xlu0 %1994, %v263
        %v1996 = vpop.permute.xlu0 %1995
        %1998 = vset.pattern.permute.xlu0 1
        %1999 = vperm.xlu0 %1998, %v264
        %v2000 = vpop.permute.xlu0 %1999
        %2002 = vset.pattern.permute.xlu0 1
        %2003 = vperm.xlu0 %2002, %v265
        %v2004 = vpop.permute.xlu0 %2003
        %2006 = vset.pattern.permute.xlu0 1
        %2007 = vperm.xlu0 %2006, %v266
        %v2008 = vpop.permute.xlu0 %2007
        %2010 = vset.pattern.permute.xlu0 1
        %2011 = vperm.xlu0 %2010, %v267
        %v2012 = vpop.permute.xlu0 %2011
        %2014 = vset.pattern.permute.xlu0 1
        %2015 = vperm.xlu0 %2014, %v268
        %v2016 = vpop.permute.xlu0 %2015
        %2018 = vset.pattern.permute.xlu0 1
        %2019 = vperm.xlu0 %2018, %v269
        %v2020 = vpop.permute.xlu0 %2019
        %2022 = vset.pattern.permute.xlu0 1
        %2023 = vperm.xlu0 %2022, %v270
        %v2024 = vpop.permute.xlu0 %2023
        %2026 = vset.pattern.permute.xlu0 1
        %2027 = vperm.xlu0 %2026, %v271
        %v2028 = vpop.permute.xlu0 %2027
        %v2030 = vmul.f32 %v1838, %v1904
        %v2031 = vmul.f32 %v1839, %v1904
        %v2032 = vmul.f32 %v1840, %v1908
        %v2033 = vmul.f32 %v1841, %v1908
        %v2034 = vmul.f32 %v1842, %v1912
        %v2035 = vmul.f32 %v1843, %v1912
        %v2036 = vmul.f32 %v1844, %v1916
        %v2037 = vmul.f32 %v1845, %v1916
        %v2038 = vmul.f32 %v1846, %v1920
        %v2039 = vmul.f32 %v1847, %v1920
        %v2040 = vmul.f32 %v1848, %v1924
        %v2041 = vmul.f32 %v1849, %v1924
        %v2042 = vmul.f32 %v1850, %v1928
        %v2043 = vmul.f32 %v1851, %v1928
        %v2044 = vmul.f32 %v1852, %v1932
        %v2045 = vmul.f32 %v1853, %v1932
        %v2046 = vmul.f32 %v1854, %v1936
        %v2047 = vmul.f32 %v1855, %v1936
        %v2048 = vmul.f32 %v1856, %v1940
        %v2049 = vmul.f32 %v1857, %v1940
        %v2050 = vmul.f32 %v1858, %v1944
        %v2051 = vmul.f32 %v1859, %v1944
        %v2052 = vmul.f32 %v1860, %v1948
        %v2053 = vmul.f32 %v1861, %v1948
        %v2054 = vmul.f32 %v1862, %v1952
        %v2055 = vmul.f32 %v1863, %v1952
        %v2056 = vmul.f32 %v1864, %v1956
        %v2057 = vmul.f32 %v1865, %v1956
        %v2058 = vmul.f32 %v1866, %v1960
        %v2059 = vmul.f32 %v1867, %v1960
        %v2060 = vmul.f32 %v1868, %v1964
        %v2061 = vmul.f32 %v1869, %v1964
        %v2062 = vmul.f32 %v1870, %v1968
        %v2063 = vmul.f32 %v1871, %v1968
        %v2064 = vmul.f32 %v1872, %v1972
        %v2065 = vmul.f32 %v1873, %v1972
        %v2066 = vmul.f32 %v1874, %v1976
        %v2067 = vmul.f32 %v1875, %v1976
        %v2068 = vmul.f32 %v1876, %v1980
        %v2069 = vmul.f32 %v1877, %v1980
        %v2070 = vmul.f32 %v1878, %v1984
        %v2071 = vmul.f32 %v1879, %v1984
        %v2072 = vmul.f32 %v1880, %v1988
        %v2073 = vmul.f32 %v1881, %v1988
        %v2074 = vmul.f32 %v1882, %v1992
        %v2075 = vmul.f32 %v1883, %v1992
        %v2076 = vmul.f32 %v1884, %v1996
        %v2077 = vmul.f32 %v1885, %v1996
        %v2078 = vmul.f32 %v1886, %v2000
        %v2079 = vmul.f32 %v1887, %v2000
        %v2080 = vmul.f32 %v1888, %v2004
        %v2081 = vmul.f32 %v1889, %v2004
        %v2082 = vmul.f32 %v1890, %v2008
        %v2083 = vmul.f32 %v1891, %v2008
        %v2084 = vmul.f32 %v1892, %v2012
        %v2085 = vmul.f32 %v1893, %v2012
        %v2086 = vmul.f32 %v1894, %v2016
        %v2087 = vmul.f32 %v1895, %v2016
        %v2088 = vmul.f32 %v1896, %v2020
        %v2089 = vmul.f32 %v1897, %v2020
        %v2090 = vmul.f32 %v1898, %v2024
        %v2091 = vmul.f32 %v1899, %v2024
        %v2092 = vmul.f32 %v1900, %v2028
        %v2093 = vmul.f32 %v1901, %v2028
        %v2094 = vadd.f32 %v2030, %v2032
        %v2095 = vadd.f32 %v2094, %v2034
        %v2096 = vadd.f32 %v2095, %v2036
        %v2097 = vadd.f32 %v2096, %v2038
        %v2098 = vadd.f32 %v2097, %v2040
        %v2099 = vadd.f32 %v2098, %v2042
        %v2100 = vadd.f32 %v2099, %v2044
        %v2101 = vadd.f32 %v2100, %v2046
        %v2102 = vadd.f32 %v2101, %v2048
        %v2103 = vadd.f32 %v2102, %v2050
        %v2104 = vadd.f32 %v2103, %v2052
        %v2105 = vadd.f32 %v2104, %v2054
        %v2106 = vadd.f32 %v2105, %v2056
        %v2107 = vadd.f32 %v2106, %v2058
        %v2108 = vadd.f32 %v2107, %v2060
        %v2109 = vadd.f32 %v2108, %v2062
        %v2110 = vadd.f32 %v2109, %v2064
        %v2111 = vadd.f32 %v2110, %v2066
        %v2112 = vadd.f32 %v2111, %v2068
        %v2113 = vadd.f32 %v2112, %v2070
        %v2114 = vadd.f32 %v2113, %v2072
        %v2115 = vadd.f32 %v2114, %v2074
        %v2116 = vadd.f32 %v2115, %v2076
        %v2117 = vadd.f32 %v2116, %v2078
        %v2118 = vadd.f32 %v2117, %v2080
        %v2119 = vadd.f32 %v2118, %v2082
        %v2120 = vadd.f32 %v2119, %v2084
        %v2121 = vadd.f32 %v2120, %v2086
        %v2122 = vadd.f32 %v2121, %v2088
        %v2123 = vadd.f32 %v2122, %v2090
        %v2124 = vadd.f32 %v2123, %v2092
        %v2125 = vrot.slane %v2124, 4
        %v2126 = vadd.f32 %v2124, %v2125
        %v2127 = vrot.slane %v2126, 2
        %v2128 = vadd.f32 %v2126, %v2127
        %v2129 = vrot.slane %v2128, 1
        %v2130 = vadd.f32 %v2128, %v2129
        %v2131 = vadd.f32 %v2031, %v2033
        %v2132 = vadd.f32 %v2131, %v2035
        %v2133 = vadd.f32 %v2132, %v2037
        %v2134 = vadd.f32 %v2133, %v2039
        %v2135 = vadd.f32 %v2134, %v2041
        %v2136 = vadd.f32 %v2135, %v2043
        %v2137 = vadd.f32 %v2136, %v2045
        %v2138 = vadd.f32 %v2137, %v2047
        %v2139 = vadd.f32 %v2138, %v2049
        %v2140 = vadd.f32 %v2139, %v2051
        %v2141 = vadd.f32 %v2140, %v2053
        %v2142 = vadd.f32 %v2141, %v2055
        %v2143 = vadd.f32 %v2142, %v2057
        %v2144 = vadd.f32 %v2143, %v2059
        %v2145 = vadd.f32 %v2144, %v2061
        %v2146 = vadd.f32 %v2145, %v2063
        %v2147 = vadd.f32 %v2146, %v2065
        %v2148 = vadd.f32 %v2147, %v2067
        %v2149 = vadd.f32 %v2148, %v2069
        %v2150 = vadd.f32 %v2149, %v2071
        %v2151 = vadd.f32 %v2150, %v2073
        %v2152 = vadd.f32 %v2151, %v2075
        %v2153 = vadd.f32 %v2152, %v2077
        %v2154 = vadd.f32 %v2153, %v2079
        %v2155 = vadd.f32 %v2154, %v2081
        %v2156 = vadd.f32 %v2155, %v2083
        %v2157 = vadd.f32 %v2156, %v2085
        %v2158 = vadd.f32 %v2157, %v2087
        %v2159 = vadd.f32 %v2158, %v2089
        %v2160 = vadd.f32 %v2159, %v2091
        %v2161 = vadd.f32 %v2160, %v2093
        %v2162 = vrot.slane %v2161, 4
        %v2163 = vadd.f32 %v2161, %v2162
        %v2164 = vrot.slane %v2163, 2
        %v2165 = vadd.f32 %v2163, %v2164
        %v2166 = vrot.slane %v2165, 1
        %v2167 = vadd.f32 %v2165, %v2166
        %v2168 = vmul.f32 %v2130, %v290
        %v2169 = vmul.f32 %v2167, %v291
        %v2170 = vperm.slane %v1426, 1
        %v2171 = vperm.slane %v1426, 3
        %v2174 = vmul.f32 %v2130, %v2170
        %v2175 = vmul.f32 %v2167, %v2171
        %2176 = vmatpush.bf16.msra.mxu0 0
        %2177 = vmatpush.bf16.msra.mxu0 0
        %2178 = vmatpush.bf16.msra.mxu0 0
        %2179 = vmatpush.bf16.msra.mxu0 0
        %2180 = vmatpush.bf16.msra.mxu0 0
        %2181 = vmatpush.bf16.msra.mxu0 0
        %2182 = vmatpush.bf16.msra.mxu0 %v1448
        %2183 = vmatpush.bf16.msra.mxu0 %v1446
        %2184 = vmatmul.bf16.gmra.mxu0 %v701
        %v2185 = vpop.f32.mrf.mxu0
        %v2186 = vadd.f32 0.0, %v2185
        %v2187 = vpop.f32.mrf.mxu0
        %v2188 = vadd.f32 0.0, %v2187
        %2189 = vmatmul.bf16.gmra.mxu0 %v704
        %v2190 = vpop.f32.mrf.mxu0
        %v2191 = vadd.f32 0.0, %v2190
        %v2192 = vpop.f32.mrf.mxu0
        %v2193 = vadd.f32 0.0, %v2192
        %2194 = vmatmul.bf16.gmra.mxu0 %v707
        %v2195 = vpop.f32.mrf.mxu0
        %v2196 = vadd.f32 0.0, %v2195
        %v2197 = vpop.f32.mrf.mxu0
        %v2198 = vadd.f32 0.0, %v2197
        %2199 = vmatmul.bf16.gmra.mxu0 %v710
        %v2200 = vpop.f32.mrf.mxu0
        %v2201 = vadd.f32 0.0, %v2200
        %v2202 = vpop.f32.mrf.mxu0
        %v2203 = vadd.f32 0.0, %v2202
        %2204 = vmatmul.bf16.gmra.mxu0 %v713
        %v2205 = vpop.f32.mrf.mxu0
        %v2206 = vadd.f32 0.0, %v2205
        %v2207 = vpop.f32.mrf.mxu0
        %v2208 = vadd.f32 0.0, %v2207
        %2209 = vmatmul.bf16.gmra.mxu0 %v716
        %v2210 = vpop.f32.mrf.mxu0
        %v2211 = vadd.f32 0.0, %v2210
        %v2212 = vpop.f32.mrf.mxu0
        %v2213 = vadd.f32 0.0, %v2212
        %2214 = vmatmul.bf16.gmra.mxu0 %v719
        %v2215 = vpop.f32.mrf.mxu0
        %v2216 = vadd.f32 0.0, %v2215
        %v2217 = vpop.f32.mrf.mxu0
        %v2218 = vadd.f32 0.0, %v2217
        %2219 = vmatmul.bf16.gmra.mxu0 %v722
        %v2220 = vpop.f32.mrf.mxu0
        %v2221 = vadd.f32 0.0, %v2220
        %v2222 = vpop.f32.mrf.mxu0
        %v2223 = vadd.f32 0.0, %v2222
        %2224 = vmatmul.bf16.gmra.mxu0 %v725
        %v2225 = vpop.f32.mrf.mxu0
        %v2226 = vadd.f32 0.0, %v2225
        %v2227 = vpop.f32.mrf.mxu0
        %v2228 = vadd.f32 0.0, %v2227
        %2229 = vmatmul.bf16.gmra.mxu0 %v728
        %v2230 = vpop.f32.mrf.mxu0
        %v2231 = vadd.f32 0.0, %v2230
        %v2232 = vpop.f32.mrf.mxu0
        %v2233 = vadd.f32 0.0, %v2232
        %2234 = vmatmul.bf16.gmra.mxu0 %v731
        %v2235 = vpop.f32.mrf.mxu0
        %v2236 = vadd.f32 0.0, %v2235
        %v2237 = vpop.f32.mrf.mxu0
        %v2238 = vadd.f32 0.0, %v2237
        %2239 = vmatmul.bf16.gmra.mxu0 %v734
        %v2240 = vpop.f32.mrf.mxu0
        %v2241 = vadd.f32 0.0, %v2240
        %v2242 = vpop.f32.mrf.mxu0
        %v2243 = vadd.f32 0.0, %v2242
        %2244 = vmatmul.bf16.gmra.mxu0 %v737
        %v2245 = vpop.f32.mrf.mxu0
        %v2246 = vadd.f32 0.0, %v2245
        %v2247 = vpop.f32.mrf.mxu0
        %v2248 = vadd.f32 0.0, %v2247
        %2249 = vmatmul.bf16.gmra.mxu0 %v740
        %v2250 = vpop.f32.mrf.mxu0
        %v2251 = vadd.f32 0.0, %v2250
        %v2252 = vpop.f32.mrf.mxu0
        %v2253 = vadd.f32 0.0, %v2252
        %2254 = vmatmul.bf16.gmra.mxu0 %v743
        %v2255 = vpop.f32.mrf.mxu0
        %v2256 = vadd.f32 0.0, %v2255
        %v2257 = vpop.f32.mrf.mxu0
        %v2258 = vadd.f32 0.0, %v2257
        %2259 = vmatmul.bf16.gmra.mxu0 %v746
        %v2260 = vpop.f32.mrf.mxu0
        %v2261 = vadd.f32 0.0, %v2260
        %v2262 = vpop.f32.mrf.mxu0
        %v2263 = vadd.f32 0.0, %v2262
        %2264 = vdwg.mxu0
        %2265 = vmatpush.bf16.msra.mxu0 0
        %2266 = vmatpush.bf16.msra.mxu0 0
        %2267 = vmatpush.bf16.msra.mxu0 0
        %2268 = vmatpush.bf16.msra.mxu0 0
        %2269 = vmatpush.bf16.msra.mxu0 0
        %2270 = vmatpush.bf16.msra.mxu0 0
        %2271 = vmatpush.bf16.msra.mxu0 %v1449
        %2272 = vmatpush.bf16.msra.mxu0 %v1447
        %2273 = vmatmul.bf16.gmra.mxu0 %v701
        %v2274 = vpop.f32.mrf.mxu0
        %v2275 = vadd.f32 0.0, %v2274
        %v2276 = vpop.f32.mrf.mxu0
        %v2277 = vadd.f32 0.0, %v2276
        %2278 = vmatmul.bf16.gmra.mxu0 %v704
        %v2279 = vpop.f32.mrf.mxu0
        %v2280 = vadd.f32 0.0, %v2279
        %v2281 = vpop.f32.mrf.mxu0
        %v2282 = vadd.f32 0.0, %v2281
        %2283 = vmatmul.bf16.gmra.mxu0 %v707
        %v2284 = vpop.f32.mrf.mxu0
        %v2285 = vadd.f32 0.0, %v2284
        %v2286 = vpop.f32.mrf.mxu0
        %v2287 = vadd.f32 0.0, %v2286
        %2288 = vmatmul.bf16.gmra.mxu0 %v710
        %v2289 = vpop.f32.mrf.mxu0
        %v2290 = vadd.f32 0.0, %v2289
        %v2291 = vpop.f32.mrf.mxu0
        %v2292 = vadd.f32 0.0, %v2291
        %2293 = vmatmul.bf16.gmra.mxu0 %v713
        %v2294 = vpop.f32.mrf.mxu0
        %v2295 = vadd.f32 0.0, %v2294
        %v2296 = vpop.f32.mrf.mxu0
        %v2297 = vadd.f32 0.0, %v2296
        %2298 = vmatmul.bf16.gmra.mxu0 %v716
        %v2299 = vpop.f32.mrf.mxu0
        %v2300 = vadd.f32 0.0, %v2299
        %v2301 = vpop.f32.mrf.mxu0
        %v2302 = vadd.f32 0.0, %v2301
        %2303 = vmatmul.bf16.gmra.mxu0 %v719
        %v2304 = vpop.f32.mrf.mxu0
        %v2305 = vadd.f32 0.0, %v2304
        %v2306 = vpop.f32.mrf.mxu0
        %v2307 = vadd.f32 0.0, %v2306
        %2308 = vmatmul.bf16.gmra.mxu0 %v722
        %v2309 = vpop.f32.mrf.mxu0
        %v2310 = vadd.f32 0.0, %v2309
        %v2311 = vpop.f32.mrf.mxu0
        %v2312 = vadd.f32 0.0, %v2311
        %2313 = vmatmul.bf16.gmra.mxu0 %v725
        %v2314 = vpop.f32.mrf.mxu0
        %v2315 = vadd.f32 0.0, %v2314
        %v2316 = vpop.f32.mrf.mxu0
        %v2317 = vadd.f32 0.0, %v2316
        %2318 = vmatmul.bf16.gmra.mxu0 %v728
        %v2319 = vpop.f32.mrf.mxu0
        %v2320 = vadd.f32 0.0, %v2319
        %v2321 = vpop.f32.mrf.mxu0
        %v2322 = vadd.f32 0.0, %v2321
        %2323 = vmatmul.bf16.gmra.mxu0 %v731
        %v2324 = vpop.f32.mrf.mxu0
        %v2325 = vadd.f32 0.0, %v2324
        %v2326 = vpop.f32.mrf.mxu0
        %v2327 = vadd.f32 0.0, %v2326
        %2328 = vmatmul.bf16.gmra.mxu0 %v734
        %v2329 = vpop.f32.mrf.mxu0
        %v2330 = vadd.f32 0.0, %v2329
        %v2331 = vpop.f32.mrf.mxu0
        %v2332 = vadd.f32 0.0, %v2331
        %2333 = vmatmul.bf16.gmra.mxu0 %v737
        %v2334 = vpop.f32.mrf.mxu0
        %v2335 = vadd.f32 0.0, %v2334
        %v2336 = vpop.f32.mrf.mxu0
        %v2337 = vadd.f32 0.0, %v2336
        %2338 = vmatmul.bf16.gmra.mxu0 %v740
        %v2339 = vpop.f32.mrf.mxu0
        %v2340 = vadd.f32 0.0, %v2339
        %v2341 = vpop.f32.mrf.mxu0
        %v2342 = vadd.f32 0.0, %v2341
        %2343 = vmatmul.bf16.gmra.mxu0 %v743
        %v2344 = vpop.f32.mrf.mxu0
        %v2345 = vadd.f32 0.0, %v2344
        %v2346 = vpop.f32.mrf.mxu0
        %v2347 = vadd.f32 0.0, %v2346
        %2348 = vmatmul.bf16.gmra.mxu0 %v746
        %v2349 = vpop.f32.mrf.mxu0
        %v2350 = vadd.f32 0.0, %v2349
        %v2351 = vpop.f32.mrf.mxu0
        %v2352 = vadd.f32 0.0, %v2351
        %2353 = vdwg.mxu0
        %v2354 = vsub.f32 0.4, %v2186
        %v2355 = vsub.f32 0.4, %v2275
        %v2356 = vsub.f32 0.4, %v2188
        %v2357 = vsub.f32 0.4, %v2277
        %v2358 = vsub.f32 0.4, %v2191
        %v2359 = vsub.f32 0.4, %v2280
        %v2360 = vsub.f32 0.4, %v2193
        %v2361 = vsub.f32 0.4, %v2282
        %v2362 = vsub.f32 0.4, %v2196
        %v2363 = vsub.f32 0.4, %v2285
        %v2364 = vsub.f32 0.4, %v2198
        %v2365 = vsub.f32 0.4, %v2287
        %v2366 = vsub.f32 0.4, %v2201
        %v2367 = vsub.f32 0.4, %v2290
        %v2368 = vsub.f32 0.4, %v2203
        %v2369 = vsub.f32 0.4, %v2292
        %v2370 = vsub.f32 0.4, %v2206
        %v2371 = vsub.f32 0.4, %v2295
        %v2372 = vsub.f32 0.4, %v2208
        %v2373 = vsub.f32 0.4, %v2297
        %v2374 = vsub.f32 0.4, %v2211
        %v2375 = vsub.f32 0.4, %v2300
        %v2376 = vsub.f32 0.4, %v2213
        %v2377 = vsub.f32 0.4, %v2302
        %v2378 = vsub.f32 0.4, %v2216
        %v2379 = vsub.f32 0.4, %v2305
        %v2380 = vsub.f32 0.4, %v2218
        %v2381 = vsub.f32 0.4, %v2307
        %v2382 = vsub.f32 0.4, %v2221
        %v2383 = vsub.f32 0.4, %v2310
        %v2384 = vsub.f32 0.4, %v2223
        %v2385 = vsub.f32 0.4, %v2312
        %v2386 = vsub.f32 0.4, %v2226
        %v2387 = vsub.f32 0.4, %v2315
        %v2388 = vsub.f32 0.4, %v2228
        %v2389 = vsub.f32 0.4, %v2317
        %v2390 = vsub.f32 0.4, %v2231
        %v2391 = vsub.f32 0.4, %v2320
        %v2392 = vsub.f32 0.4, %v2233
        %v2393 = vsub.f32 0.4, %v2322
        %v2394 = vsub.f32 0.4, %v2236
        %v2395 = vsub.f32 0.4, %v2325
        %v2396 = vsub.f32 0.4, %v2238
        %v2397 = vsub.f32 0.4, %v2327
        %v2398 = vsub.f32 0.4, %v2241
        %v2399 = vsub.f32 0.4, %v2330
        %v2400 = vsub.f32 0.4, %v2243
        %v2401 = vsub.f32 0.4, %v2332
        %v2402 = vsub.f32 0.4, %v2246
        %v2403 = vsub.f32 0.4, %v2335
        %v2404 = vsub.f32 0.4, %v2248
        %v2405 = vsub.f32 0.4, %v2337
        %v2406 = vsub.f32 0.4, %v2251
        %v2407 = vsub.f32 0.4, %v2340
        %v2408 = vsub.f32 0.4, %v2253
        %v2409 = vsub.f32 0.4, %v2342
        %v2410 = vsub.f32 0.4, %v2256
        %v2411 = vsub.f32 0.4, %v2345
        %v2412 = vsub.f32 0.4, %v2258
        %v2413 = vsub.f32 0.4, %v2347
        %v2414 = vsub.f32 0.4, %v2261
        %v2415 = vsub.f32 0.4, %v2350
        %v2416 = vsub.f32 0.4, %v2263
        %v2417 = vsub.f32 0.4, %v2352
        %v2418 = vsel %vm1772, %v2354, %v2186
        %v2419 = vsel %vm1773, %v2355, %v2275
        %v2420 = vsel %vm1772, %v2356, %v2188
        %v2421 = vsel %vm1773, %v2357, %v2277
        %v2422 = vsel %vm1772, %v2358, %v2191
        %v2423 = vsel %vm1773, %v2359, %v2280
        %v2424 = vsel %vm1772, %v2360, %v2193
        %v2425 = vsel %vm1773, %v2361, %v2282
        %v2426 = vsel %vm1772, %v2362, %v2196
        %v2427 = vsel %vm1773, %v2363, %v2285
        %v2428 = vsel %vm1772, %v2364, %v2198
        %v2429 = vsel %vm1773, %v2365, %v2287
        %v2430 = vsel %vm1772, %v2366, %v2201
        %v2431 = vsel %vm1773, %v2367, %v2290
        %v2432 = vsel %vm1772, %v2368, %v2203
        %v2433 = vsel %vm1773, %v2369, %v2292
        %v2434 = vsel %vm1772, %v2370, %v2206
        %v2435 = vsel %vm1773, %v2371, %v2295
        %v2436 = vsel %vm1772, %v2372, %v2208
        %v2437 = vsel %vm1773, %v2373, %v2297
        %v2438 = vsel %vm1772, %v2374, %v2211
        %v2439 = vsel %vm1773, %v2375, %v2300
        %v2440 = vsel %vm1772, %v2376, %v2213
        %v2441 = vsel %vm1773, %v2377, %v2302
        %v2442 = vsel %vm1772, %v2378, %v2216
        %v2443 = vsel %vm1773, %v2379, %v2305
        %v2444 = vsel %vm1772, %v2380, %v2218
        %v2445 = vsel %vm1773, %v2381, %v2307
        %v2446 = vsel %vm1772, %v2382, %v2221
        %v2447 = vsel %vm1773, %v2383, %v2310
        %v2448 = vsel %vm1772, %v2384, %v2223
        %v2449 = vsel %vm1773, %v2385, %v2312
        %v2450 = vsel %vm1772, %v2386, %v2226
        %v2451 = vsel %vm1773, %v2387, %v2315
        %v2452 = vsel %vm1772, %v2388, %v2228
        %v2453 = vsel %vm1773, %v2389, %v2317
        %v2454 = vsel %vm1772, %v2390, %v2231
        %v2455 = vsel %vm1773, %v2391, %v2320
        %v2456 = vsel %vm1772, %v2392, %v2233
        %v2457 = vsel %vm1773, %v2393, %v2322
        %v2458 = vsel %vm1772, %v2394, %v2236
        %v2459 = vsel %vm1773, %v2395, %v2325
        %v2460 = vsel %vm1772, %v2396, %v2238
        %v2461 = vsel %vm1773, %v2397, %v2327
        %v2462 = vsel %vm1772, %v2398, %v2241
        %v2463 = vsel %vm1773, %v2399, %v2330
        %v2464 = vsel %vm1772, %v2400, %v2243
        %v2465 = vsel %vm1773, %v2401, %v2332
        %v2466 = vsel %vm1772, %v2402, %v2246
        %v2467 = vsel %vm1773, %v2403, %v2335
        %v2468 = vsel %vm1772, %v2404, %v2248
        %v2469 = vsel %vm1773, %v2405, %v2337
        %v2470 = vsel %vm1772, %v2406, %v2251
        %v2471 = vsel %vm1773, %v2407, %v2340
        %v2472 = vsel %vm1772, %v2408, %v2253
        %v2473 = vsel %vm1773, %v2409, %v2342
        %v2474 = vsel %vm1772, %v2410, %v2256
        %v2475 = vsel %vm1773, %v2411, %v2345
        %v2476 = vsel %vm1772, %v2412, %v2258
        %v2477 = vsel %vm1773, %v2413, %v2347
        %v2478 = vsel %vm1772, %v2414, %v2261
        %v2479 = vsel %vm1773, %v2415, %v2350
        %v2480 = vsel %vm1772, %v2416, %v2263
        %v2481 = vsel %vm1773, %v2417, %v2352
        %v2482 = vmax.f32 %v2418, 0.0
        %v2483 = vmax.f32 %v2419, 0.0
        %v2484 = vmax.f32 %v2420, 0.0
        %v2485 = vmax.f32 %v2421, 0.0
        %v2486 = vmax.f32 %v2422, 0.0
        %v2487 = vmax.f32 %v2423, 0.0
        %v2488 = vmax.f32 %v2424, 0.0
        %v2489 = vmax.f32 %v2425, 0.0
        %v2490 = vmax.f32 %v2426, 0.0
        %v2491 = vmax.f32 %v2427, 0.0
        %v2492 = vmax.f32 %v2428, 0.0
        %v2493 = vmax.f32 %v2429, 0.0
        %v2494 = vmax.f32 %v2430, 0.0
        %v2495 = vmax.f32 %v2431, 0.0
        %v2496 = vmax.f32 %v2432, 0.0
        %v2497 = vmax.f32 %v2433, 0.0
        %v2498 = vmax.f32 %v2434, 0.0
        %v2499 = vmax.f32 %v2435, 0.0
        %v2500 = vmax.f32 %v2436, 0.0
        %v2501 = vmax.f32 %v2437, 0.0
        %v2502 = vmax.f32 %v2438, 0.0
        %v2503 = vmax.f32 %v2439, 0.0
        %v2504 = vmax.f32 %v2440, 0.0
        %v2505 = vmax.f32 %v2441, 0.0
        %v2506 = vmax.f32 %v2442, 0.0
        %v2507 = vmax.f32 %v2443, 0.0
        %v2508 = vmax.f32 %v2444, 0.0
        %v2509 = vmax.f32 %v2445, 0.0
        %v2510 = vmax.f32 %v2446, 0.0
        %v2511 = vmax.f32 %v2447, 0.0
        %v2512 = vmax.f32 %v2448, 0.0
        %v2513 = vmax.f32 %v2449, 0.0
        %v2514 = vmax.f32 %v2450, 0.0
        %v2515 = vmax.f32 %v2451, 0.0
        %v2516 = vmax.f32 %v2452, 0.0
        %v2517 = vmax.f32 %v2453, 0.0
        %v2518 = vmax.f32 %v2454, 0.0
        %v2519 = vmax.f32 %v2455, 0.0
        %v2520 = vmax.f32 %v2456, 0.0
        %v2521 = vmax.f32 %v2457, 0.0
        %v2522 = vmax.f32 %v2458, 0.0
        %v2523 = vmax.f32 %v2459, 0.0
        %v2524 = vmax.f32 %v2460, 0.0
        %v2525 = vmax.f32 %v2461, 0.0
        %v2526 = vmax.f32 %v2462, 0.0
        %v2527 = vmax.f32 %v2463, 0.0
        %v2528 = vmax.f32 %v2464, 0.0
        %v2529 = vmax.f32 %v2465, 0.0
        %v2530 = vmax.f32 %v2466, 0.0
        %v2531 = vmax.f32 %v2467, 0.0
        %v2532 = vmax.f32 %v2468, 0.0
        %v2533 = vmax.f32 %v2469, 0.0
        %v2534 = vmax.f32 %v2470, 0.0
        %v2535 = vmax.f32 %v2471, 0.0
        %v2536 = vmax.f32 %v2472, 0.0
        %v2537 = vmax.f32 %v2473, 0.0
        %v2538 = vmax.f32 %v2474, 0.0
        %v2539 = vmax.f32 %v2475, 0.0
        %v2540 = vmax.f32 %v2476, 0.0
        %v2541 = vmax.f32 %v2477, 0.0
        %v2542 = vmax.f32 %v2478, 0.0
        %v2543 = vmax.f32 %v2479, 0.0
        %v2544 = vmax.f32 %v2480, 0.0
        %v2545 = vmax.f32 %v2481, 0.0
        %v2546 = vmul.f32 %v2482, %v1129
        %v2547 = vmul.f32 %v2483, %v1129
        %v2548 = vmul.f32 %v2484, %v1134
        %v2549 = vmul.f32 %v2485, %v1134
        %v2550 = vmul.f32 %v2486, %v1139
        %v2551 = vmul.f32 %v2487, %v1139
        %v2552 = vmul.f32 %v2488, %v1144
        %v2553 = vmul.f32 %v2489, %v1144
        %v2554 = vmul.f32 %v2490, %v1149
        %v2555 = vmul.f32 %v2491, %v1149
        %v2556 = vmul.f32 %v2492, %v1154
        %v2557 = vmul.f32 %v2493, %v1154
        %v2558 = vmul.f32 %v2494, %v1159
        %v2559 = vmul.f32 %v2495, %v1159
        %v2560 = vmul.f32 %v2496, %v1164
        %v2561 = vmul.f32 %v2497, %v1164
        %v2562 = vmul.f32 %v2498, %v1169
        %v2563 = vmul.f32 %v2499, %v1169
        %v2564 = vmul.f32 %v2500, %v1174
        %v2565 = vmul.f32 %v2501, %v1174
        %v2566 = vmul.f32 %v2502, %v1179
        %v2567 = vmul.f32 %v2503, %v1179
        %v2568 = vmul.f32 %v2504, %v1184
        %v2569 = vmul.f32 %v2505, %v1184
        %v2570 = vmul.f32 %v2506, %v1189
        %v2571 = vmul.f32 %v2507, %v1189
        %v2572 = vmul.f32 %v2508, %v1194
        %v2573 = vmul.f32 %v2509, %v1194
        %v2574 = vmul.f32 %v2510, %v1199
        %v2575 = vmul.f32 %v2511, %v1199
        %v2576 = vmul.f32 %v2512, %v1204
        %v2577 = vmul.f32 %v2513, %v1204
        %v2578 = vmul.f32 %v2514, %v1209
        %v2579 = vmul.f32 %v2515, %v1209
        %v2580 = vmul.f32 %v2516, %v1214
        %v2581 = vmul.f32 %v2517, %v1214
        %v2582 = vmul.f32 %v2518, %v1219
        %v2583 = vmul.f32 %v2519, %v1219
        %v2584 = vmul.f32 %v2520, %v1224
        %v2585 = vmul.f32 %v2521, %v1224
        %v2586 = vmul.f32 %v2522, %v1229
        %v2587 = vmul.f32 %v2523, %v1229
        %v2588 = vmul.f32 %v2524, %v1234
        %v2589 = vmul.f32 %v2525, %v1234
        %v2590 = vmul.f32 %v2526, %v1239
        %v2591 = vmul.f32 %v2527, %v1239
        %v2592 = vmul.f32 %v2528, %v1244
        %v2593 = vmul.f32 %v2529, %v1244
        %v2594 = vmul.f32 %v2530, %v1249
        %v2595 = vmul.f32 %v2531, %v1249
        %v2596 = vmul.f32 %v2532, %v1254
        %v2597 = vmul.f32 %v2533, %v1254
        %v2598 = vmul.f32 %v2534, %v1259
        %v2599 = vmul.f32 %v2535, %v1259
        %v2600 = vmul.f32 %v2536, %v1264
        %v2601 = vmul.f32 %v2537, %v1264
        %v2602 = vmul.f32 %v2538, %v1269
        %v2603 = vmul.f32 %v2539, %v1269
        %v2604 = vmul.f32 %v2540, %v1274
        %v2605 = vmul.f32 %v2541, %v1274
        %v2606 = vmul.f32 %v2542, %v1279
        %v2607 = vmul.f32 %v2543, %v1279
        %v2608 = vmul.f32 %v2544, %v1284
        %v2609 = vmul.f32 %v2545, %v1284
        %v2610 = vadd.f32 %v2546, %v2548
        %v2611 = vadd.f32 %v2610, %v2550
        %v2612 = vadd.f32 %v2611, %v2552
        %v2613 = vadd.f32 %v2612, %v2554
        %v2614 = vadd.f32 %v2613, %v2556
        %v2615 = vadd.f32 %v2614, %v2558
        %v2616 = vadd.f32 %v2615, %v2560
        %v2617 = vadd.f32 %v2616, %v2562
        %v2618 = vadd.f32 %v2617, %v2564
        %v2619 = vadd.f32 %v2618, %v2566
        %v2620 = vadd.f32 %v2619, %v2568
        %v2621 = vadd.f32 %v2620, %v2570
        %v2622 = vadd.f32 %v2621, %v2572
        %v2623 = vadd.f32 %v2622, %v2574
        %v2624 = vadd.f32 %v2623, %v2576
        %v2625 = vadd.f32 %v2624, %v2578
        %v2626 = vadd.f32 %v2625, %v2580
        %v2627 = vadd.f32 %v2626, %v2582
        %v2628 = vadd.f32 %v2627, %v2584
        %v2629 = vadd.f32 %v2628, %v2586
        %v2630 = vadd.f32 %v2629, %v2588
        %v2631 = vadd.f32 %v2630, %v2590
        %v2632 = vadd.f32 %v2631, %v2592
        %v2633 = vadd.f32 %v2632, %v2594
        %v2634 = vadd.f32 %v2633, %v2596
        %v2635 = vadd.f32 %v2634, %v2598
        %v2636 = vadd.f32 %v2635, %v2600
        %v2637 = vadd.f32 %v2636, %v2602
        %v2638 = vadd.f32 %v2637, %v2604
        %v2639 = vadd.f32 %v2638, %v2606
        %v2640 = vadd.f32 %v2639, %v2608
        %v2641 = vrot.slane %v2640, 4
        %v2642 = vadd.f32 %v2640, %v2641
        %v2643 = vrot.slane %v2642, 2
        %v2644 = vadd.f32 %v2642, %v2643
        %v2645 = vrot.slane %v2644, 1
        %v2646 = vadd.f32 %v2644, %v2645
        %v2647 = vadd.f32 %v2547, %v2549
        %v2648 = vadd.f32 %v2647, %v2551
        %v2649 = vadd.f32 %v2648, %v2553
        %v2650 = vadd.f32 %v2649, %v2555
        %v2651 = vadd.f32 %v2650, %v2557
        %v2652 = vadd.f32 %v2651, %v2559
        %v2653 = vadd.f32 %v2652, %v2561
        %v2654 = vadd.f32 %v2653, %v2563
        %v2655 = vadd.f32 %v2654, %v2565
        %v2656 = vadd.f32 %v2655, %v2567
        %v2657 = vadd.f32 %v2656, %v2569
        %v2658 = vadd.f32 %v2657, %v2571
        %v2659 = vadd.f32 %v2658, %v2573
        %v2660 = vadd.f32 %v2659, %v2575
        %v2661 = vadd.f32 %v2660, %v2577
        %v2662 = vadd.f32 %v2661, %v2579
        %v2663 = vadd.f32 %v2662, %v2581
        %v2664 = vadd.f32 %v2663, %v2583
        %v2665 = vadd.f32 %v2664, %v2585
        %v2666 = vadd.f32 %v2665, %v2587
        %v2667 = vadd.f32 %v2666, %v2589
        %v2668 = vadd.f32 %v2667, %v2591
        %v2669 = vadd.f32 %v2668, %v2593
        %v2670 = vadd.f32 %v2669, %v2595
        %v2671 = vadd.f32 %v2670, %v2597
        %v2672 = vadd.f32 %v2671, %v2599
        %v2673 = vadd.f32 %v2672, %v2601
        %v2674 = vadd.f32 %v2673, %v2603
        %v2675 = vadd.f32 %v2674, %v2605
        %v2676 = vadd.f32 %v2675, %v2607
        %v2677 = vadd.f32 %v2676, %v2609
        %v2678 = vrot.slane %v2677, 4
        %v2679 = vadd.f32 %v2677, %v2678
        %v2680 = vrot.slane %v2679, 2
        %v2681 = vadd.f32 %v2679, %v2680
        %v2682 = vrot.slane %v2681, 1
        %v2683 = vadd.f32 %v2681, %v2682
        %v2684 = vmul.f32 %v2646, %v290
        %v2685 = vmul.f32 %v2683, %v291
        %v2686 = vmul.f32 %v2646, %v2170
        %v2687 = vmul.f32 %v2683, %v2171
        %v2688 = vadd.f32 %v1424, 0.0
        %v2689 = vadd.f32 %v1425, 0.0
        %v2690 = vadd.f32 %v1432, 0.0
        %v2691 = vadd.f32 %v1433, 0.0
        %v2692 = vadd.f32 %v2168, 0.0
        %v2693 = vadd.f32 %v2169, 0.0
        %v2694 = vadd.f32 %v2174, 0.0
        %v2695 = vadd.f32 %v2175, 0.0
        %v2696 = vadd.f32 %v2684, 0.0
        %v2697 = vadd.f32 %v2685, 0.0
        %v2698 = vadd.f32 %v2686, 0.0
        %v2699 = vadd.f32 %v2687, 0.0
        %v2700 = vmul.f32 %v401, %v401
        %v2701 = vmul.f32 %v442, %v442
        %v2702 = vmul.f32 %v483, %v483
        %v2703 = vmul.f32 %v524, %v524
        %v2704 = vmul.f32 %v404, %v404
        %v2705 = vmul.f32 %v445, %v445
        %v2706 = vmul.f32 %v486, %v486
        %v2707 = vmul.f32 %v527, %v527
        %v2708 = vmul.f32 %v407, %v407
        %v2709 = vmul.f32 %v448, %v448
        %v2710 = vmul.f32 %v489, %v489
        %v2711 = vmul.f32 %v530, %v530
        %v2712 = vmul.f32 %v410, %v410
        %v2713 = vmul.f32 %v451, %v451
        %v2714 = vmul.f32 %v492, %v492
        %v2715 = vmul.f32 %v533, %v533
        %v2716 = vadd.f32 %v2700, %v2704
        %v2717 = vadd.f32 %v2716, %v2708
        %v2718 = vadd.f32 %v2717, %v2712
        %v2719 = vrot.slane %v2718, 4
        %v2720 = vadd.f32 %v2718, %v2719
        %v2721 = vrot.slane %v2720, 2
        %v2722 = vadd.f32 %v2720, %v2721
        %v2723 = vrot.slane %v2722, 1
        %v2724 = vadd.f32 %v2722, %v2723
        %v2725 = vadd.f32 %v2701, %v2705
        %v2726 = vadd.f32 %v2725, %v2709
        %v2727 = vadd.f32 %v2726, %v2713
        %v2728 = vrot.slane %v2727, 4
        %v2729 = vadd.f32 %v2727, %v2728
        %v2730 = vrot.slane %v2729, 2
        %v2731 = vadd.f32 %v2729, %v2730
        %v2732 = vrot.slane %v2731, 1
        %v2733 = vadd.f32 %v2731, %v2732
        %v2734 = vadd.f32 %v2702, %v2706
        %v2735 = vadd.f32 %v2734, %v2710
        %v2736 = vadd.f32 %v2735, %v2714
        %v2737 = vrot.slane %v2736, 4
        %v2738 = vadd.f32 %v2736, %v2737
        %v2739 = vrot.slane %v2738, 2
        %v2740 = vadd.f32 %v2738, %v2739
        %v2741 = vrot.slane %v2740, 1
        %v2742 = vadd.f32 %v2740, %v2741
        %v2743 = vadd.f32 %v2703, %v2707
        %v2744 = vadd.f32 %v2743, %v2711
        %v2745 = vadd.f32 %v2744, %v2715
        %v2746 = vrot.slane %v2745, 4
        %v2747 = vadd.f32 %v2745, %v2746
        %v2748 = vrot.slane %v2747, 2
        %v2749 = vadd.f32 %v2747, %v2748
        %v2750 = vrot.slane %v2749, 1
        %v2751 = vadd.f32 %v2749, %v2750
        %v2752 = vadd.f32 %v2724, 1e-06
        %v2753 = vadd.f32 %v2733, 1e-06
        %v2754 = vadd.f32 %v2742, 1e-06
        %v2755 = vadd.f32 %v2751, 1e-06
        %v2756 = vrsqrt.pop %v2752
        %v2757 = vmul.f32 %v2756, %v2752
        %v2758 = vmul.f32 %v2757, %v2756
        %v2759 = vmul.f32 0.5, %v2758
        %v2760 = vsub.f32 1.5, %v2759
        %v2761 = vmul.f32 %v2756, %v2760
        %vm2762 = vweird.f32 %v2752
        %vm2763 = vweird.f32 %v2756
        %vm2764 = vmor %vm2762, %vm2763
        %v2765 = vsel %vm2764, %v2756, %v2761
        %v2766 = vrsqrt.pop %v2753
        %v2767 = vmul.f32 %v2766, %v2753
        %v2768 = vmul.f32 %v2767, %v2766
        %v2769 = vmul.f32 0.5, %v2768
        %v2770 = vsub.f32 1.5, %v2769
        %v2771 = vmul.f32 %v2766, %v2770
        %vm2772 = vweird.f32 %v2753
        %vm2773 = vweird.f32 %v2766
        %vm2774 = vmor %vm2772, %vm2773
        %v2775 = vsel %vm2774, %v2766, %v2771
        %v2776 = vrsqrt.pop %v2754
        %v2777 = vmul.f32 %v2776, %v2754
        %v2778 = vmul.f32 %v2777, %v2776
        %v2779 = vmul.f32 0.5, %v2778
        %v2780 = vsub.f32 1.5, %v2779
        %v2781 = vmul.f32 %v2776, %v2780
        %vm2782 = vweird.f32 %v2754
        %vm2783 = vweird.f32 %v2776
        %vm2784 = vmor %vm2782, %vm2783
        %v2785 = vsel %vm2784, %v2776, %v2781
        %v2786 = vrsqrt.pop %v2755
        %v2787 = vmul.f32 %v2786, %v2755
        %v2788 = vmul.f32 %v2787, %v2786
        %v2789 = vmul.f32 0.5, %v2788
        %v2790 = vsub.f32 1.5, %v2789
        %v2791 = vmul.f32 %v2786, %v2790
        %vm2792 = vweird.f32 %v2755
        %vm2793 = vweird.f32 %v2786
        %vm2794 = vmor %vm2792, %vm2793
        %v2795 = vsel %vm2794, %v2786, %v2791
        %v2796 = vmul.f32 %v401, %v2765
        %v2797 = vmul.f32 %v442, %v2775
        %v2798 = vmul.f32 %v483, %v2785
        %v2799 = vmul.f32 %v524, %v2795
        %v2800 = vmul.f32 %v404, %v2765
        %v2801 = vmul.f32 %v445, %v2775
        %v2802 = vmul.f32 %v486, %v2785
        %v2803 = vmul.f32 %v527, %v2795
        %v2804 = vmul.f32 %v407, %v2765
        %v2805 = vmul.f32 %v448, %v2775
        %v2806 = vmul.f32 %v489, %v2785
        %v2807 = vmul.f32 %v530, %v2795
        %v2808 = vmul.f32 %v410, %v2765
        %v2809 = vmul.f32 %v451, %v2775
        %v2810 = vmul.f32 %v492, %v2785
        %v2811 = vmul.f32 %v533, %v2795
        %v2812 = vpack.c.bf16 %v2797, %v2796
        %v2813 = vpack.c.bf16 %v2799, %v2798
        %v2814 = vpack.c.bf16 %v2801, %v2800
        %v2815 = vpack.c.bf16 %v2803, %v2802
        %v2816 = vpack.c.bf16 %v2805, %v2804
        %v2817 = vpack.c.bf16 %v2807, %v2806
        %v2818 = vpack.c.bf16 %v2809, %v2808
        %v2819 = vpack.c.bf16 %v2811, %v2810
        %v2824 = vunpack.c.l.b16 %v2812
        %v2825 = vunpack.c.h.b16 %v2812
        %v2826 = vunpack.c.l.b16 %v2814
        %v2827 = vunpack.c.h.b16 %v2814
        %v2828 = vunpack.c.l.b16 %v2816
        %v2829 = vunpack.c.h.b16 %v2816
        %v2830 = vunpack.c.l.b16 %v2818
        %v2831 = vunpack.c.h.b16 %v2818
        %v2832 = vpack.c.b16 %v2826, %v2824
        %v2833 = vpack.c.b16 %v2827, %v2825
        %v2834 = vpack.c.b16 %v2830, %v2828
        %v2835 = vpack.c.b16 %v2831, %v2829
        %2840 = vxpose.binary.xlu0.c.b16.start [1/16] %v2833, %v2832, 128
        %2841 = vxpose.binary.xlu0.c.b16.cont [2/16] %v2835, %v2834, 128
        %2842 = vxpose.binary.xlu0.c.b16.cont [3/16] 0, 0, 128
        %2843 = vxpose.binary.xlu0.c.b16.cont [4/16] 0, 0, 128
        %2844 = vxpose.binary.xlu0.c.b16.cont [5/16] 0, 0, 128
        %2845 = vxpose.binary.xlu0.c.b16.cont [6/16] 0, 0, 128
        %2846 = vxpose.binary.xlu0.c.b16.cont [7/16] 0, 0, 128
        %2847 = vxpose.binary.xlu0.c.b16.end [8/16] 0, 0, 128
        %v2848 = vpop.trf.xlu0
        %v2849 = vpop.trf.xlu0
        %v2850 = vpop.trf.xlu0
        %v2851 = vpop.trf.xlu0
        %v2852 = vpop.trf.xlu0
        %v2853 = vpop.trf.xlu0
        %v2854 = vpop.trf.xlu0
        %v2855 = vpop.trf.xlu0
        %v2856 = vpop.trf.xlu0
        %v2857 = vpop.trf.xlu0
        %v2858 = vpop.trf.xlu0
        %v2859 = vpop.trf.xlu0
        %v2860 = vpop.trf.xlu0
        %v2861 = vpop.trf.xlu0
        %v2862 = vpop.trf.xlu0
        %v2863 = vpop.trf.xlu0
        %v2865 = vsel %vm699, %v2848, 0
        %v2868 = vsel %vm699, %v2850, 0
        %v2871 = vsel %vm699, %v2852, 0
        %v2874 = vsel %vm699, %v2854, 0
        %v2877 = vsel %vm699, %v2856, 0
        %v2880 = vsel %vm699, %v2858, 0
        %v2883 = vsel %vm699, %v2860, 0
        %v2886 = vsel %vm699, %v2862, 0
        %v2889 = vsel %vm699, %v2849, 0
        %v2892 = vsel %vm699, %v2851, 0
        %v2895 = vsel %vm699, %v2853, 0
        %v2898 = vsel %vm699, %v2855, 0
        %v2901 = vsel %vm699, %v2857, 0
        %v2904 = vsel %vm699, %v2859, 0
        %v2907 = vsel %vm699, %v2861, 0
        %v2910 = vsel %vm699, %v2863, 0
        %2912 = vmatpush.bf16.msra.mxu0 0
        %2913 = vmatpush.bf16.msra.mxu0 0
        %2914 = vmatpush.bf16.msra.mxu0 0
        %2915 = vmatpush.bf16.msra.mxu0 0
        %2916 = vmatpush.bf16.msra.mxu0 0
        %2917 = vmatpush.bf16.msra.mxu0 0
        %2918 = vmatpush.bf16.msra.mxu0 %v2834
        %2919 = vmatpush.bf16.msra.mxu0 %v2832
        %2920 = vmatmul.bf16.gmra.mxu0 %v2865
        %v2921 = vpop.f32.mrf.mxu0
        %v2922 = vadd.f32 0.0, %v2921
        %v2923 = vpop.f32.mrf.mxu0
        %v2924 = vadd.f32 0.0, %v2923
        %2925 = vmatmul.bf16.gmra.mxu0 %v2868
        %v2926 = vpop.f32.mrf.mxu0
        %v2927 = vadd.f32 0.0, %v2926
        %v2928 = vpop.f32.mrf.mxu0
        %v2929 = vadd.f32 0.0, %v2928
        %2930 = vmatmul.bf16.gmra.mxu0 %v2871
        %v2931 = vpop.f32.mrf.mxu0
        %v2932 = vadd.f32 0.0, %v2931
        %v2933 = vpop.f32.mrf.mxu0
        %v2934 = vadd.f32 0.0, %v2933
        %2935 = vmatmul.bf16.gmra.mxu0 %v2874
        %v2936 = vpop.f32.mrf.mxu0
        %v2937 = vadd.f32 0.0, %v2936
        %v2938 = vpop.f32.mrf.mxu0
        %v2939 = vadd.f32 0.0, %v2938
        %2940 = vmatmul.bf16.gmra.mxu0 %v2877
        %v2941 = vpop.f32.mrf.mxu0
        %v2942 = vadd.f32 0.0, %v2941
        %v2943 = vpop.f32.mrf.mxu0
        %v2944 = vadd.f32 0.0, %v2943
        %2945 = vmatmul.bf16.gmra.mxu0 %v2880
        %v2946 = vpop.f32.mrf.mxu0
        %v2947 = vadd.f32 0.0, %v2946
        %v2948 = vpop.f32.mrf.mxu0
        %v2949 = vadd.f32 0.0, %v2948
        %2950 = vmatmul.bf16.gmra.mxu0 %v2883
        %v2951 = vpop.f32.mrf.mxu0
        %v2952 = vadd.f32 0.0, %v2951
        %v2953 = vpop.f32.mrf.mxu0
        %v2954 = vadd.f32 0.0, %v2953
        %2955 = vmatmul.bf16.gmra.mxu0 %v2886
        %v2956 = vpop.f32.mrf.mxu0
        %v2957 = vadd.f32 0.0, %v2956
        %v2958 = vpop.f32.mrf.mxu0
        %v2959 = vadd.f32 0.0, %v2958
        %2960 = vmatmul.bf16.gmra.mxu0 %v2889
        %v2961 = vpop.f32.mrf.mxu0
        %v2962 = vadd.f32 0.0, %v2961
        %v2963 = vpop.f32.mrf.mxu0
        %v2964 = vadd.f32 0.0, %v2963
        %2965 = vmatmul.bf16.gmra.mxu0 %v2892
        %v2966 = vpop.f32.mrf.mxu0
        %v2967 = vadd.f32 0.0, %v2966
        %v2968 = vpop.f32.mrf.mxu0
        %v2969 = vadd.f32 0.0, %v2968
        %2970 = vmatmul.bf16.gmra.mxu0 %v2895
        %v2971 = vpop.f32.mrf.mxu0
        %v2972 = vadd.f32 0.0, %v2971
        %v2973 = vpop.f32.mrf.mxu0
        %v2974 = vadd.f32 0.0, %v2973
        %2975 = vmatmul.bf16.gmra.mxu0 %v2898
        %v2976 = vpop.f32.mrf.mxu0
        %v2977 = vadd.f32 0.0, %v2976
        %v2978 = vpop.f32.mrf.mxu0
        %v2979 = vadd.f32 0.0, %v2978
        %2980 = vmatmul.bf16.gmra.mxu0 %v2901
        %v2981 = vpop.f32.mrf.mxu0
        %v2982 = vadd.f32 0.0, %v2981
        %v2983 = vpop.f32.mrf.mxu0
        %v2984 = vadd.f32 0.0, %v2983
        %2985 = vmatmul.bf16.gmra.mxu0 %v2904
        %v2986 = vpop.f32.mrf.mxu0
        %v2987 = vadd.f32 0.0, %v2986
        %v2988 = vpop.f32.mrf.mxu0
        %v2989 = vadd.f32 0.0, %v2988
        %2990 = vmatmul.bf16.gmra.mxu0 %v2907
        %v2991 = vpop.f32.mrf.mxu0
        %v2992 = vadd.f32 0.0, %v2991
        %v2993 = vpop.f32.mrf.mxu0
        %v2994 = vadd.f32 0.0, %v2993
        %2995 = vmatmul.bf16.gmra.mxu0 %v2910
        %v2996 = vpop.f32.mrf.mxu0
        %v2997 = vadd.f32 0.0, %v2996
        %v2998 = vpop.f32.mrf.mxu0
        %v2999 = vadd.f32 0.0, %v2998
        %3000 = vdwg.mxu0
        %3001 = vmatpush.bf16.msra.mxu0 0
        %3002 = vmatpush.bf16.msra.mxu0 0
        %3003 = vmatpush.bf16.msra.mxu0 0
        %3004 = vmatpush.bf16.msra.mxu0 0
        %3005 = vmatpush.bf16.msra.mxu0 0
        %3006 = vmatpush.bf16.msra.mxu0 0
        %3007 = vmatpush.bf16.msra.mxu0 %v2835
        %3008 = vmatpush.bf16.msra.mxu0 %v2833
        %3009 = vmatmul.bf16.gmra.mxu0 %v2865
        %v3010 = vpop.f32.mrf.mxu0
        %v3011 = vadd.f32 0.0, %v3010
        %v3012 = vpop.f32.mrf.mxu0
        %v3013 = vadd.f32 0.0, %v3012
        %3014 = vmatmul.bf16.gmra.mxu0 %v2868
        %v3015 = vpop.f32.mrf.mxu0
        %v3016 = vadd.f32 0.0, %v3015
        %v3017 = vpop.f32.mrf.mxu0
        %v3018 = vadd.f32 0.0, %v3017
        %3019 = vmatmul.bf16.gmra.mxu0 %v2871
        %v3020 = vpop.f32.mrf.mxu0
        %v3021 = vadd.f32 0.0, %v3020
        %v3022 = vpop.f32.mrf.mxu0
        %v3023 = vadd.f32 0.0, %v3022
        %3024 = vmatmul.bf16.gmra.mxu0 %v2874
        %v3025 = vpop.f32.mrf.mxu0
        %v3026 = vadd.f32 0.0, %v3025
        %v3027 = vpop.f32.mrf.mxu0
        %v3028 = vadd.f32 0.0, %v3027
        %3029 = vmatmul.bf16.gmra.mxu0 %v2877
        %v3030 = vpop.f32.mrf.mxu0
        %v3031 = vadd.f32 0.0, %v3030
        %v3032 = vpop.f32.mrf.mxu0
        %v3033 = vadd.f32 0.0, %v3032
        %3034 = vmatmul.bf16.gmra.mxu0 %v2880
        %v3035 = vpop.f32.mrf.mxu0
        %v3036 = vadd.f32 0.0, %v3035
        %v3037 = vpop.f32.mrf.mxu0
        %v3038 = vadd.f32 0.0, %v3037
        %3039 = vmatmul.bf16.gmra.mxu0 %v2883
        %v3040 = vpop.f32.mrf.mxu0
        %v3041 = vadd.f32 0.0, %v3040
        %v3042 = vpop.f32.mrf.mxu0
        %v3043 = vadd.f32 0.0, %v3042
        %3044 = vmatmul.bf16.gmra.mxu0 %v2886
        %v3045 = vpop.f32.mrf.mxu0
        %v3046 = vadd.f32 0.0, %v3045
        %v3047 = vpop.f32.mrf.mxu0
        %v3048 = vadd.f32 0.0, %v3047
        %3049 = vmatmul.bf16.gmra.mxu0 %v2889
        %v3050 = vpop.f32.mrf.mxu0
        %v3051 = vadd.f32 0.0, %v3050
        %v3052 = vpop.f32.mrf.mxu0
        %v3053 = vadd.f32 0.0, %v3052
        %3054 = vmatmul.bf16.gmra.mxu0 %v2892
        %v3055 = vpop.f32.mrf.mxu0
        %v3056 = vadd.f32 0.0, %v3055
        %v3057 = vpop.f32.mrf.mxu0
        %v3058 = vadd.f32 0.0, %v3057
        %3059 = vmatmul.bf16.gmra.mxu0 %v2895
        %v3060 = vpop.f32.mrf.mxu0
        %v3061 = vadd.f32 0.0, %v3060
        %v3062 = vpop.f32.mrf.mxu0
        %v3063 = vadd.f32 0.0, %v3062
        %3064 = vmatmul.bf16.gmra.mxu0 %v2898
        %v3065 = vpop.f32.mrf.mxu0
        %v3066 = vadd.f32 0.0, %v3065
        %v3067 = vpop.f32.mrf.mxu0
        %v3068 = vadd.f32 0.0, %v3067
        %3069 = vmatmul.bf16.gmra.mxu0 %v2901
        %v3070 = vpop.f32.mrf.mxu0
        %v3071 = vadd.f32 0.0, %v3070
        %v3072 = vpop.f32.mrf.mxu0
        %v3073 = vadd.f32 0.0, %v3072
        %3074 = vmatmul.bf16.gmra.mxu0 %v2904
        %v3075 = vpop.f32.mrf.mxu0
        %v3076 = vadd.f32 0.0, %v3075
        %v3077 = vpop.f32.mrf.mxu0
        %v3078 = vadd.f32 0.0, %v3077
        %3079 = vmatmul.bf16.gmra.mxu0 %v2907
        %v3080 = vpop.f32.mrf.mxu0
        %v3081 = vadd.f32 0.0, %v3080
        %v3082 = vpop.f32.mrf.mxu0
        %v3083 = vadd.f32 0.0, %v3082
        %3084 = vmatmul.bf16.gmra.mxu0 %v2910
        %v3085 = vpop.f32.mrf.mxu0
        %v3086 = vadd.f32 0.0, %v3085
        %v3087 = vpop.f32.mrf.mxu0
        %v3088 = vadd.f32 0.0, %v3087
        %3089 = vdwg.mxu0
        %v3090 = vsub.f32 0.4, %v2922
        %v3091 = vsub.f32 0.4, %v3011
        %v3092 = vsub.f32 0.4, %v2924
        %v3093 = vsub.f32 0.4, %v3013
        %v3094 = vsub.f32 0.4, %v2927
        %v3095 = vsub.f32 0.4, %v3016
        %v3096 = vsub.f32 0.4, %v2929
        %v3097 = vsub.f32 0.4, %v3018
        %v3098 = vsub.f32 0.4, %v2932
        %v3099 = vsub.f32 0.4, %v3021
        %v3100 = vsub.f32 0.4, %v2934
        %v3101 = vsub.f32 0.4, %v3023
        %v3102 = vsub.f32 0.4, %v2937
        %v3103 = vsub.f32 0.4, %v3026
        %v3104 = vsub.f32 0.4, %v2939
        %v3105 = vsub.f32 0.4, %v3028
        %v3106 = vsub.f32 0.4, %v2942
        %v3107 = vsub.f32 0.4, %v3031
        %v3108 = vsub.f32 0.4, %v2944
        %v3109 = vsub.f32 0.4, %v3033
        %v3110 = vsub.f32 0.4, %v2947
        %v3111 = vsub.f32 0.4, %v3036
        %v3112 = vsub.f32 0.4, %v2949
        %v3113 = vsub.f32 0.4, %v3038
        %v3114 = vsub.f32 0.4, %v2952
        %v3115 = vsub.f32 0.4, %v3041
        %v3116 = vsub.f32 0.4, %v2954
        %v3117 = vsub.f32 0.4, %v3043
        %v3118 = vsub.f32 0.4, %v2957
        %v3119 = vsub.f32 0.4, %v3046
        %v3120 = vsub.f32 0.4, %v2959
        %v3121 = vsub.f32 0.4, %v3048
        %v3122 = vsub.f32 0.4, %v2962
        %v3123 = vsub.f32 0.4, %v3051
        %v3124 = vsub.f32 0.4, %v2964
        %v3125 = vsub.f32 0.4, %v3053
        %v3126 = vsub.f32 0.4, %v2967
        %v3127 = vsub.f32 0.4, %v3056
        %v3128 = vsub.f32 0.4, %v2969
        %v3129 = vsub.f32 0.4, %v3058
        %v3130 = vsub.f32 0.4, %v2972
        %v3131 = vsub.f32 0.4, %v3061
        %v3132 = vsub.f32 0.4, %v2974
        %v3133 = vsub.f32 0.4, %v3063
        %v3134 = vsub.f32 0.4, %v2977
        %v3135 = vsub.f32 0.4, %v3066
        %v3136 = vsub.f32 0.4, %v2979
        %v3137 = vsub.f32 0.4, %v3068
        %v3138 = vsub.f32 0.4, %v2982
        %v3139 = vsub.f32 0.4, %v3071
        %v3140 = vsub.f32 0.4, %v2984
        %v3141 = vsub.f32 0.4, %v3073
        %v3142 = vsub.f32 0.4, %v2987
        %v3143 = vsub.f32 0.4, %v3076
        %v3144 = vsub.f32 0.4, %v2989
        %v3145 = vsub.f32 0.4, %v3078
        %v3146 = vsub.f32 0.4, %v2992
        %v3147 = vsub.f32 0.4, %v3081
        %v3148 = vsub.f32 0.4, %v2994
        %v3149 = vsub.f32 0.4, %v3083
        %v3150 = vsub.f32 0.4, %v2997
        %v3151 = vsub.f32 0.4, %v3086
        %v3152 = vsub.f32 0.4, %v2999
        %v3153 = vsub.f32 0.4, %v3088
        %v3154 = vsel %vm996, %v3090, %v2922
        %v3155 = vsel %vm997, %v3091, %v3011
        %v3156 = vsel %vm996, %v3092, %v2924
        %v3157 = vsel %vm997, %v3093, %v3013
        %v3158 = vsel %vm996, %v3094, %v2927
        %v3159 = vsel %vm997, %v3095, %v3016
        %v3160 = vsel %vm996, %v3096, %v2929
        %v3161 = vsel %vm997, %v3097, %v3018
        %v3162 = vsel %vm996, %v3098, %v2932
        %v3163 = vsel %vm997, %v3099, %v3021
        %v3164 = vsel %vm996, %v3100, %v2934
        %v3165 = vsel %vm997, %v3101, %v3023
        %v3166 = vsel %vm996, %v3102, %v2937
        %v3167 = vsel %vm997, %v3103, %v3026
        %v3168 = vsel %vm996, %v3104, %v2939
        %v3169 = vsel %vm997, %v3105, %v3028
        %v3170 = vsel %vm996, %v3106, %v2942
        %v3171 = vsel %vm997, %v3107, %v3031
        %v3172 = vsel %vm996, %v3108, %v2944
        %v3173 = vsel %vm997, %v3109, %v3033
        %v3174 = vsel %vm996, %v3110, %v2947
        %v3175 = vsel %vm997, %v3111, %v3036
        %v3176 = vsel %vm996, %v3112, %v2949
        %v3177 = vsel %vm997, %v3113, %v3038
        %v3178 = vsel %vm996, %v3114, %v2952
        %v3179 = vsel %vm997, %v3115, %v3041
        %v3180 = vsel %vm996, %v3116, %v2954
        %v3181 = vsel %vm997, %v3117, %v3043
        %v3182 = vsel %vm996, %v3118, %v2957
        %v3183 = vsel %vm997, %v3119, %v3046
        %v3184 = vsel %vm996, %v3120, %v2959
        %v3185 = vsel %vm997, %v3121, %v3048
        %v3186 = vsel %vm996, %v3122, %v2962
        %v3187 = vsel %vm997, %v3123, %v3051
        %v3188 = vsel %vm996, %v3124, %v2964
        %v3189 = vsel %vm997, %v3125, %v3053
        %v3190 = vsel %vm996, %v3126, %v2967
        %v3191 = vsel %vm997, %v3127, %v3056
        %v3192 = vsel %vm996, %v3128, %v2969
        %v3193 = vsel %vm997, %v3129, %v3058
        %v3194 = vsel %vm996, %v3130, %v2972
        %v3195 = vsel %vm997, %v3131, %v3061
        %v3196 = vsel %vm996, %v3132, %v2974
        %v3197 = vsel %vm997, %v3133, %v3063
        %v3198 = vsel %vm996, %v3134, %v2977
        %v3199 = vsel %vm997, %v3135, %v3066
        %v3200 = vsel %vm996, %v3136, %v2979
        %v3201 = vsel %vm997, %v3137, %v3068
        %v3202 = vsel %vm996, %v3138, %v2982
        %v3203 = vsel %vm997, %v3139, %v3071
        %v3204 = vsel %vm996, %v3140, %v2984
        %v3205 = vsel %vm997, %v3141, %v3073
        %v3206 = vsel %vm996, %v3142, %v2987
        %v3207 = vsel %vm997, %v3143, %v3076
        %v3208 = vsel %vm996, %v3144, %v2989
        %v3209 = vsel %vm997, %v3145, %v3078
        %v3210 = vsel %vm996, %v3146, %v2992
        %v3211 = vsel %vm997, %v3147, %v3081
        %v3212 = vsel %vm996, %v3148, %v2994
        %v3213 = vsel %vm997, %v3149, %v3083
        %v3214 = vsel %vm996, %v3150, %v2997
        %v3215 = vsel %vm997, %v3151, %v3086
        %v3216 = vsel %vm996, %v3152, %v2999
        %v3217 = vsel %vm997, %v3153, %v3088
        %v3218 = vmax.f32 %v3154, 0.0
        %v3219 = vmax.f32 %v3155, 0.0
        %v3220 = vmax.f32 %v3156, 0.0
        %v3221 = vmax.f32 %v3157, 0.0
        %v3222 = vmax.f32 %v3158, 0.0
        %v3223 = vmax.f32 %v3159, 0.0
        %v3224 = vmax.f32 %v3160, 0.0
        %v3225 = vmax.f32 %v3161, 0.0
        %v3226 = vmax.f32 %v3162, 0.0
        %v3227 = vmax.f32 %v3163, 0.0
        %v3228 = vmax.f32 %v3164, 0.0
        %v3229 = vmax.f32 %v3165, 0.0
        %v3230 = vmax.f32 %v3166, 0.0
        %v3231 = vmax.f32 %v3167, 0.0
        %v3232 = vmax.f32 %v3168, 0.0
        %v3233 = vmax.f32 %v3169, 0.0
        %v3234 = vmax.f32 %v3170, 0.0
        %v3235 = vmax.f32 %v3171, 0.0
        %v3236 = vmax.f32 %v3172, 0.0
        %v3237 = vmax.f32 %v3173, 0.0
        %v3238 = vmax.f32 %v3174, 0.0
        %v3239 = vmax.f32 %v3175, 0.0
        %v3240 = vmax.f32 %v3176, 0.0
        %v3241 = vmax.f32 %v3177, 0.0
        %v3242 = vmax.f32 %v3178, 0.0
        %v3243 = vmax.f32 %v3179, 0.0
        %v3244 = vmax.f32 %v3180, 0.0
        %v3245 = vmax.f32 %v3181, 0.0
        %v3246 = vmax.f32 %v3182, 0.0
        %v3247 = vmax.f32 %v3183, 0.0
        %v3248 = vmax.f32 %v3184, 0.0
        %v3249 = vmax.f32 %v3185, 0.0
        %v3250 = vmax.f32 %v3186, 0.0
        %v3251 = vmax.f32 %v3187, 0.0
        %v3252 = vmax.f32 %v3188, 0.0
        %v3253 = vmax.f32 %v3189, 0.0
        %v3254 = vmax.f32 %v3190, 0.0
        %v3255 = vmax.f32 %v3191, 0.0
        %v3256 = vmax.f32 %v3192, 0.0
        %v3257 = vmax.f32 %v3193, 0.0
        %v3258 = vmax.f32 %v3194, 0.0
        %v3259 = vmax.f32 %v3195, 0.0
        %v3260 = vmax.f32 %v3196, 0.0
        %v3261 = vmax.f32 %v3197, 0.0
        %v3262 = vmax.f32 %v3198, 0.0
        %v3263 = vmax.f32 %v3199, 0.0
        %v3264 = vmax.f32 %v3200, 0.0
        %v3265 = vmax.f32 %v3201, 0.0
        %v3266 = vmax.f32 %v3202, 0.0
        %v3267 = vmax.f32 %v3203, 0.0
        %v3268 = vmax.f32 %v3204, 0.0
        %v3269 = vmax.f32 %v3205, 0.0
        %v3270 = vmax.f32 %v3206, 0.0
        %v3271 = vmax.f32 %v3207, 0.0
        %v3272 = vmax.f32 %v3208, 0.0
        %v3273 = vmax.f32 %v3209, 0.0
        %v3274 = vmax.f32 %v3210, 0.0
        %v3275 = vmax.f32 %v3211, 0.0
        %v3276 = vmax.f32 %v3212, 0.0
        %v3277 = vmax.f32 %v3213, 0.0
        %v3278 = vmax.f32 %v3214, 0.0
        %v3279 = vmax.f32 %v3215, 0.0
        %v3280 = vmax.f32 %v3216, 0.0
        %v3281 = vmax.f32 %v3217, 0.0
        %v3282 = vmul.f32 %v3218, %v1129
        %v3283 = vmul.f32 %v3219, %v1129
        %v3284 = vmul.f32 %v3220, %v1134
        %v3285 = vmul.f32 %v3221, %v1134
        %v3286 = vmul.f32 %v3222, %v1139
        %v3287 = vmul.f32 %v3223, %v1139
        %v3288 = vmul.f32 %v3224, %v1144
        %v3289 = vmul.f32 %v3225, %v1144
        %v3290 = vmul.f32 %v3226, %v1149
        %v3291 = vmul.f32 %v3227, %v1149
        %v3292 = vmul.f32 %v3228, %v1154
        %v3293 = vmul.f32 %v3229, %v1154
        %v3294 = vmul.f32 %v3230, %v1159
        %v3295 = vmul.f32 %v3231, %v1159
        %v3296 = vmul.f32 %v3232, %v1164
        %v3297 = vmul.f32 %v3233, %v1164
        %v3298 = vmul.f32 %v3234, %v1169
        %v3299 = vmul.f32 %v3235, %v1169
        %v3300 = vmul.f32 %v3236, %v1174
        %v3301 = vmul.f32 %v3237, %v1174
        %v3302 = vmul.f32 %v3238, %v1179
        %v3303 = vmul.f32 %v3239, %v1179
        %v3304 = vmul.f32 %v3240, %v1184
        %v3305 = vmul.f32 %v3241, %v1184
        %v3306 = vmul.f32 %v3242, %v1189
        %v3307 = vmul.f32 %v3243, %v1189
        %v3308 = vmul.f32 %v3244, %v1194
        %v3309 = vmul.f32 %v3245, %v1194
        %v3310 = vmul.f32 %v3246, %v1199
        %v3311 = vmul.f32 %v3247, %v1199
        %v3312 = vmul.f32 %v3248, %v1204
        %v3313 = vmul.f32 %v3249, %v1204
        %v3314 = vmul.f32 %v3250, %v1209
        %v3315 = vmul.f32 %v3251, %v1209
        %v3316 = vmul.f32 %v3252, %v1214
        %v3317 = vmul.f32 %v3253, %v1214
        %v3318 = vmul.f32 %v3254, %v1219
        %v3319 = vmul.f32 %v3255, %v1219
        %v3320 = vmul.f32 %v3256, %v1224
        %v3321 = vmul.f32 %v3257, %v1224
        %v3322 = vmul.f32 %v3258, %v1229
        %v3323 = vmul.f32 %v3259, %v1229
        %v3324 = vmul.f32 %v3260, %v1234
        %v3325 = vmul.f32 %v3261, %v1234
        %v3326 = vmul.f32 %v3262, %v1239
        %v3327 = vmul.f32 %v3263, %v1239
        %v3328 = vmul.f32 %v3264, %v1244
        %v3329 = vmul.f32 %v3265, %v1244
        %v3330 = vmul.f32 %v3266, %v1249
        %v3331 = vmul.f32 %v3267, %v1249
        %v3332 = vmul.f32 %v3268, %v1254
        %v3333 = vmul.f32 %v3269, %v1254
        %v3334 = vmul.f32 %v3270, %v1259
        %v3335 = vmul.f32 %v3271, %v1259
        %v3336 = vmul.f32 %v3272, %v1264
        %v3337 = vmul.f32 %v3273, %v1264
        %v3338 = vmul.f32 %v3274, %v1269
        %v3339 = vmul.f32 %v3275, %v1269
        %v3340 = vmul.f32 %v3276, %v1274
        %v3341 = vmul.f32 %v3277, %v1274
        %v3342 = vmul.f32 %v3278, %v1279
        %v3343 = vmul.f32 %v3279, %v1279
        %v3344 = vmul.f32 %v3280, %v1284
        %v3345 = vmul.f32 %v3281, %v1284
        %v3346 = vadd.f32 %v3282, %v3284
        %v3347 = vadd.f32 %v3346, %v3286
        %v3348 = vadd.f32 %v3347, %v3288
        %v3349 = vadd.f32 %v3348, %v3290
        %v3350 = vadd.f32 %v3349, %v3292
        %v3351 = vadd.f32 %v3350, %v3294
        %v3352 = vadd.f32 %v3351, %v3296
        %v3353 = vadd.f32 %v3352, %v3298
        %v3354 = vadd.f32 %v3353, %v3300
        %v3355 = vadd.f32 %v3354, %v3302
        %v3356 = vadd.f32 %v3355, %v3304
        %v3357 = vadd.f32 %v3356, %v3306
        %v3358 = vadd.f32 %v3357, %v3308
        %v3359 = vadd.f32 %v3358, %v3310
        %v3360 = vadd.f32 %v3359, %v3312
        %v3361 = vadd.f32 %v3360, %v3314
        %v3362 = vadd.f32 %v3361, %v3316
        %v3363 = vadd.f32 %v3362, %v3318
        %v3364 = vadd.f32 %v3363, %v3320
        %v3365 = vadd.f32 %v3364, %v3322
        %v3366 = vadd.f32 %v3365, %v3324
        %v3367 = vadd.f32 %v3366, %v3326
        %v3368 = vadd.f32 %v3367, %v3328
        %v3369 = vadd.f32 %v3368, %v3330
        %v3370 = vadd.f32 %v3369, %v3332
        %v3371 = vadd.f32 %v3370, %v3334
        %v3372 = vadd.f32 %v3371, %v3336
        %v3373 = vadd.f32 %v3372, %v3338
        %v3374 = vadd.f32 %v3373, %v3340
        %v3375 = vadd.f32 %v3374, %v3342
        %v3376 = vadd.f32 %v3375, %v3344
        %v3377 = vrot.slane %v3376, 4
        %v3378 = vadd.f32 %v3376, %v3377
        %v3379 = vrot.slane %v3378, 2
        %v3380 = vadd.f32 %v3378, %v3379
        %v3381 = vrot.slane %v3380, 1
        %v3382 = vadd.f32 %v3380, %v3381
        %v3383 = vadd.f32 %v3283, %v3285
        %v3384 = vadd.f32 %v3383, %v3287
        %v3385 = vadd.f32 %v3384, %v3289
        %v3386 = vadd.f32 %v3385, %v3291
        %v3387 = vadd.f32 %v3386, %v3293
        %v3388 = vadd.f32 %v3387, %v3295
        %v3389 = vadd.f32 %v3388, %v3297
        %v3390 = vadd.f32 %v3389, %v3299
        %v3391 = vadd.f32 %v3390, %v3301
        %v3392 = vadd.f32 %v3391, %v3303
        %v3393 = vadd.f32 %v3392, %v3305
        %v3394 = vadd.f32 %v3393, %v3307
        %v3395 = vadd.f32 %v3394, %v3309
        %v3396 = vadd.f32 %v3395, %v3311
        %v3397 = vadd.f32 %v3396, %v3313
        %v3398 = vadd.f32 %v3397, %v3315
        %v3399 = vadd.f32 %v3398, %v3317
        %v3400 = vadd.f32 %v3399, %v3319
        %v3401 = vadd.f32 %v3400, %v3321
        %v3402 = vadd.f32 %v3401, %v3323
        %v3403 = vadd.f32 %v3402, %v3325
        %v3404 = vadd.f32 %v3403, %v3327
        %v3405 = vadd.f32 %v3404, %v3329
        %v3406 = vadd.f32 %v3405, %v3331
        %v3407 = vadd.f32 %v3406, %v3333
        %v3408 = vadd.f32 %v3407, %v3335
        %v3409 = vadd.f32 %v3408, %v3337
        %v3410 = vadd.f32 %v3409, %v3339
        %v3411 = vadd.f32 %v3410, %v3341
        %v3412 = vadd.f32 %v3411, %v3343
        %v3413 = vadd.f32 %v3412, %v3345
        %v3414 = vrot.slane %v3413, 4
        %v3415 = vadd.f32 %v3413, %v3414
        %v3416 = vrot.slane %v3415, 2
        %v3417 = vadd.f32 %v3415, %v3416
        %v3418 = vrot.slane %v3417, 1
        %v3419 = vadd.f32 %v3417, %v3418
        %v3420 = vmul.f32 %v3382, %v273
        %v3421 = vmul.f32 %v3419, %v274
        %v3422 = vmul.f32 %v3382, %v1428
        %v3423 = vmul.f32 %v3419, %v1429
        %v3428 = vunpack.c.l.b16 %v2813
        %v3429 = vunpack.c.h.b16 %v2813
        %v3430 = vunpack.c.l.b16 %v2815
        %v3431 = vunpack.c.h.b16 %v2815
        %v3432 = vunpack.c.l.b16 %v2817
        %v3433 = vunpack.c.h.b16 %v2817
        %v3434 = vunpack.c.l.b16 %v2819
        %v3435 = vunpack.c.h.b16 %v2819
        %v3436 = vpack.c.b16 %v3430, %v3428
        %v3437 = vpack.c.b16 %v3431, %v3429
        %v3438 = vpack.c.b16 %v3434, %v3432
        %v3439 = vpack.c.b16 %v3435, %v3433
        %3444 = vxpose.binary.xlu0.c.b16.start [1/16] %v3437, %v3436, 128
        %3445 = vxpose.binary.xlu0.c.b16.cont [2/16] %v3439, %v3438, 128
        %3446 = vxpose.binary.xlu0.c.b16.cont [3/16] 0, 0, 128
        %3447 = vxpose.binary.xlu0.c.b16.cont [4/16] 0, 0, 128
        %3448 = vxpose.binary.xlu0.c.b16.cont [5/16] 0, 0, 128
        %3449 = vxpose.binary.xlu0.c.b16.cont [6/16] 0, 0, 128
        %3450 = vxpose.binary.xlu0.c.b16.cont [7/16] 0, 0, 128
        %3451 = vxpose.binary.xlu0.c.b16.end [8/16] 0, 0, 128
        %v3452 = vpop.trf.xlu0
        %v3453 = vpop.trf.xlu0
        %v3454 = vpop.trf.xlu0
        %v3455 = vpop.trf.xlu0
        %v3456 = vpop.trf.xlu0
        %v3457 = vpop.trf.xlu0
        %v3458 = vpop.trf.xlu0
        %v3459 = vpop.trf.xlu0
        %v3460 = vpop.trf.xlu0
        %v3461 = vpop.trf.xlu0
        %v3462 = vpop.trf.xlu0
        %v3463 = vpop.trf.xlu0
        %v3464 = vpop.trf.xlu0
        %v3465 = vpop.trf.xlu0
        %v3466 = vpop.trf.xlu0
        %v3467 = vpop.trf.xlu0
        %v3469 = vsel %vm699, %v3452, 0
        %v3472 = vsel %vm699, %v3454, 0
        %v3475 = vsel %vm699, %v3456, 0
        %v3478 = vsel %vm699, %v3458, 0
        %v3481 = vsel %vm699, %v3460, 0
        %v3484 = vsel %vm699, %v3462, 0
        %v3487 = vsel %vm699, %v3464, 0
        %v3490 = vsel %vm699, %v3466, 0
        %v3493 = vsel %vm699, %v3453, 0
        %v3496 = vsel %vm699, %v3455, 0
        %v3499 = vsel %vm699, %v3457, 0
        %v3502 = vsel %vm699, %v3459, 0
        %v3505 = vsel %vm699, %v3461, 0
        %v3508 = vsel %vm699, %v3463, 0
        %v3511 = vsel %vm699, %v3465, 0
        %v3514 = vsel %vm699, %v3467, 0
        %3516 = vmatpush.bf16.msra.mxu0 0
        %3517 = vmatpush.bf16.msra.mxu0 0
        %3518 = vmatpush.bf16.msra.mxu0 0
        %3519 = vmatpush.bf16.msra.mxu0 0
        %3520 = vmatpush.bf16.msra.mxu0 0
        %3521 = vmatpush.bf16.msra.mxu0 0
        %3522 = vmatpush.bf16.msra.mxu0 %v3438
        %3523 = vmatpush.bf16.msra.mxu0 %v3436
        %3524 = vmatmul.bf16.gmra.mxu0 %v3469
        %v3525 = vpop.f32.mrf.mxu0
        %v3526 = vadd.f32 0.0, %v3525
        %v3527 = vpop.f32.mrf.mxu0
        %v3528 = vadd.f32 0.0, %v3527
        %3529 = vmatmul.bf16.gmra.mxu0 %v3472
        %v3530 = vpop.f32.mrf.mxu0
        %v3531 = vadd.f32 0.0, %v3530
        %v3532 = vpop.f32.mrf.mxu0
        %v3533 = vadd.f32 0.0, %v3532
        %3534 = vmatmul.bf16.gmra.mxu0 %v3475
        %v3535 = vpop.f32.mrf.mxu0
        %v3536 = vadd.f32 0.0, %v3535
        %v3537 = vpop.f32.mrf.mxu0
        %v3538 = vadd.f32 0.0, %v3537
        %3539 = vmatmul.bf16.gmra.mxu0 %v3478
        %v3540 = vpop.f32.mrf.mxu0
        %v3541 = vadd.f32 0.0, %v3540
        %v3542 = vpop.f32.mrf.mxu0
        %v3543 = vadd.f32 0.0, %v3542
        %3544 = vmatmul.bf16.gmra.mxu0 %v3481
        %v3545 = vpop.f32.mrf.mxu0
        %v3546 = vadd.f32 0.0, %v3545
        %v3547 = vpop.f32.mrf.mxu0
        %v3548 = vadd.f32 0.0, %v3547
        %3549 = vmatmul.bf16.gmra.mxu0 %v3484
        %v3550 = vpop.f32.mrf.mxu0
        %v3551 = vadd.f32 0.0, %v3550
        %v3552 = vpop.f32.mrf.mxu0
        %v3553 = vadd.f32 0.0, %v3552
        %3554 = vmatmul.bf16.gmra.mxu0 %v3487
        %v3555 = vpop.f32.mrf.mxu0
        %v3556 = vadd.f32 0.0, %v3555
        %v3557 = vpop.f32.mrf.mxu0
        %v3558 = vadd.f32 0.0, %v3557
        %3559 = vmatmul.bf16.gmra.mxu0 %v3490
        %v3560 = vpop.f32.mrf.mxu0
        %v3561 = vadd.f32 0.0, %v3560
        %v3562 = vpop.f32.mrf.mxu0
        %v3563 = vadd.f32 0.0, %v3562
        %3564 = vmatmul.bf16.gmra.mxu0 %v3493
        %v3565 = vpop.f32.mrf.mxu0
        %v3566 = vadd.f32 0.0, %v3565
        %v3567 = vpop.f32.mrf.mxu0
        %v3568 = vadd.f32 0.0, %v3567
        %3569 = vmatmul.bf16.gmra.mxu0 %v3496
        %v3570 = vpop.f32.mrf.mxu0
        %v3571 = vadd.f32 0.0, %v3570
        %v3572 = vpop.f32.mrf.mxu0
        %v3573 = vadd.f32 0.0, %v3572
        %3574 = vmatmul.bf16.gmra.mxu0 %v3499
        %v3575 = vpop.f32.mrf.mxu0
        %v3576 = vadd.f32 0.0, %v3575
        %v3577 = vpop.f32.mrf.mxu0
        %v3578 = vadd.f32 0.0, %v3577
        %3579 = vmatmul.bf16.gmra.mxu0 %v3502
        %v3580 = vpop.f32.mrf.mxu0
        %v3581 = vadd.f32 0.0, %v3580
        %v3582 = vpop.f32.mrf.mxu0
        %v3583 = vadd.f32 0.0, %v3582
        %3584 = vmatmul.bf16.gmra.mxu0 %v3505
        %v3585 = vpop.f32.mrf.mxu0
        %v3586 = vadd.f32 0.0, %v3585
        %v3587 = vpop.f32.mrf.mxu0
        %v3588 = vadd.f32 0.0, %v3587
        %3589 = vmatmul.bf16.gmra.mxu0 %v3508
        %v3590 = vpop.f32.mrf.mxu0
        %v3591 = vadd.f32 0.0, %v3590
        %v3592 = vpop.f32.mrf.mxu0
        %v3593 = vadd.f32 0.0, %v3592
        %3594 = vmatmul.bf16.gmra.mxu0 %v3511
        %v3595 = vpop.f32.mrf.mxu0
        %v3596 = vadd.f32 0.0, %v3595
        %v3597 = vpop.f32.mrf.mxu0
        %v3598 = vadd.f32 0.0, %v3597
        %3599 = vmatmul.bf16.gmra.mxu0 %v3514
        %v3600 = vpop.f32.mrf.mxu0
        %v3601 = vadd.f32 0.0, %v3600
        %v3602 = vpop.f32.mrf.mxu0
        %v3603 = vadd.f32 0.0, %v3602
        %3604 = vdwg.mxu0
        %3605 = vmatpush.bf16.msra.mxu0 0
        %3606 = vmatpush.bf16.msra.mxu0 0
        %3607 = vmatpush.bf16.msra.mxu0 0
        %3608 = vmatpush.bf16.msra.mxu0 0
        %3609 = vmatpush.bf16.msra.mxu0 0
        %3610 = vmatpush.bf16.msra.mxu0 0
        %3611 = vmatpush.bf16.msra.mxu0 %v3439
        %3612 = vmatpush.bf16.msra.mxu0 %v3437
        %3613 = vmatmul.bf16.gmra.mxu0 %v3469
        %v3614 = vpop.f32.mrf.mxu0
        %v3615 = vadd.f32 0.0, %v3614
        %v3616 = vpop.f32.mrf.mxu0
        %v3617 = vadd.f32 0.0, %v3616
        %3618 = vmatmul.bf16.gmra.mxu0 %v3472
        %v3619 = vpop.f32.mrf.mxu0
        %v3620 = vadd.f32 0.0, %v3619
        %v3621 = vpop.f32.mrf.mxu0
        %v3622 = vadd.f32 0.0, %v3621
        %3623 = vmatmul.bf16.gmra.mxu0 %v3475
        %v3624 = vpop.f32.mrf.mxu0
        %v3625 = vadd.f32 0.0, %v3624
        %v3626 = vpop.f32.mrf.mxu0
        %v3627 = vadd.f32 0.0, %v3626
        %3628 = vmatmul.bf16.gmra.mxu0 %v3478
        %v3629 = vpop.f32.mrf.mxu0
        %v3630 = vadd.f32 0.0, %v3629
        %v3631 = vpop.f32.mrf.mxu0
        %v3632 = vadd.f32 0.0, %v3631
        %3633 = vmatmul.bf16.gmra.mxu0 %v3481
        %v3634 = vpop.f32.mrf.mxu0
        %v3635 = vadd.f32 0.0, %v3634
        %v3636 = vpop.f32.mrf.mxu0
        %v3637 = vadd.f32 0.0, %v3636
        %3638 = vmatmul.bf16.gmra.mxu0 %v3484
        %v3639 = vpop.f32.mrf.mxu0
        %v3640 = vadd.f32 0.0, %v3639
        %v3641 = vpop.f32.mrf.mxu0
        %v3642 = vadd.f32 0.0, %v3641
        %3643 = vmatmul.bf16.gmra.mxu0 %v3487
        %v3644 = vpop.f32.mrf.mxu0
        %v3645 = vadd.f32 0.0, %v3644
        %v3646 = vpop.f32.mrf.mxu0
        %v3647 = vadd.f32 0.0, %v3646
        %3648 = vmatmul.bf16.gmra.mxu0 %v3490
        %v3649 = vpop.f32.mrf.mxu0
        %v3650 = vadd.f32 0.0, %v3649
        %v3651 = vpop.f32.mrf.mxu0
        %v3652 = vadd.f32 0.0, %v3651
        %3653 = vmatmul.bf16.gmra.mxu0 %v3493
        %v3654 = vpop.f32.mrf.mxu0
        %v3655 = vadd.f32 0.0, %v3654
        %v3656 = vpop.f32.mrf.mxu0
        %v3657 = vadd.f32 0.0, %v3656
        %3658 = vmatmul.bf16.gmra.mxu0 %v3496
        %v3659 = vpop.f32.mrf.mxu0
        %v3660 = vadd.f32 0.0, %v3659
        %v3661 = vpop.f32.mrf.mxu0
        %v3662 = vadd.f32 0.0, %v3661
        %3663 = vmatmul.bf16.gmra.mxu0 %v3499
        %v3664 = vpop.f32.mrf.mxu0
        %v3665 = vadd.f32 0.0, %v3664
        %v3666 = vpop.f32.mrf.mxu0
        %v3667 = vadd.f32 0.0, %v3666
        %3668 = vmatmul.bf16.gmra.mxu0 %v3502
        %v3669 = vpop.f32.mrf.mxu0
        %v3670 = vadd.f32 0.0, %v3669
        %v3671 = vpop.f32.mrf.mxu0
        %v3672 = vadd.f32 0.0, %v3671
        %3673 = vmatmul.bf16.gmra.mxu0 %v3505
        %v3674 = vpop.f32.mrf.mxu0
        %v3675 = vadd.f32 0.0, %v3674
        %v3676 = vpop.f32.mrf.mxu0
        %v3677 = vadd.f32 0.0, %v3676
        %3678 = vmatmul.bf16.gmra.mxu0 %v3508
        %v3679 = vpop.f32.mrf.mxu0
        %v3680 = vadd.f32 0.0, %v3679
        %v3681 = vpop.f32.mrf.mxu0
        %v3682 = vadd.f32 0.0, %v3681
        %3683 = vmatmul.bf16.gmra.mxu0 %v3511
        %v3684 = vpop.f32.mrf.mxu0
        %v3685 = vadd.f32 0.0, %v3684
        %v3686 = vpop.f32.mrf.mxu0
        %v3687 = vadd.f32 0.0, %v3686
        %3688 = vmatmul.bf16.gmra.mxu0 %v3514
        %v3689 = vpop.f32.mrf.mxu0
        %v3690 = vadd.f32 0.0, %v3689
        %v3691 = vpop.f32.mrf.mxu0
        %v3692 = vadd.f32 0.0, %v3691
        %3693 = vdwg.mxu0
        %v3694 = vsub.f32 0.4, %v3526
        %v3695 = vsub.f32 0.4, %v3615
        %v3696 = vsub.f32 0.4, %v3528
        %v3697 = vsub.f32 0.4, %v3617
        %v3698 = vsub.f32 0.4, %v3531
        %v3699 = vsub.f32 0.4, %v3620
        %v3700 = vsub.f32 0.4, %v3533
        %v3701 = vsub.f32 0.4, %v3622
        %v3702 = vsub.f32 0.4, %v3536
        %v3703 = vsub.f32 0.4, %v3625
        %v3704 = vsub.f32 0.4, %v3538
        %v3705 = vsub.f32 0.4, %v3627
        %v3706 = vsub.f32 0.4, %v3541
        %v3707 = vsub.f32 0.4, %v3630
        %v3708 = vsub.f32 0.4, %v3543
        %v3709 = vsub.f32 0.4, %v3632
        %v3710 = vsub.f32 0.4, %v3546
        %v3711 = vsub.f32 0.4, %v3635
        %v3712 = vsub.f32 0.4, %v3548
        %v3713 = vsub.f32 0.4, %v3637
        %v3714 = vsub.f32 0.4, %v3551
        %v3715 = vsub.f32 0.4, %v3640
        %v3716 = vsub.f32 0.4, %v3553
        %v3717 = vsub.f32 0.4, %v3642
        %v3718 = vsub.f32 0.4, %v3556
        %v3719 = vsub.f32 0.4, %v3645
        %v3720 = vsub.f32 0.4, %v3558
        %v3721 = vsub.f32 0.4, %v3647
        %v3722 = vsub.f32 0.4, %v3561
        %v3723 = vsub.f32 0.4, %v3650
        %v3724 = vsub.f32 0.4, %v3563
        %v3725 = vsub.f32 0.4, %v3652
        %v3726 = vsub.f32 0.4, %v3566
        %v3727 = vsub.f32 0.4, %v3655
        %v3728 = vsub.f32 0.4, %v3568
        %v3729 = vsub.f32 0.4, %v3657
        %v3730 = vsub.f32 0.4, %v3571
        %v3731 = vsub.f32 0.4, %v3660
        %v3732 = vsub.f32 0.4, %v3573
        %v3733 = vsub.f32 0.4, %v3662
        %v3734 = vsub.f32 0.4, %v3576
        %v3735 = vsub.f32 0.4, %v3665
        %v3736 = vsub.f32 0.4, %v3578
        %v3737 = vsub.f32 0.4, %v3667
        %v3738 = vsub.f32 0.4, %v3581
        %v3739 = vsub.f32 0.4, %v3670
        %v3740 = vsub.f32 0.4, %v3583
        %v3741 = vsub.f32 0.4, %v3672
        %v3742 = vsub.f32 0.4, %v3586
        %v3743 = vsub.f32 0.4, %v3675
        %v3744 = vsub.f32 0.4, %v3588
        %v3745 = vsub.f32 0.4, %v3677
        %v3746 = vsub.f32 0.4, %v3591
        %v3747 = vsub.f32 0.4, %v3680
        %v3748 = vsub.f32 0.4, %v3593
        %v3749 = vsub.f32 0.4, %v3682
        %v3750 = vsub.f32 0.4, %v3596
        %v3751 = vsub.f32 0.4, %v3685
        %v3752 = vsub.f32 0.4, %v3598
        %v3753 = vsub.f32 0.4, %v3687
        %v3754 = vsub.f32 0.4, %v3601
        %v3755 = vsub.f32 0.4, %v3690
        %v3756 = vsub.f32 0.4, %v3603
        %v3757 = vsub.f32 0.4, %v3692
        %v3758 = vsel %vm1772, %v3694, %v3526
        %v3759 = vsel %vm1773, %v3695, %v3615
        %v3760 = vsel %vm1772, %v3696, %v3528
        %v3761 = vsel %vm1773, %v3697, %v3617
        %v3762 = vsel %vm1772, %v3698, %v3531
        %v3763 = vsel %vm1773, %v3699, %v3620
        %v3764 = vsel %vm1772, %v3700, %v3533
        %v3765 = vsel %vm1773, %v3701, %v3622
        %v3766 = vsel %vm1772, %v3702, %v3536
        %v3767 = vsel %vm1773, %v3703, %v3625
        %v3768 = vsel %vm1772, %v3704, %v3538
        %v3769 = vsel %vm1773, %v3705, %v3627
        %v3770 = vsel %vm1772, %v3706, %v3541
        %v3771 = vsel %vm1773, %v3707, %v3630
        %v3772 = vsel %vm1772, %v3708, %v3543
        %v3773 = vsel %vm1773, %v3709, %v3632
        %v3774 = vsel %vm1772, %v3710, %v3546
        %v3775 = vsel %vm1773, %v3711, %v3635
        %v3776 = vsel %vm1772, %v3712, %v3548
        %v3777 = vsel %vm1773, %v3713, %v3637
        %v3778 = vsel %vm1772, %v3714, %v3551
        %v3779 = vsel %vm1773, %v3715, %v3640
        %v3780 = vsel %vm1772, %v3716, %v3553
        %v3781 = vsel %vm1773, %v3717, %v3642
        %v3782 = vsel %vm1772, %v3718, %v3556
        %v3783 = vsel %vm1773, %v3719, %v3645
        %v3784 = vsel %vm1772, %v3720, %v3558
        %v3785 = vsel %vm1773, %v3721, %v3647
        %v3786 = vsel %vm1772, %v3722, %v3561
        %v3787 = vsel %vm1773, %v3723, %v3650
        %v3788 = vsel %vm1772, %v3724, %v3563
        %v3789 = vsel %vm1773, %v3725, %v3652
        %v3790 = vsel %vm1772, %v3726, %v3566
        %v3791 = vsel %vm1773, %v3727, %v3655
        %v3792 = vsel %vm1772, %v3728, %v3568
        %v3793 = vsel %vm1773, %v3729, %v3657
        %v3794 = vsel %vm1772, %v3730, %v3571
        %v3795 = vsel %vm1773, %v3731, %v3660
        %v3796 = vsel %vm1772, %v3732, %v3573
        %v3797 = vsel %vm1773, %v3733, %v3662
        %v3798 = vsel %vm1772, %v3734, %v3576
        %v3799 = vsel %vm1773, %v3735, %v3665
        %v3800 = vsel %vm1772, %v3736, %v3578
        %v3801 = vsel %vm1773, %v3737, %v3667
        %v3802 = vsel %vm1772, %v3738, %v3581
        %v3803 = vsel %vm1773, %v3739, %v3670
        %v3804 = vsel %vm1772, %v3740, %v3583
        %v3805 = vsel %vm1773, %v3741, %v3672
        %v3806 = vsel %vm1772, %v3742, %v3586
        %v3807 = vsel %vm1773, %v3743, %v3675
        %v3808 = vsel %vm1772, %v3744, %v3588
        %v3809 = vsel %vm1773, %v3745, %v3677
        %v3810 = vsel %vm1772, %v3746, %v3591
        %v3811 = vsel %vm1773, %v3747, %v3680
        %v3812 = vsel %vm1772, %v3748, %v3593
        %v3813 = vsel %vm1773, %v3749, %v3682
        %v3814 = vsel %vm1772, %v3750, %v3596
        %v3815 = vsel %vm1773, %v3751, %v3685
        %v3816 = vsel %vm1772, %v3752, %v3598
        %v3817 = vsel %vm1773, %v3753, %v3687
        %v3818 = vsel %vm1772, %v3754, %v3601
        %v3819 = vsel %vm1773, %v3755, %v3690
        %v3820 = vsel %vm1772, %v3756, %v3603
        %v3821 = vsel %vm1773, %v3757, %v3692
        %v3822 = vmax.f32 %v3758, 0.0
        %v3823 = vmax.f32 %v3759, 0.0
        %v3824 = vmax.f32 %v3760, 0.0
        %v3825 = vmax.f32 %v3761, 0.0
        %v3826 = vmax.f32 %v3762, 0.0
        %v3827 = vmax.f32 %v3763, 0.0
        %v3828 = vmax.f32 %v3764, 0.0
        %v3829 = vmax.f32 %v3765, 0.0
        %v3830 = vmax.f32 %v3766, 0.0
        %v3831 = vmax.f32 %v3767, 0.0
        %v3832 = vmax.f32 %v3768, 0.0
        %v3833 = vmax.f32 %v3769, 0.0
        %v3834 = vmax.f32 %v3770, 0.0
        %v3835 = vmax.f32 %v3771, 0.0
        %v3836 = vmax.f32 %v3772, 0.0
        %v3837 = vmax.f32 %v3773, 0.0
        %v3838 = vmax.f32 %v3774, 0.0
        %v3839 = vmax.f32 %v3775, 0.0
        %v3840 = vmax.f32 %v3776, 0.0
        %v3841 = vmax.f32 %v3777, 0.0
        %v3842 = vmax.f32 %v3778, 0.0
        %v3843 = vmax.f32 %v3779, 0.0
        %v3844 = vmax.f32 %v3780, 0.0
        %v3845 = vmax.f32 %v3781, 0.0
        %v3846 = vmax.f32 %v3782, 0.0
        %v3847 = vmax.f32 %v3783, 0.0
        %v3848 = vmax.f32 %v3784, 0.0
        %v3849 = vmax.f32 %v3785, 0.0
        %v3850 = vmax.f32 %v3786, 0.0
        %v3851 = vmax.f32 %v3787, 0.0
        %v3852 = vmax.f32 %v3788, 0.0
        %v3853 = vmax.f32 %v3789, 0.0
        %v3854 = vmax.f32 %v3790, 0.0
        %v3855 = vmax.f32 %v3791, 0.0
        %v3856 = vmax.f32 %v3792, 0.0
        %v3857 = vmax.f32 %v3793, 0.0
        %v3858 = vmax.f32 %v3794, 0.0
        %v3859 = vmax.f32 %v3795, 0.0
        %v3860 = vmax.f32 %v3796, 0.0
        %v3861 = vmax.f32 %v3797, 0.0
        %v3862 = vmax.f32 %v3798, 0.0
        %v3863 = vmax.f32 %v3799, 0.0
        %v3864 = vmax.f32 %v3800, 0.0
        %v3865 = vmax.f32 %v3801, 0.0
        %v3866 = vmax.f32 %v3802, 0.0
        %v3867 = vmax.f32 %v3803, 0.0
        %v3868 = vmax.f32 %v3804, 0.0
        %v3869 = vmax.f32 %v3805, 0.0
        %v3870 = vmax.f32 %v3806, 0.0
        %v3871 = vmax.f32 %v3807, 0.0
        %v3872 = vmax.f32 %v3808, 0.0
        %v3873 = vmax.f32 %v3809, 0.0
        %v3874 = vmax.f32 %v3810, 0.0
        %v3875 = vmax.f32 %v3811, 0.0
        %v3876 = vmax.f32 %v3812, 0.0
        %v3877 = vmax.f32 %v3813, 0.0
        %v3878 = vmax.f32 %v3814, 0.0
        %v3879 = vmax.f32 %v3815, 0.0
        %v3880 = vmax.f32 %v3816, 0.0
        %v3881 = vmax.f32 %v3817, 0.0
        %v3882 = vmax.f32 %v3818, 0.0
        %v3883 = vmax.f32 %v3819, 0.0
        %v3884 = vmax.f32 %v3820, 0.0
        %v3885 = vmax.f32 %v3821, 0.0
        %v3886 = vmul.f32 %v3822, %v1904
        %v3887 = vmul.f32 %v3823, %v1904
        %v3888 = vmul.f32 %v3824, %v1908
        %v3889 = vmul.f32 %v3825, %v1908
        %v3890 = vmul.f32 %v3826, %v1912
        %v3891 = vmul.f32 %v3827, %v1912
        %v3892 = vmul.f32 %v3828, %v1916
        %v3893 = vmul.f32 %v3829, %v1916
        %v3894 = vmul.f32 %v3830, %v1920
        %v3895 = vmul.f32 %v3831, %v1920
        %v3896 = vmul.f32 %v3832, %v1924
        %v3897 = vmul.f32 %v3833, %v1924
        %v3898 = vmul.f32 %v3834, %v1928
        %v3899 = vmul.f32 %v3835, %v1928
        %v3900 = vmul.f32 %v3836, %v1932
        %v3901 = vmul.f32 %v3837, %v1932
        %v3902 = vmul.f32 %v3838, %v1936
        %v3903 = vmul.f32 %v3839, %v1936
        %v3904 = vmul.f32 %v3840, %v1940
        %v3905 = vmul.f32 %v3841, %v1940
        %v3906 = vmul.f32 %v3842, %v1944
        %v3907 = vmul.f32 %v3843, %v1944
        %v3908 = vmul.f32 %v3844, %v1948
        %v3909 = vmul.f32 %v3845, %v1948
        %v3910 = vmul.f32 %v3846, %v1952
        %v3911 = vmul.f32 %v3847, %v1952
        %v3912 = vmul.f32 %v3848, %v1956
        %v3913 = vmul.f32 %v3849, %v1956
        %v3914 = vmul.f32 %v3850, %v1960
        %v3915 = vmul.f32 %v3851, %v1960
        %v3916 = vmul.f32 %v3852, %v1964
        %v3917 = vmul.f32 %v3853, %v1964
        %v3918 = vmul.f32 %v3854, %v1968
        %v3919 = vmul.f32 %v3855, %v1968
        %v3920 = vmul.f32 %v3856, %v1972
        %v3921 = vmul.f32 %v3857, %v1972
        %v3922 = vmul.f32 %v3858, %v1976
        %v3923 = vmul.f32 %v3859, %v1976
        %v3924 = vmul.f32 %v3860, %v1980
        %v3925 = vmul.f32 %v3861, %v1980
        %v3926 = vmul.f32 %v3862, %v1984
        %v3927 = vmul.f32 %v3863, %v1984
        %v3928 = vmul.f32 %v3864, %v1988
        %v3929 = vmul.f32 %v3865, %v1988
        %v3930 = vmul.f32 %v3866, %v1992
        %v3931 = vmul.f32 %v3867, %v1992
        %v3932 = vmul.f32 %v3868, %v1996
        %v3933 = vmul.f32 %v3869, %v1996
        %v3934 = vmul.f32 %v3870, %v2000
        %v3935 = vmul.f32 %v3871, %v2000
        %v3936 = vmul.f32 %v3872, %v2004
        %v3937 = vmul.f32 %v3873, %v2004
        %v3938 = vmul.f32 %v3874, %v2008
        %v3939 = vmul.f32 %v3875, %v2008
        %v3940 = vmul.f32 %v3876, %v2012
        %v3941 = vmul.f32 %v3877, %v2012
        %v3942 = vmul.f32 %v3878, %v2016
        %v3943 = vmul.f32 %v3879, %v2016
        %v3944 = vmul.f32 %v3880, %v2020
        %v3945 = vmul.f32 %v3881, %v2020
        %v3946 = vmul.f32 %v3882, %v2024
        %v3947 = vmul.f32 %v3883, %v2024
        %v3948 = vmul.f32 %v3884, %v2028
        %v3949 = vmul.f32 %v3885, %v2028
        %v3950 = vadd.f32 %v3886, %v3888
        %v3951 = vadd.f32 %v3950, %v3890
        %v3952 = vadd.f32 %v3951, %v3892
        %v3953 = vadd.f32 %v3952, %v3894
        %v3954 = vadd.f32 %v3953, %v3896
        %v3955 = vadd.f32 %v3954, %v3898
        %v3956 = vadd.f32 %v3955, %v3900
        %v3957 = vadd.f32 %v3956, %v3902
        %v3958 = vadd.f32 %v3957, %v3904
        %v3959 = vadd.f32 %v3958, %v3906
        %v3960 = vadd.f32 %v3959, %v3908
        %v3961 = vadd.f32 %v3960, %v3910
        %v3962 = vadd.f32 %v3961, %v3912
        %v3963 = vadd.f32 %v3962, %v3914
        %v3964 = vadd.f32 %v3963, %v3916
        %v3965 = vadd.f32 %v3964, %v3918
        %v3966 = vadd.f32 %v3965, %v3920
        %v3967 = vadd.f32 %v3966, %v3922
        %v3968 = vadd.f32 %v3967, %v3924
        %v3969 = vadd.f32 %v3968, %v3926
        %v3970 = vadd.f32 %v3969, %v3928
        %v3971 = vadd.f32 %v3970, %v3930
        %v3972 = vadd.f32 %v3971, %v3932
        %v3973 = vadd.f32 %v3972, %v3934
        %v3974 = vadd.f32 %v3973, %v3936
        %v3975 = vadd.f32 %v3974, %v3938
        %v3976 = vadd.f32 %v3975, %v3940
        %v3977 = vadd.f32 %v3976, %v3942
        %v3978 = vadd.f32 %v3977, %v3944
        %v3979 = vadd.f32 %v3978, %v3946
        %v3980 = vadd.f32 %v3979, %v3948
        %v3981 = vrot.slane %v3980, 4
        %v3982 = vadd.f32 %v3980, %v3981
        %v3983 = vrot.slane %v3982, 2
        %v3984 = vadd.f32 %v3982, %v3983
        %v3985 = vrot.slane %v3984, 1
        %v3986 = vadd.f32 %v3984, %v3985
        %v3987 = vadd.f32 %v3887, %v3889
        %v3988 = vadd.f32 %v3987, %v3891
        %v3989 = vadd.f32 %v3988, %v3893
        %v3990 = vadd.f32 %v3989, %v3895
        %v3991 = vadd.f32 %v3990, %v3897
        %v3992 = vadd.f32 %v3991, %v3899
        %v3993 = vadd.f32 %v3992, %v3901
        %v3994 = vadd.f32 %v3993, %v3903
        %v3995 = vadd.f32 %v3994, %v3905
        %v3996 = vadd.f32 %v3995, %v3907
        %v3997 = vadd.f32 %v3996, %v3909
        %v3998 = vadd.f32 %v3997, %v3911
        %v3999 = vadd.f32 %v3998, %v3913
        %v4000 = vadd.f32 %v3999, %v3915
        %v4001 = vadd.f32 %v4000, %v3917
        %v4002 = vadd.f32 %v4001, %v3919
        %v4003 = vadd.f32 %v4002, %v3921
        %v4004 = vadd.f32 %v4003, %v3923
        %v4005 = vadd.f32 %v4004, %v3925
        %v4006 = vadd.f32 %v4005, %v3927
        %v4007 = vadd.f32 %v4006, %v3929
        %v4008 = vadd.f32 %v4007, %v3931
        %v4009 = vadd.f32 %v4008, %v3933
        %v4010 = vadd.f32 %v4009, %v3935
        %v4011 = vadd.f32 %v4010, %v3937
        %v4012 = vadd.f32 %v4011, %v3939
        %v4013 = vadd.f32 %v4012, %v3941
        %v4014 = vadd.f32 %v4013, %v3943
        %v4015 = vadd.f32 %v4014, %v3945
        %v4016 = vadd.f32 %v4015, %v3947
        %v4017 = vadd.f32 %v4016, %v3949
        %v4018 = vrot.slane %v4017, 4
        %v4019 = vadd.f32 %v4017, %v4018
        %v4020 = vrot.slane %v4019, 2
        %v4021 = vadd.f32 %v4019, %v4020
        %v4022 = vrot.slane %v4021, 1
        %v4023 = vadd.f32 %v4021, %v4022
        %v4024 = vmul.f32 %v3986, %v290
        %v4025 = vmul.f32 %v4023, %v291
        %v4026 = vmul.f32 %v3986, %v2170
        %v4027 = vmul.f32 %v4023, %v2171
        %4028 = vmatpush.bf16.msra.mxu0 0
        %4029 = vmatpush.bf16.msra.mxu0 0
        %4030 = vmatpush.bf16.msra.mxu0 0
        %4031 = vmatpush.bf16.msra.mxu0 0
        %4032 = vmatpush.bf16.msra.mxu0 0
        %4033 = vmatpush.bf16.msra.mxu0 0
        %4034 = vmatpush.bf16.msra.mxu0 %v3438
        %4035 = vmatpush.bf16.msra.mxu0 %v3436
        %4036 = vmatmul.bf16.gmra.mxu0 %v2865
        %v4037 = vpop.f32.mrf.mxu0
        %v4038 = vadd.f32 0.0, %v4037
        %v4039 = vpop.f32.mrf.mxu0
        %v4040 = vadd.f32 0.0, %v4039
        %4041 = vmatmul.bf16.gmra.mxu0 %v2868
        %v4042 = vpop.f32.mrf.mxu0
        %v4043 = vadd.f32 0.0, %v4042
        %v4044 = vpop.f32.mrf.mxu0
        %v4045 = vadd.f32 0.0, %v4044
        %4046 = vmatmul.bf16.gmra.mxu0 %v2871
        %v4047 = vpop.f32.mrf.mxu0
        %v4048 = vadd.f32 0.0, %v4047
        %v4049 = vpop.f32.mrf.mxu0
        %v4050 = vadd.f32 0.0, %v4049
        %4051 = vmatmul.bf16.gmra.mxu0 %v2874
        %v4052 = vpop.f32.mrf.mxu0
        %v4053 = vadd.f32 0.0, %v4052
        %v4054 = vpop.f32.mrf.mxu0
        %v4055 = vadd.f32 0.0, %v4054
        %4056 = vmatmul.bf16.gmra.mxu0 %v2877
        %v4057 = vpop.f32.mrf.mxu0
        %v4058 = vadd.f32 0.0, %v4057
        %v4059 = vpop.f32.mrf.mxu0
        %v4060 = vadd.f32 0.0, %v4059
        %4061 = vmatmul.bf16.gmra.mxu0 %v2880
        %v4062 = vpop.f32.mrf.mxu0
        %v4063 = vadd.f32 0.0, %v4062
        %v4064 = vpop.f32.mrf.mxu0
        %v4065 = vadd.f32 0.0, %v4064
        %4066 = vmatmul.bf16.gmra.mxu0 %v2883
        %v4067 = vpop.f32.mrf.mxu0
        %v4068 = vadd.f32 0.0, %v4067
        %v4069 = vpop.f32.mrf.mxu0
        %v4070 = vadd.f32 0.0, %v4069
        %4071 = vmatmul.bf16.gmra.mxu0 %v2886
        %v4072 = vpop.f32.mrf.mxu0
        %v4073 = vadd.f32 0.0, %v4072
        %v4074 = vpop.f32.mrf.mxu0
        %v4075 = vadd.f32 0.0, %v4074
        %4076 = vmatmul.bf16.gmra.mxu0 %v2889
        %v4077 = vpop.f32.mrf.mxu0
        %v4078 = vadd.f32 0.0, %v4077
        %v4079 = vpop.f32.mrf.mxu0
        %v4080 = vadd.f32 0.0, %v4079
        %4081 = vmatmul.bf16.gmra.mxu0 %v2892
        %v4082 = vpop.f32.mrf.mxu0
        %v4083 = vadd.f32 0.0, %v4082
        %v4084 = vpop.f32.mrf.mxu0
        %v4085 = vadd.f32 0.0, %v4084
        %4086 = vmatmul.bf16.gmra.mxu0 %v2895
        %v4087 = vpop.f32.mrf.mxu0
        %v4088 = vadd.f32 0.0, %v4087
        %v4089 = vpop.f32.mrf.mxu0
        %v4090 = vadd.f32 0.0, %v4089
        %4091 = vmatmul.bf16.gmra.mxu0 %v2898
        %v4092 = vpop.f32.mrf.mxu0
        %v4093 = vadd.f32 0.0, %v4092
        %v4094 = vpop.f32.mrf.mxu0
        %v4095 = vadd.f32 0.0, %v4094
        %4096 = vmatmul.bf16.gmra.mxu0 %v2901
        %v4097 = vpop.f32.mrf.mxu0
        %v4098 = vadd.f32 0.0, %v4097
        %v4099 = vpop.f32.mrf.mxu0
        %v4100 = vadd.f32 0.0, %v4099
        %4101 = vmatmul.bf16.gmra.mxu0 %v2904
        %v4102 = vpop.f32.mrf.mxu0
        %v4103 = vadd.f32 0.0, %v4102
        %v4104 = vpop.f32.mrf.mxu0
        %v4105 = vadd.f32 0.0, %v4104
        %4106 = vmatmul.bf16.gmra.mxu0 %v2907
        %v4107 = vpop.f32.mrf.mxu0
        %v4108 = vadd.f32 0.0, %v4107
        %v4109 = vpop.f32.mrf.mxu0
        %v4110 = vadd.f32 0.0, %v4109
        %4111 = vmatmul.bf16.gmra.mxu0 %v2910
        %v4112 = vpop.f32.mrf.mxu0
        %v4113 = vadd.f32 0.0, %v4112
        %v4114 = vpop.f32.mrf.mxu0
        %v4115 = vadd.f32 0.0, %v4114
        %4116 = vdwg.mxu0
        %4117 = vmatpush.bf16.msra.mxu0 0
        %4118 = vmatpush.bf16.msra.mxu0 0
        %4119 = vmatpush.bf16.msra.mxu0 0
        %4120 = vmatpush.bf16.msra.mxu0 0
        %4121 = vmatpush.bf16.msra.mxu0 0
        %4122 = vmatpush.bf16.msra.mxu0 0
        %4123 = vmatpush.bf16.msra.mxu0 %v3439
        %4124 = vmatpush.bf16.msra.mxu0 %v3437
        %4125 = vmatmul.bf16.gmra.mxu0 %v2865
        %v4126 = vpop.f32.mrf.mxu0
        %v4127 = vadd.f32 0.0, %v4126
        %v4128 = vpop.f32.mrf.mxu0
        %v4129 = vadd.f32 0.0, %v4128
        %4130 = vmatmul.bf16.gmra.mxu0 %v2868
        %v4131 = vpop.f32.mrf.mxu0
        %v4132 = vadd.f32 0.0, %v4131
        %v4133 = vpop.f32.mrf.mxu0
        %v4134 = vadd.f32 0.0, %v4133
        %4135 = vmatmul.bf16.gmra.mxu0 %v2871
        %v4136 = vpop.f32.mrf.mxu0
        %v4137 = vadd.f32 0.0, %v4136
        %v4138 = vpop.f32.mrf.mxu0
        %v4139 = vadd.f32 0.0, %v4138
        %4140 = vmatmul.bf16.gmra.mxu0 %v2874
        %v4141 = vpop.f32.mrf.mxu0
        %v4142 = vadd.f32 0.0, %v4141
        %v4143 = vpop.f32.mrf.mxu0
        %v4144 = vadd.f32 0.0, %v4143
        %4145 = vmatmul.bf16.gmra.mxu0 %v2877
        %v4146 = vpop.f32.mrf.mxu0
        %v4147 = vadd.f32 0.0, %v4146
        %v4148 = vpop.f32.mrf.mxu0
        %v4149 = vadd.f32 0.0, %v4148
        %4150 = vmatmul.bf16.gmra.mxu0 %v2880
        %v4151 = vpop.f32.mrf.mxu0
        %v4152 = vadd.f32 0.0, %v4151
        %v4153 = vpop.f32.mrf.mxu0
        %v4154 = vadd.f32 0.0, %v4153
        %4155 = vmatmul.bf16.gmra.mxu0 %v2883
        %v4156 = vpop.f32.mrf.mxu0
        %v4157 = vadd.f32 0.0, %v4156
        %v4158 = vpop.f32.mrf.mxu0
        %v4159 = vadd.f32 0.0, %v4158
        %4160 = vmatmul.bf16.gmra.mxu0 %v2886
        %v4161 = vpop.f32.mrf.mxu0
        %v4162 = vadd.f32 0.0, %v4161
        %v4163 = vpop.f32.mrf.mxu0
        %v4164 = vadd.f32 0.0, %v4163
        %4165 = vmatmul.bf16.gmra.mxu0 %v2889
        %v4166 = vpop.f32.mrf.mxu0
        %v4167 = vadd.f32 0.0, %v4166
        %v4168 = vpop.f32.mrf.mxu0
        %v4169 = vadd.f32 0.0, %v4168
        %4170 = vmatmul.bf16.gmra.mxu0 %v2892
        %v4171 = vpop.f32.mrf.mxu0
        %v4172 = vadd.f32 0.0, %v4171
        %v4173 = vpop.f32.mrf.mxu0
        %v4174 = vadd.f32 0.0, %v4173
        %4175 = vmatmul.bf16.gmra.mxu0 %v2895
        %v4176 = vpop.f32.mrf.mxu0
        %v4177 = vadd.f32 0.0, %v4176
        %v4178 = vpop.f32.mrf.mxu0
        %v4179 = vadd.f32 0.0, %v4178
        %4180 = vmatmul.bf16.gmra.mxu0 %v2898
        %v4181 = vpop.f32.mrf.mxu0
        %v4182 = vadd.f32 0.0, %v4181
        %v4183 = vpop.f32.mrf.mxu0
        %v4184 = vadd.f32 0.0, %v4183
        %4185 = vmatmul.bf16.gmra.mxu0 %v2901
        %v4186 = vpop.f32.mrf.mxu0
        %v4187 = vadd.f32 0.0, %v4186
        %v4188 = vpop.f32.mrf.mxu0
        %v4189 = vadd.f32 0.0, %v4188
        %4190 = vmatmul.bf16.gmra.mxu0 %v2904
        %v4191 = vpop.f32.mrf.mxu0
        %v4192 = vadd.f32 0.0, %v4191
        %v4193 = vpop.f32.mrf.mxu0
        %v4194 = vadd.f32 0.0, %v4193
        %4195 = vmatmul.bf16.gmra.mxu0 %v2907
        %v4196 = vpop.f32.mrf.mxu0
        %v4197 = vadd.f32 0.0, %v4196
        %v4198 = vpop.f32.mrf.mxu0
        %v4199 = vadd.f32 0.0, %v4198
        %4200 = vmatmul.bf16.gmra.mxu0 %v2910
        %v4201 = vpop.f32.mrf.mxu0
        %v4202 = vadd.f32 0.0, %v4201
        %v4203 = vpop.f32.mrf.mxu0
        %v4204 = vadd.f32 0.0, %v4203
        %4205 = vdwg.mxu0
        %v4206 = vsub.f32 0.4, %v4038
        %v4207 = vsub.f32 0.4, %v4127
        %v4208 = vsub.f32 0.4, %v4040
        %v4209 = vsub.f32 0.4, %v4129
        %v4210 = vsub.f32 0.4, %v4043
        %v4211 = vsub.f32 0.4, %v4132
        %v4212 = vsub.f32 0.4, %v4045
        %v4213 = vsub.f32 0.4, %v4134
        %v4214 = vsub.f32 0.4, %v4048
        %v4215 = vsub.f32 0.4, %v4137
        %v4216 = vsub.f32 0.4, %v4050
        %v4217 = vsub.f32 0.4, %v4139
        %v4218 = vsub.f32 0.4, %v4053
        %v4219 = vsub.f32 0.4, %v4142
        %v4220 = vsub.f32 0.4, %v4055
        %v4221 = vsub.f32 0.4, %v4144
        %v4222 = vsub.f32 0.4, %v4058
        %v4223 = vsub.f32 0.4, %v4147
        %v4224 = vsub.f32 0.4, %v4060
        %v4225 = vsub.f32 0.4, %v4149
        %v4226 = vsub.f32 0.4, %v4063
        %v4227 = vsub.f32 0.4, %v4152
        %v4228 = vsub.f32 0.4, %v4065
        %v4229 = vsub.f32 0.4, %v4154
        %v4230 = vsub.f32 0.4, %v4068
        %v4231 = vsub.f32 0.4, %v4157
        %v4232 = vsub.f32 0.4, %v4070
        %v4233 = vsub.f32 0.4, %v4159
        %v4234 = vsub.f32 0.4, %v4073
        %v4235 = vsub.f32 0.4, %v4162
        %v4236 = vsub.f32 0.4, %v4075
        %v4237 = vsub.f32 0.4, %v4164
        %v4238 = vsub.f32 0.4, %v4078
        %v4239 = vsub.f32 0.4, %v4167
        %v4240 = vsub.f32 0.4, %v4080
        %v4241 = vsub.f32 0.4, %v4169
        %v4242 = vsub.f32 0.4, %v4083
        %v4243 = vsub.f32 0.4, %v4172
        %v4244 = vsub.f32 0.4, %v4085
        %v4245 = vsub.f32 0.4, %v4174
        %v4246 = vsub.f32 0.4, %v4088
        %v4247 = vsub.f32 0.4, %v4177
        %v4248 = vsub.f32 0.4, %v4090
        %v4249 = vsub.f32 0.4, %v4179
        %v4250 = vsub.f32 0.4, %v4093
        %v4251 = vsub.f32 0.4, %v4182
        %v4252 = vsub.f32 0.4, %v4095
        %v4253 = vsub.f32 0.4, %v4184
        %v4254 = vsub.f32 0.4, %v4098
        %v4255 = vsub.f32 0.4, %v4187
        %v4256 = vsub.f32 0.4, %v4100
        %v4257 = vsub.f32 0.4, %v4189
        %v4258 = vsub.f32 0.4, %v4103
        %v4259 = vsub.f32 0.4, %v4192
        %v4260 = vsub.f32 0.4, %v4105
        %v4261 = vsub.f32 0.4, %v4194
        %v4262 = vsub.f32 0.4, %v4108
        %v4263 = vsub.f32 0.4, %v4197
        %v4264 = vsub.f32 0.4, %v4110
        %v4265 = vsub.f32 0.4, %v4199
        %v4266 = vsub.f32 0.4, %v4113
        %v4267 = vsub.f32 0.4, %v4202
        %v4268 = vsub.f32 0.4, %v4115
        %v4269 = vsub.f32 0.4, %v4204
        %v4270 = vsel %vm1772, %v4206, %v4038
        %v4271 = vsel %vm1773, %v4207, %v4127
        %v4272 = vsel %vm1772, %v4208, %v4040
        %v4273 = vsel %vm1773, %v4209, %v4129
        %v4274 = vsel %vm1772, %v4210, %v4043
        %v4275 = vsel %vm1773, %v4211, %v4132
        %v4276 = vsel %vm1772, %v4212, %v4045
        %v4277 = vsel %vm1773, %v4213, %v4134
        %v4278 = vsel %vm1772, %v4214, %v4048
        %v4279 = vsel %vm1773, %v4215, %v4137
        %v4280 = vsel %vm1772, %v4216, %v4050
        %v4281 = vsel %vm1773, %v4217, %v4139
        %v4282 = vsel %vm1772, %v4218, %v4053
        %v4283 = vsel %vm1773, %v4219, %v4142
        %v4284 = vsel %vm1772, %v4220, %v4055
        %v4285 = vsel %vm1773, %v4221, %v4144
        %v4286 = vsel %vm1772, %v4222, %v4058
        %v4287 = vsel %vm1773, %v4223, %v4147
        %v4288 = vsel %vm1772, %v4224, %v4060
        %v4289 = vsel %vm1773, %v4225, %v4149
        %v4290 = vsel %vm1772, %v4226, %v4063
        %v4291 = vsel %vm1773, %v4227, %v4152
        %v4292 = vsel %vm1772, %v4228, %v4065
        %v4293 = vsel %vm1773, %v4229, %v4154
        %v4294 = vsel %vm1772, %v4230, %v4068
        %v4295 = vsel %vm1773, %v4231, %v4157
        %v4296 = vsel %vm1772, %v4232, %v4070
        %v4297 = vsel %vm1773, %v4233, %v4159
        %v4298 = vsel %vm1772, %v4234, %v4073
        %v4299 = vsel %vm1773, %v4235, %v4162
        %v4300 = vsel %vm1772, %v4236, %v4075
        %v4301 = vsel %vm1773, %v4237, %v4164
        %v4302 = vsel %vm1772, %v4238, %v4078
        %v4303 = vsel %vm1773, %v4239, %v4167
        %v4304 = vsel %vm1772, %v4240, %v4080
        %v4305 = vsel %vm1773, %v4241, %v4169
        %v4306 = vsel %vm1772, %v4242, %v4083
        %v4307 = vsel %vm1773, %v4243, %v4172
        %v4308 = vsel %vm1772, %v4244, %v4085
        %v4309 = vsel %vm1773, %v4245, %v4174
        %v4310 = vsel %vm1772, %v4246, %v4088
        %v4311 = vsel %vm1773, %v4247, %v4177
        %v4312 = vsel %vm1772, %v4248, %v4090
        %v4313 = vsel %vm1773, %v4249, %v4179
        %v4314 = vsel %vm1772, %v4250, %v4093
        %v4315 = vsel %vm1773, %v4251, %v4182
        %v4316 = vsel %vm1772, %v4252, %v4095
        %v4317 = vsel %vm1773, %v4253, %v4184
        %v4318 = vsel %vm1772, %v4254, %v4098
        %v4319 = vsel %vm1773, %v4255, %v4187
        %v4320 = vsel %vm1772, %v4256, %v4100
        %v4321 = vsel %vm1773, %v4257, %v4189
        %v4322 = vsel %vm1772, %v4258, %v4103
        %v4323 = vsel %vm1773, %v4259, %v4192
        %v4324 = vsel %vm1772, %v4260, %v4105
        %v4325 = vsel %vm1773, %v4261, %v4194
        %v4326 = vsel %vm1772, %v4262, %v4108
        %v4327 = vsel %vm1773, %v4263, %v4197
        %v4328 = vsel %vm1772, %v4264, %v4110
        %v4329 = vsel %vm1773, %v4265, %v4199
        %v4330 = vsel %vm1772, %v4266, %v4113
        %v4331 = vsel %vm1773, %v4267, %v4202
        %v4332 = vsel %vm1772, %v4268, %v4115
        %v4333 = vsel %vm1773, %v4269, %v4204
        %v4334 = vmax.f32 %v4270, 0.0
        %v4335 = vmax.f32 %v4271, 0.0
        %v4336 = vmax.f32 %v4272, 0.0
        %v4337 = vmax.f32 %v4273, 0.0
        %v4338 = vmax.f32 %v4274, 0.0
        %v4339 = vmax.f32 %v4275, 0.0
        %v4340 = vmax.f32 %v4276, 0.0
        %v4341 = vmax.f32 %v4277, 0.0
        %v4342 = vmax.f32 %v4278, 0.0
        %v4343 = vmax.f32 %v4279, 0.0
        %v4344 = vmax.f32 %v4280, 0.0
        %v4345 = vmax.f32 %v4281, 0.0
        %v4346 = vmax.f32 %v4282, 0.0
        %v4347 = vmax.f32 %v4283, 0.0
        %v4348 = vmax.f32 %v4284, 0.0
        %v4349 = vmax.f32 %v4285, 0.0
        %v4350 = vmax.f32 %v4286, 0.0
        %v4351 = vmax.f32 %v4287, 0.0
        %v4352 = vmax.f32 %v4288, 0.0
        %v4353 = vmax.f32 %v4289, 0.0
        %v4354 = vmax.f32 %v4290, 0.0
        %v4355 = vmax.f32 %v4291, 0.0
        %v4356 = vmax.f32 %v4292, 0.0
        %v4357 = vmax.f32 %v4293, 0.0
        %v4358 = vmax.f32 %v4294, 0.0
        %v4359 = vmax.f32 %v4295, 0.0
        %v4360 = vmax.f32 %v4296, 0.0
        %v4361 = vmax.f32 %v4297, 0.0
        %v4362 = vmax.f32 %v4298, 0.0
        %v4363 = vmax.f32 %v4299, 0.0
        %v4364 = vmax.f32 %v4300, 0.0
        %v4365 = vmax.f32 %v4301, 0.0
        %v4366 = vmax.f32 %v4302, 0.0
        %v4367 = vmax.f32 %v4303, 0.0
        %v4368 = vmax.f32 %v4304, 0.0
        %v4369 = vmax.f32 %v4305, 0.0
        %v4370 = vmax.f32 %v4306, 0.0
        %v4371 = vmax.f32 %v4307, 0.0
        %v4372 = vmax.f32 %v4308, 0.0
        %v4373 = vmax.f32 %v4309, 0.0
        %v4374 = vmax.f32 %v4310, 0.0
        %v4375 = vmax.f32 %v4311, 0.0
        %v4376 = vmax.f32 %v4312, 0.0
        %v4377 = vmax.f32 %v4313, 0.0
        %v4378 = vmax.f32 %v4314, 0.0
        %v4379 = vmax.f32 %v4315, 0.0
        %v4380 = vmax.f32 %v4316, 0.0
        %v4381 = vmax.f32 %v4317, 0.0
        %v4382 = vmax.f32 %v4318, 0.0
        %v4383 = vmax.f32 %v4319, 0.0
        %v4384 = vmax.f32 %v4320, 0.0
        %v4385 = vmax.f32 %v4321, 0.0
        %v4386 = vmax.f32 %v4322, 0.0
        %v4387 = vmax.f32 %v4323, 0.0
        %v4388 = vmax.f32 %v4324, 0.0
        %v4389 = vmax.f32 %v4325, 0.0
        %v4390 = vmax.f32 %v4326, 0.0
        %v4391 = vmax.f32 %v4327, 0.0
        %v4392 = vmax.f32 %v4328, 0.0
        %v4393 = vmax.f32 %v4329, 0.0
        %v4394 = vmax.f32 %v4330, 0.0
        %v4395 = vmax.f32 %v4331, 0.0
        %v4396 = vmax.f32 %v4332, 0.0
        %v4397 = vmax.f32 %v4333, 0.0
        %v4398 = vmul.f32 %v4334, %v1129
        %v4399 = vmul.f32 %v4335, %v1129
        %v4400 = vmul.f32 %v4336, %v1134
        %v4401 = vmul.f32 %v4337, %v1134
        %v4402 = vmul.f32 %v4338, %v1139
        %v4403 = vmul.f32 %v4339, %v1139
        %v4404 = vmul.f32 %v4340, %v1144
        %v4405 = vmul.f32 %v4341, %v1144
        %v4406 = vmul.f32 %v4342, %v1149
        %v4407 = vmul.f32 %v4343, %v1149
        %v4408 = vmul.f32 %v4344, %v1154
        %v4409 = vmul.f32 %v4345, %v1154
        %v4410 = vmul.f32 %v4346, %v1159
        %v4411 = vmul.f32 %v4347, %v1159
        %v4412 = vmul.f32 %v4348, %v1164
        %v4413 = vmul.f32 %v4349, %v1164
        %v4414 = vmul.f32 %v4350, %v1169
        %v4415 = vmul.f32 %v4351, %v1169
        %v4416 = vmul.f32 %v4352, %v1174
        %v4417 = vmul.f32 %v4353, %v1174
        %v4418 = vmul.f32 %v4354, %v1179
        %v4419 = vmul.f32 %v4355, %v1179
        %v4420 = vmul.f32 %v4356, %v1184
        %v4421 = vmul.f32 %v4357, %v1184
        %v4422 = vmul.f32 %v4358, %v1189
        %v4423 = vmul.f32 %v4359, %v1189
        %v4424 = vmul.f32 %v4360, %v1194
        %v4425 = vmul.f32 %v4361, %v1194
        %v4426 = vmul.f32 %v4362, %v1199
        %v4427 = vmul.f32 %v4363, %v1199
        %v4428 = vmul.f32 %v4364, %v1204
        %v4429 = vmul.f32 %v4365, %v1204
        %v4430 = vmul.f32 %v4366, %v1209
        %v4431 = vmul.f32 %v4367, %v1209
        %v4432 = vmul.f32 %v4368, %v1214
        %v4433 = vmul.f32 %v4369, %v1214
        %v4434 = vmul.f32 %v4370, %v1219
        %v4435 = vmul.f32 %v4371, %v1219
        %v4436 = vmul.f32 %v4372, %v1224
        %v4437 = vmul.f32 %v4373, %v1224
        %v4438 = vmul.f32 %v4374, %v1229
        %v4439 = vmul.f32 %v4375, %v1229
        %v4440 = vmul.f32 %v4376, %v1234
        %v4441 = vmul.f32 %v4377, %v1234
        %v4442 = vmul.f32 %v4378, %v1239
        %v4443 = vmul.f32 %v4379, %v1239
        %v4444 = vmul.f32 %v4380, %v1244
        %v4445 = vmul.f32 %v4381, %v1244
        %v4446 = vmul.f32 %v4382, %v1249
        %v4447 = vmul.f32 %v4383, %v1249
        %v4448 = vmul.f32 %v4384, %v1254
        %v4449 = vmul.f32 %v4385, %v1254
        %v4450 = vmul.f32 %v4386, %v1259
        %v4451 = vmul.f32 %v4387, %v1259
        %v4452 = vmul.f32 %v4388, %v1264
        %v4453 = vmul.f32 %v4389, %v1264
        %v4454 = vmul.f32 %v4390, %v1269
        %v4455 = vmul.f32 %v4391, %v1269
        %v4456 = vmul.f32 %v4392, %v1274
        %v4457 = vmul.f32 %v4393, %v1274
        %v4458 = vmul.f32 %v4394, %v1279
        %v4459 = vmul.f32 %v4395, %v1279
        %v4460 = vmul.f32 %v4396, %v1284
        %v4461 = vmul.f32 %v4397, %v1284
        %v4462 = vadd.f32 %v4398, %v4400
        %v4463 = vadd.f32 %v4462, %v4402
        %v4464 = vadd.f32 %v4463, %v4404
        %v4465 = vadd.f32 %v4464, %v4406
        %v4466 = vadd.f32 %v4465, %v4408
        %v4467 = vadd.f32 %v4466, %v4410
        %v4468 = vadd.f32 %v4467, %v4412
        %v4469 = vadd.f32 %v4468, %v4414
        %v4470 = vadd.f32 %v4469, %v4416
        %v4471 = vadd.f32 %v4470, %v4418
        %v4472 = vadd.f32 %v4471, %v4420
        %v4473 = vadd.f32 %v4472, %v4422
        %v4474 = vadd.f32 %v4473, %v4424
        %v4475 = vadd.f32 %v4474, %v4426
        %v4476 = vadd.f32 %v4475, %v4428
        %v4477 = vadd.f32 %v4476, %v4430
        %v4478 = vadd.f32 %v4477, %v4432
        %v4479 = vadd.f32 %v4478, %v4434
        %v4480 = vadd.f32 %v4479, %v4436
        %v4481 = vadd.f32 %v4480, %v4438
        %v4482 = vadd.f32 %v4481, %v4440
        %v4483 = vadd.f32 %v4482, %v4442
        %v4484 = vadd.f32 %v4483, %v4444
        %v4485 = vadd.f32 %v4484, %v4446
        %v4486 = vadd.f32 %v4485, %v4448
        %v4487 = vadd.f32 %v4486, %v4450
        %v4488 = vadd.f32 %v4487, %v4452
        %v4489 = vadd.f32 %v4488, %v4454
        %v4490 = vadd.f32 %v4489, %v4456
        %v4491 = vadd.f32 %v4490, %v4458
        %v4492 = vadd.f32 %v4491, %v4460
        %v4493 = vrot.slane %v4492, 4
        %v4494 = vadd.f32 %v4492, %v4493
        %v4495 = vrot.slane %v4494, 2
        %v4496 = vadd.f32 %v4494, %v4495
        %v4497 = vrot.slane %v4496, 1
        %v4498 = vadd.f32 %v4496, %v4497
        %v4499 = vadd.f32 %v4399, %v4401
        %v4500 = vadd.f32 %v4499, %v4403
        %v4501 = vadd.f32 %v4500, %v4405
        %v4502 = vadd.f32 %v4501, %v4407
        %v4503 = vadd.f32 %v4502, %v4409
        %v4504 = vadd.f32 %v4503, %v4411
        %v4505 = vadd.f32 %v4504, %v4413
        %v4506 = vadd.f32 %v4505, %v4415
        %v4507 = vadd.f32 %v4506, %v4417
        %v4508 = vadd.f32 %v4507, %v4419
        %v4509 = vadd.f32 %v4508, %v4421
        %v4510 = vadd.f32 %v4509, %v4423
        %v4511 = vadd.f32 %v4510, %v4425
        %v4512 = vadd.f32 %v4511, %v4427
        %v4513 = vadd.f32 %v4512, %v4429
        %v4514 = vadd.f32 %v4513, %v4431
        %v4515 = vadd.f32 %v4514, %v4433
        %v4516 = vadd.f32 %v4515, %v4435
        %v4517 = vadd.f32 %v4516, %v4437
        %v4518 = vadd.f32 %v4517, %v4439
        %v4519 = vadd.f32 %v4518, %v4441
        %v4520 = vadd.f32 %v4519, %v4443
        %v4521 = vadd.f32 %v4520, %v4445
        %v4522 = vadd.f32 %v4521, %v4447
        %v4523 = vadd.f32 %v4522, %v4449
        %v4524 = vadd.f32 %v4523, %v4451
        %v4525 = vadd.f32 %v4524, %v4453
        %v4526 = vadd.f32 %v4525, %v4455
        %v4527 = vadd.f32 %v4526, %v4457
        %v4528 = vadd.f32 %v4527, %v4459
        %v4529 = vadd.f32 %v4528, %v4461
        %v4530 = vrot.slane %v4529, 4
        %v4531 = vadd.f32 %v4529, %v4530
        %v4532 = vrot.slane %v4531, 2
        %v4533 = vadd.f32 %v4531, %v4532
        %v4534 = vrot.slane %v4533, 1
        %v4535 = vadd.f32 %v4533, %v4534
        %v4536 = vmul.f32 %v4498, %v290
        %v4537 = vmul.f32 %v4535, %v291
        %v4538 = vmul.f32 %v4498, %v2170
        %v4539 = vmul.f32 %v4535, %v2171
        %v4540 = vadd.f32 %v2688, %v3420
        %v4541 = vadd.f32 %v2689, %v3421
        %v4542 = vadd.f32 %v2690, %v3422
        %v4543 = vadd.f32 %v2691, %v3423
        %v4544 = vadd.f32 %v2692, %v4024
        %v4545 = vadd.f32 %v2693, %v4025
        %v4546 = vadd.f32 %v2694, %v4026
        %v4547 = vadd.f32 %v2695, %v4027
        %v4548 = vadd.f32 %v2696, %v4536
        %v4549 = vadd.f32 %v2697, %v4537
        %v4550 = vadd.f32 %v2698, %v4538
        %v4551 = vadd.f32 %v2699, %v4539
        %v4552 = vsel %vm277, %v4540, 0.0
        %v4553 = vsel %vm277, %v4541, 0.0
        %v4554 = vadd.f32 %v4552, %v4553
        %4555 = vadd.xlane.f32.xlu0 %v4554
        %v4556 = vpop.xlane.xlu0 %4555
        %v4557 = vrot.slane %v4556, 4
        %v4558 = vadd.f32 %v4556, %v4557
        %v4559 = vrot.slane %v4558, 2
        %v4560 = vadd.f32 %v4558, %v4559
        %v4561 = vrot.slane %v4560, 1
        %v4562 = vadd.f32 %v4560, %v4561
        %s4563 = vtos %v4562
        %v4564 = vstv %s307
        %v4565 = vrcp.pop %v4564
        %v4566 = vmul.f32 %v4564, %v4565
        %v4567 = vsub.f32 1.0, %v4566
        %v4568 = vmul.f32 %v4565, %v4567
        %v4569 = vadd.f32 %v4565, %v4568
        %vm4570 = vweird.f32 %v4564
        %vm4571 = vweird.f32 %v4565
        %vm4572 = vmor %vm4570, %vm4571
        %v4573 = vsel %vm4572, %v4565, %v4569
        %v4574 = vand.u32 2147483647, %v4564
        %vm4575 = vcmp.eq.f32.partialorder %v4574, 8.507059e+37
        %v4576 = vand.u32 %v4564, 2147483648
        %v4577 = vor.u32 1.1754944e-38, %v4576
        %v4578 = vsel %vm4575, %v4577, %v4573
        %s4579 = vtos %v4578
        %s4580 = smul.f32 %s4563, %s4579
        %s4581 = scalar_lea.smem %s220, 0 [#allocation2]
        %4582 = sst [smem:[%s4581]] %s4580
        %v4583 = vsel %vm277, %v4542, 0.0
        %v4584 = vsel %vm277, %v4543, 0.0
        %v4585 = vadd.f32 %v4583, %v4584
        %4586 = vadd.xlane.f32.xlu0 %v4585
        %v4587 = vpop.xlane.xlu0 %4586
        %v4588 = vrot.slane %v4587, 4
        %v4589 = vadd.f32 %v4587, %v4588
        %v4590 = vrot.slane %v4589, 2
        %v4591 = vadd.f32 %v4589, %v4590
        %v4592 = vrot.slane %v4591, 1
        %v4593 = vadd.f32 %v4591, %v4592
        %s4594 = vtos %v4593
        %v4595 = vstv %s310
        %v4596 = vrcp.pop %v4595
        %v4597 = vmul.f32 %v4595, %v4596
        %v4598 = vsub.f32 1.0, %v4597
        %v4599 = vmul.f32 %v4596, %v4598
        %v4600 = vadd.f32 %v4596, %v4599
        %vm4601 = vweird.f32 %v4595
        %vm4602 = vweird.f32 %v4596
        %vm4603 = vmor %vm4601, %vm4602
        %v4604 = vsel %vm4603, %v4596, %v4600
        %v4605 = vand.u32 2147483647, %v4595
        %vm4606 = vcmp.eq.f32.partialorder %v4605, 8.507059e+37
        %v4607 = vand.u32 %v4595, 2147483648
        %v4608 = vor.u32 1.1754944e-38, %v4607
        %v4609 = vsel %vm4606, %v4608, %v4604
        %s4610 = vtos %v4609
        %s4611 = smul.f32 %s4594, %s4610
        %s4612 = scalar_lea.smem %s220, 1 [#allocation2]
        %4613 = sst [smem:[%s4612]] %s4611
        %v4614 = vsel %vm277, %v4544, 0.0
        %v4615 = vsel %vm277, %v4545, 0.0
        %v4616 = vadd.f32 %v4614, %v4615
        %4617 = vadd.xlane.f32.xlu0 %v4616
        %v4618 = vpop.xlane.xlu0 %4617
        %v4619 = vrot.slane %v4618, 4
        %v4620 = vadd.f32 %v4618, %v4619
        %v4621 = vrot.slane %v4620, 2
        %v4622 = vadd.f32 %v4620, %v4621
        %v4623 = vrot.slane %v4622, 1
        %v4624 = vadd.f32 %v4622, %v4623
        %s4625 = vtos %v4624
        %v4626 = vstv %s312
        %v4627 = vrcp.pop %v4626
        %v4628 = vmul.f32 %v4626, %v4627
        %v4629 = vsub.f32 1.0, %v4628
        %v4630 = vmul.f32 %v4627, %v4629
        %v4631 = vadd.f32 %v4627, %v4630
        %vm4632 = vweird.f32 %v4626
        %vm4633 = vweird.f32 %v4627
        %vm4634 = vmor %vm4632, %vm4633
        %v4635 = vsel %vm4634, %v4627, %v4631
        %v4636 = vand.u32 2147483647, %v4626
        %vm4637 = vcmp.eq.f32.partialorder %v4636, 8.507059e+37
        %v4638 = vand.u32 %v4626, 2147483648
        %v4639 = vor.u32 1.1754944e-38, %v4638
        %v4640 = vsel %vm4637, %v4639, %v4635
        %s4641 = vtos %v4640
        %s4642 = smul.f32 %s4625, %s4641
        %s4643 = scalar_lea.smem %s220, 2 [#allocation2]
        %4644 = sst [smem:[%s4643]] %s4642
        %v4645 = vsel %vm277, %v4546, 0.0
        %v4646 = vsel %vm277, %v4547, 0.0
        %v4647 = vadd.f32 %v4645, %v4646
        %4648 = vadd.xlane.f32.xlu0 %v4647
        %v4649 = vpop.xlane.xlu0 %4648
        %v4650 = vrot.slane %v4649, 4
        %v4651 = vadd.f32 %v4649, %v4650
        %v4652 = vrot.slane %v4651, 2
        %v4653 = vadd.f32 %v4651, %v4652
        %v4654 = vrot.slane %v4653, 1
        %v4655 = vadd.f32 %v4653, %v4654
        %s4656 = vtos %v4655
        %v4657 = vstv %s315
        %v4658 = vrcp.pop %v4657
        %v4659 = vmul.f32 %v4657, %v4658
        %v4660 = vsub.f32 1.0, %v4659
        %v4661 = vmul.f32 %v4658, %v4660
        %v4662 = vadd.f32 %v4658, %v4661
        %vm4663 = vweird.f32 %v4657
        %vm4664 = vweird.f32 %v4658
        %vm4665 = vmor %vm4663, %vm4664
        %v4666 = vsel %vm4665, %v4658, %v4662
        %v4667 = vand.u32 2147483647, %v4657
        %vm4668 = vcmp.eq.f32.partialorder %v4667, 8.507059e+37
        %v4669 = vand.u32 %v4657, 2147483648
        %v4670 = vor.u32 1.1754944e-38, %v4669
        %v4671 = vsel %vm4668, %v4670, %v4666
        %s4672 = vtos %v4671
        %s4673 = smul.f32 %s4656, %s4672
        %s4674 = scalar_lea.smem %s220, 3 [#allocation2]
        %4675 = sst [smem:[%s4674]] %s4673
        %v4676 = vsel %vm277, %v4548, 0.0
        %v4677 = vsel %vm277, %v4549, 0.0
        %v4678 = vadd.f32 %v4676, %v4677
        %4679 = vadd.xlane.f32.xlu0 %v4678
        %v4680 = vpop.xlane.xlu0 %4679
        %v4681 = vrot.slane %v4680, 4
        %v4682 = vadd.f32 %v4680, %v4681
        %v4683 = vrot.slane %v4682, 2
        %v4684 = vadd.f32 %v4682, %v4683
        %v4685 = vrot.slane %v4684, 1
        %v4686 = vadd.f32 %v4684, %v4685
        %s4687 = vtos %v4686
        %v4688 = vstv %s317
        %v4689 = vrcp.pop %v4688
        %v4690 = vmul.f32 %v4688, %v4689
        %v4691 = vsub.f32 1.0, %v4690
        %v4692 = vmul.f32 %v4689, %v4691
        %v4693 = vadd.f32 %v4689, %v4692
        %vm4694 = vweird.f32 %v4688
        %vm4695 = vweird.f32 %v4689
        %vm4696 = vmor %vm4694, %vm4695
        %v4697 = vsel %vm4696, %v4689, %v4693
        %v4698 = vand.u32 2147483647, %v4688
        %vm4699 = vcmp.eq.f32.partialorder %v4698, 8.507059e+37
        %v4700 = vand.u32 %v4688, 2147483648
        %v4701 = vor.u32 1.1754944e-38, %v4700
        %v4702 = vsel %vm4699, %v4701, %v4697
        %s4703 = vtos %v4702
        %s4704 = smul.f32 %s4687, %s4703
        %s4705 = scalar_lea.smem %s220, 4 [#allocation2]
        %4706 = sst [smem:[%s4705]] %s4704
        %v4707 = vsel %vm277, %v4550, 0.0
        %v4708 = vsel %vm277, %v4551, 0.0
        %v4709 = vadd.f32 %v4707, %v4708
        %4710 = vadd.xlane.f32.xlu0 %v4709
        %v4711 = vpop.xlane.xlu0 %4710
        %v4712 = vrot.slane %v4711, 4
        %v4713 = vadd.f32 %v4711, %v4712
        %v4714 = vrot.slane %v4713, 2
        %v4715 = vadd.f32 %v4713, %v4714
        %v4716 = vrot.slane %v4715, 1
        %v4717 = vadd.f32 %v4715, %v4716
        %s4718 = vtos %v4717
        %v4719 = vstv %s319
        %v4720 = vrcp.pop %v4719
        %v4721 = vmul.f32 %v4719, %v4720
        %v4722 = vsub.f32 1.0, %v4721
        %v4723 = vmul.f32 %v4720, %v4722
        %v4724 = vadd.f32 %v4720, %v4723
        %vm4725 = vweird.f32 %v4719
        %vm4726 = vweird.f32 %v4720
        %vm4727 = vmor %vm4725, %vm4726
        %v4728 = vsel %vm4727, %v4720, %v4724
        %v4729 = vand.u32 2147483647, %v4719
        %vm4730 = vcmp.eq.f32.partialorder %v4729, 8.507059e+37
        %v4731 = vand.u32 %v4719, 2147483648
        %v4732 = vor.u32 1.1754944e-38, %v4731
        %v4733 = vsel %vm4730, %v4732, %v4728
        %s4734 = vtos %v4733
        %s4735 = smul.f32 %s4718, %s4734
        %s4736 = scalar_lea.smem %s220, 5 [#allocation2]
        %4737 = sst [smem:[%s4736]] %s4735
        %s4738 = sand.u32 %s125, 1
        %s4739 = scalar_lea.sflag [#allocation3], %s4738
        %s4740 = sand.u32 %s125, 1
        %s4741 = smul.addr %s4740, 128
        %s4742 = scalar_lea.smem [#allocation2], %s4741
        // Predicated region
        $region37: #{full_training_ranet_correlation.1} parent=35 // pred_check
          %p4743 = pneg %p135
        $region38: #{full_training_ranet_correlation.1} parent=35 // pred_check_branch
          %4745 = sbr.rel (%p4743) target = $region40
        $region39: #{full_training_ranet_correlation.1} parent=35 // pred_region
          %4747 = vsyncadd %s4739, 0
          %s4748 = scalar_lea.vmem %s4, %s18
          %s4750 = sshll.u32 %s4748, 4
          %s4751 = int_to_ptr.vmem [resolvable:$true] %s4750
          %4753 = dma.smem_to_vmem %s4742, 16, %s4751, %s4739
        $region40: #{full_training_ranet_correlation.1} parent=35 // pred_fallthru
          _
      $region36: #{full_training_ranet_correlation.1} parent=5 // pred_fallthru
        _
      %p4754 = scmp.le.s32.totalorder 2, %s13
      // Predicated region
      $region41: #{full_training_ranet_correlation.1} parent=5 // pred_check
        %p4755 = pneg %p4754
      $region42: #{full_training_ranet_correlation.1} parent=5 // pred_check_branch
        %4757 = sbr.rel (%p4755) target = $region44
      $region43: #{full_training_ranet_correlation.1} parent=5 // pred_region
        %s4758 = ssub.s32 %s13, 2
        // Predicated region
        $region45: #{full_training_ranet_correlation.1} parent=43 // pred_check
          %p4759 = pneg %p141
        $region46: #{full_training_ranet_correlation.1} parent=43 // pred_check_branch
          %4761 = sbr.rel (%p4759) target = $region48
        $region47: #{full_training_ranet_correlation.1} parent=43 // pred_region
          %s4762 = sand.u32 %s126, 1
          %s4763 = scalar_lea.sflag [#allocation3], %s4762
          %s4764 = sand.u32 %s126, 1
          %s4765 = smul.addr %s4764, 128
          %s4766 = scalar_lea.smem [#allocation2], %s4765
          %4768 = dma.done %s4763, 16
        $region48: #{full_training_ranet_correlation.1} parent=43 // pred_fallthru
          _
        %4769 = sfence
      $region44: #{full_training_ranet_correlation.1} parent=5 // pred_fallthru
        _
    $region6: #{full_training_ranet_correlation.1} parent=1 // loop_footer
      %s17 = sadd.s32 1, %s13
    $region7: #{full_training_ranet_correlation.1} parent=1 // loop_footer_branch
      %12 = sbr.rel target = $region3
    $region8: #{full_training_ranet_correlation.1} parent=1 // loop_exit
      _
    %4770 = vsyncpa [#allocation3], 1
    %s4771 = scalar_lea.sflag [#allocation3], 1
    %4772 = vsyncpa %s4771, 1

</llo_original>
